<compile_context>
chip_gen: v7x
topology: tpu7x:2x2x1
jax: 0.10.0
libtpu: 0.0.40
codegen_flags: <defaults>
</compile_context>

<pallas_src>
import functools
import math

import jax
import jax.numpy as jnp
from jax.experimental import pallas as pl
from jax.experimental.pallas import tpu as pltpu

# ---- scaled-down module hyper-parameters (defaults 192/324 shrunk for the demo) ----
N_CH = 16                       # out_channels_n
M_CH = 32                       # out_channels_m
CHANNELS = 3 * N_CH + M_CH      # octave encoder output channels (= 80)
NUM_LAYERS = 4                  # number of octave levels (len(alpha) - 1)
FEAT_CH = (N_CH, N_CH, N_CH, M_CH)
G_HALF = NUM_LAYERS * M_CH      # 128 : mu lanes (and sigma lanes) of fused gaussian conv
G_OUT = 2 * G_HALF              # 256 : fused gaussian conv output lanes
Z_CH = NUM_LAYERS * N_CH        # prior output channels (= 64)
DEC_OUT = 3 * 256               # decoder output lanes (depth-to-space 16 -> RGB)

_INV_LN2 = 1.0 / math.log(2.0)
_INV_SQRT2 = 1.0 / math.sqrt(2.0)

# Row tile: big tiles amortize the ~0.35us per-grid-step overhead; double-buffered
# footprint at 1024 rows stays < 8 MiB for every kernel, well inside the 32 MiB
# scoped-VMEM limit requested below (safe on v5e/v6e/v7x alike).
TILE_ROWS = 1024
VMEM_LIMIT = 32 * 1024 * 1024


def _pick_tile(rows, maximum=TILE_ROWS, quantum=16):
    """Largest legal row tile.

    - multiple of `quantum` (16: safe sublane count for bf16-tiled blocks),
    - divides `rows` exactly (no ragged last tile),
    - <= rows // 2 so a 'parallel' grid axis gets >= 2 steps (v7x megacore),
    - falls back to a single full-extent block (always legal: block == full dim)
      when rows is small or has no suitable divisor.
    """
    if rows < 2 * quantum:
        return rows
    cap = min(maximum, (rows // 2) // quantum * quantum)
    t = cap // quantum * quantum
    while t >= quantum:
        if rows % t == 0:
            return t
        t -= quantum
    return rows


def _cparams(*semantics):
    return pltpu.CompilerParams(
        dimension_semantics=semantics,
        vmem_limit_bytes=VMEM_LIMIT)


# ----------------------------------------------------------------------------------
# math helpers (usable inside kernels: only exp / tanh / mul / add / where)
# ----------------------------------------------------------------------------------
def _erf(x):
    # Abramowitz & Stegun 7.1.26 (|err| < 1.5e-7).
    a1, a2, a3, a4, a5 = 0.254829592, -0.284496736, 1.421413741, -1.453152027, 1.061405429
    p = 0.3275911
    sgn = jnp.where(x >= 0.0, 1.0, -1.0)
    ax = jnp.abs(x)
    t = 1.0 / (1.0 + p * ax)
    poly = ((((a5 * t + a4) * t + a3) * t + a2) * t + a1) * t
    return sgn * (1.0 - poly * jnp.exp(-ax * ax))


def _std_normal_cdf(x):
    return 0.5 * (1.0 + _erf(x * _INV_SQRT2))


def _sigmoid(x):
    return 0.5 * (jnp.tanh(0.5 * x) + 1.0)


# ----------------------------------------------------------------------------------
# Kernel A: encoder patch-embed + fuse_feature(round) + pooled channel sums
#           grid = (B, hw16 tiles); pooled output accumulated across the hw axis
# ----------------------------------------------------------------------------------
def _encode_kernel(x_ref, we_ref, be_ref, wf_ref, bf_ref,
                   feat_ref, cf_ref, pooled_ref):
    i = pl.program_id(1)
    # TODO(synk): OctaveAnalysisNetOnlyAttention is undefined in the reference; a
    # stride-16 conv (space-to-depth + matmul) stands in for the octave encoder.
    f = jnp.dot(x_ref[0], we_ref[...],
                preferred_element_type=jnp.float32) + be_ref[...]
    feat_ref[0] = f.astype(feat_ref.dtype)
    # fuse_feature(features[::-1]) : channel reversal folded into wf rows at init.
    cf = jnp.dot(f, wf_ref[...], preferred_element_type=jnp.float32) + bf_ref[...]
    cf_ref[0] = jnp.round(cf)                      # eval-mode torch.round
    # pooled channel sums for the gaussian-module attention weights (accumulator
    # output: same block index across the hw axis -> axis marked "arbitrary").
    @pl.when(i == 0)
    def _():
        pooled_ref[0] = jnp.zeros_like(pooled_ref[0])
    pooled_ref[0] = pooled_ref[0] + jnp.sum(f, axis=0, keepdims=True)


def encode(xe, p):
    B, hw16, cin = xe.shape
    t = _pick_tile(hw16)
    return pl.pallas_call(
        _encode_kernel,
        out_shape=(jax.ShapeDtypeStruct((B, hw16, CHANNELS), jnp.bfloat16),
                   jax.ShapeDtypeStruct((B, hw16, M_CH), jnp.float32),
                   jax.ShapeDtypeStruct((B, 1, CHANNELS), jnp.float32)),
        grid=(B, hw16 // t),
        in_specs=[pl.BlockSpec((1, t, cin), lambda b, i: (b, i, 0)),
                  pl.BlockSpec((cin, CHANNELS), lambda b, i: (0, 0)),
                  pl.BlockSpec((1, CHANNELS), lambda b, i: (0, 0)),
                  pl.BlockSpec((CHANNELS, M_CH), lambda b, i: (0, 0)),
                  pl.BlockSpec((1, M_CH), lambda b, i: (0, 0))],
        out_specs=(pl.BlockSpec((1, t, CHANNELS), lambda b, i: (b, i, 0)),
                   pl.BlockSpec((1, t, M_CH), lambda b, i: (b, i, 0)),
                   pl.BlockSpec((1, 1, CHANNELS), lambda b, i: (b, 0, 0))),
        compiler_params=_cparams("parallel", "arbitrary"),
    )(xe, p["enc_w"], p["enc_b"], p["ff_w"], p["ff_b"])


# ----------------------------------------------------------------------------------
# Kernel B: prior conv + fuse_z (round) + factorized entropy bottleneck
# ----------------------------------------------------------------------------------
def _prior_kernel(zin_ref, wp_ref, bp_ref, wz_ref, bz_ref,
                  zall_ref, zhat_ref, nll_ref):
    # TODO(synk): OctaveAnalysisPriorNet is undefined; a stride-4 conv stands in.
    z = jnp.dot(zin_ref[...], wp_ref[...],
                preferred_element_type=jnp.float32) + bp_ref[...]
    zall_ref[...] = z.astype(zall_ref.dtype)
    # fuse_z(zs[::-1]) : channel reversal folded into wz rows at init; eval round.
    zc = jnp.round(jnp.dot(z, wz_ref[...],
                           preferred_element_type=jnp.float32) + bz_ref[...])
    zhat_ref[...] = zc
    # TODO(synk): EntropyBottleneck's learned per-channel factorized CDF is not
    # given; a unit logistic CDF stands in (likelihood = sig(z+.5) - sig(z-.5)).
    lik = _sigmoid(zc + 0.5) - _sigmoid(zc - 0.5)
    neg = -jnp.log(jnp.abs(lik) + 1e-10) * _INV_LN2
    nll_ref[...] = jnp.sum(neg, axis=-1, keepdims=True)   # per-row partial sum


def prior(zin, p):
    rows, cin = zin.shape
    t = _pick_tile(rows)
    return pl.pallas_call(
        _prior_kernel,
        out_shape=(jax.ShapeDtypeStruct((rows, Z_CH), jnp.bfloat16),
                   jax.ShapeDtypeStruct((rows, N_CH), jnp.float32),
                   jax.ShapeDtypeStruct((rows, 1), jnp.float32)),
        grid=(rows // t,),
        in_specs=[pl.BlockSpec((t, cin), lambda i: (i, 0)),
                  pl.BlockSpec((cin, Z_CH), lambda i: (0, 0)),
                  pl.BlockSpec((1, Z_CH), lambda i: (0, 0)),
                  pl.BlockSpec((Z_CH, N_CH), lambda i: (0, 0)),
                  pl.BlockSpec((1, N_CH), lambda i: (0, 0))],
        out_specs=(pl.BlockSpec((t, Z_CH), lambda i: (i, 0)),
                   pl.BlockSpec((t, N_CH), lambda i: (i, 0)),
                   pl.BlockSpec((t, 1), lambda i: (i, 0))),
        compiler_params=_cparams("parallel"),
    )(zin, p["prior_w"], p["prior_b"], p["fz_w"], p["fz_b"])


# ----------------------------------------------------------------------------------
# Kernel C: fused gaussian structure conv + mixture + conditional likelihood
#           + fuse_feature_z + swin + decoder  (single lane-dense bf16 output)
# ----------------------------------------------------------------------------------
def _mix_decode_kernel(f_ref, zu_ref, y_ref, zh_ref, mw_ref,
                       wgf_ref, wgz_ref, bg_ref, sel_ref,
                       dwy_ref, dwz_ref, dws_ref, db_ref,
                       dec_ref, nll_ref):
    f = f_ref[0]                                   # (T, 80)  bf16
    zu = zu_ref[0]                                 # (T, 64)  bf16
    # TODO(synk): OctaveGaussianStructureBlock is undefined; one fused 1x1 conv
    # (4 per-octave convs packed block-wise) stands in.  Columns are packed
    # [mu_0..mu_3 | sr_0..sr_3] so mu / sigma slices are 128-lane aligned.
    g = (jnp.dot(f, wgf_ref[...], preferred_element_type=jnp.float32)
         + jnp.dot(zu, wgz_ref[...], preferred_element_type=jnp.float32)
         + bg_ref[...])                            # (T, 256) f32
    g_mu = g[:, :G_HALF]                           # (T, 128) lane-aligned
    g_sr = g[:, G_HALF:]
    sig = g_sr * g_sr + 1e-6

    # get_recon_mu_sigma (exact formula): 4-group weighted reduction done as a
    # (T,128)x(128,32) MXU matmul with a constant 0/1 group-sum selector.
    mw = mw_ref[0]                                 # (1, 128) mixture weights (batch b)
    sel = sel_ref[...]                             # (128, 32)
    recon_mu = jnp.dot(g_mu * mw, sel, preferred_element_type=jnp.float32)
    recon_tmp = jnp.dot((g_mu * g_mu + sig) * mw, sel,
                        preferred_element_type=jnp.float32)
    recon_sigma = jnp.sqrt(jnp.abs(recon_tmp - recon_mu * recon_mu) + 1e-18)

    # GaussianConditional (eval): dequantize around the mean + likelihood.
    y = y_ref[0]                                   # (T, M) f32 (rounded latent)
    y_hat = jnp.round(y - recon_mu) + recon_mu
    scale = jnp.maximum(recon_sigma, 0.11)         # SCALES_MIN lower bound
    inv = pl.reciprocal(scale, approx=True)        # EUP slot
    inv = inv * (2.0 - scale * inv)                # one Newton step -> ~f32 accurate
    v = jnp.abs(y_hat - recon_mu)
    lik = (_std_normal_cdf((0.5 - v) * inv)
           - _std_normal_cdf((-0.5 - v) * inv))
    neg = -jnp.log(jnp.abs(lik) + 1e-10) * _INV_LN2
    nll_ref[0] = jnp.sum(neg, axis=-1, keepdims=True)   # per-row partial sum

    # fuse_feature_z + forward_swin + add + decoder: all linear after exp(z_hat),
    # folded into three 768-lane matmuls at init (dwy = wfy@wd, dwz = wfz@wd,
    # dws = ws@wd, db = (bfz+bs)@wd + bd).
    # TODO(synk): forward_swin / SynthesisNet are undefined in the reference; a
    # linear layer + 1x1 conv to 3*16*16 (depth-to-space 16 in the wrapper) stand in.
    ez = jnp.exp(zh_ref[0])                        # FuseFeatures consumes exp(z_hat)
    dec = (jnp.dot(y_hat, dwy_ref[...], preferred_element_type=jnp.float32)
           + jnp.dot(ez, dwz_ref[...], preferred_element_type=jnp.float32)
           + jnp.dot(y, dws_ref[...], preferred_element_type=jnp.float32)
           + db_ref[...])
    dec_ref[0] = dec.astype(dec_ref.dtype)         # lane-dense bf16 store


def mix_decode(f3, zu3, y3, zh3, mw_flat, p):
    B, HW, _ = f3.shape
    t = _pick_tile(HW)
    return pl.pallas_call(
        _mix_decode_kernel,
        out_shape=(jax.ShapeDtypeStruct((B, HW, DEC_OUT), jnp.bfloat16),
                   jax.ShapeDtypeStruct((B, HW, 1), jnp.float32)),
        grid=(B, HW // t),
        in_specs=[pl.BlockSpec((1, t, CHANNELS), lambda b, i: (b, i, 0)),
                  pl.BlockSpec((1, t, Z_CH), lambda b, i: (b, i, 0)),
                  pl.BlockSpec((1, t, M_CH), lambda b, i: (b, i, 0)),
                  pl.BlockSpec((1, t, N_CH), lambda b, i: (b, i, 0)),
                  pl.BlockSpec((1, 1, G_HALF), lambda b, i: (b, 0, 0)),
                  pl.BlockSpec((CHANNELS, G_OUT), lambda b, i: (0, 0)),
                  pl.BlockSpec((Z_CH, G_OUT), lambda b, i: (0, 0)),
                  pl.BlockSpec((1, G_OUT), lambda b, i: (0, 0)),
                  pl.BlockSpec((G_HALF, M_CH), lambda b, i: (0, 0)),
                  pl.BlockSpec((M_CH, DEC_OUT), lambda b, i: (0, 0)),
                  pl.BlockSpec((N_CH, DEC_OUT), lambda b, i: (0, 0)),
                  pl.BlockSpec((M_CH, DEC_OUT), lambda b, i: (0, 0)),
                  pl.BlockSpec((1, DEC_OUT), lambda b, i: (0, 0))],
        out_specs=(pl.BlockSpec((1, t, DEC_OUT), lambda b, i: (b, i, 0)),
                   pl.BlockSpec((1, t, 1), lambda b, i: (b, i, 0))),
        compiler_params=_cparams("parallel", "parallel"),
    )(f3, zu3, y3, zh3, mw_flat,
      p["gauss_f_w"], p["gauss_z_w"], p["gauss_b"], p["mix_sel"],
      p["dec_wy"], p["dec_wz"], p["dec_ws"], p["dec_b"])


# ----------------------------------------------------------------------------------
# parameter construction (weights packed / folded at init = layout plumbing)
# ----------------------------------------------------------------------------------
def init_params(key):
    def dense(k, cin, cout, dtype=jnp.float32):
        kw, kb = jax.random.split(k)
        w = jax.random.normal(kw, (cin, cout), jnp.float32) / math.sqrt(cin)
        b = 0.01 * jax.random.normal(kb, (1, cout), jnp.float32)
        return w.astype(dtype), b

    keys = jax.random.split(key, 20)
    p = {}
    # wide matmul weights stored in bf16 (HBM-traffic dominated, f32 accumulation);
    # channel-within-patch ordering of the NCHW space-to-depth is folded into rows.
    p["enc_w"], p["enc_b"] = dense(keys[0], 3 * 256, CHANNELS, jnp.bfloat16)
    # fuse_feature / fuse_z: octave-group reversal (features[::-1], zs[::-1]) is
    # folded into the weight-row ordering at init (no runtime copy).
    p["ff_w"], p["ff_b"] = dense(keys[1], CHANNELS, M_CH)
    p["prior_w"], p["prior_b"] = dense(keys[2], 16 * CHANNELS, Z_CH, jnp.bfloat16)
    p["fz_w"], p["fz_b"] = dense(keys[3], Z_CH, N_CH)

    # Fused gaussian conv: pack 4 per-octave convs block-wise; mu columns occupy
    # lanes 0..127 and sigma_raw columns lanes 128..255 (vreg-aligned slices).
    gf = jnp.zeros((CHANNELS, G_OUT), jnp.float32)
    gz = jnp.zeros((Z_CH, G_OUT), jnp.float32)
    gb = jnp.zeros((1, G_OUT), jnp.float32)
    gw = jnp.zeros((CHANNELS, NUM_LAYERS * M_CH), jnp.float32)
    gwb = jnp.zeros((1, NUM_LAYERS * M_CH), jnp.float32)
    off = 0
    for i, c in enumerate(FEAT_CH):
        wi, bi = dense(keys[4 + i], c + N_CH, 2 * M_CH)
        mu_c = slice(i * M_CH, (i + 1) * M_CH)
        sr_c = slice(G_HALF + i * M_CH, G_HALF + (i + 1) * M_CH)
        gf = gf.at[off:off + c, mu_c].set(wi[:c, :M_CH])
        gf = gf.at[off:off + c, sr_c].set(wi[:c, M_CH:])
        gz = gz.at[i * N_CH:(i + 1) * N_CH, mu_c].set(wi[c:, :M_CH])
        gz = gz.at[i * N_CH:(i + 1) * N_CH, sr_c].set(wi[c:, M_CH:])
        gb = gb.at[:, mu_c].set(bi[:, :M_CH])
        gb = gb.at[:, sr_c].set(bi[:, M_CH:])
        ww, wb = dense(keys[8 + i], c, M_CH)
        gw = gw.at[off:off + c, i * M_CH:(i + 1) * M_CH].set(ww)
        gwb = gwb.at[:, i * M_CH:(i + 1) * M_CH].set(wb)
        off += c
    p["gauss_f_w"] = gf.astype(jnp.bfloat16)
    p["gauss_z_w"] = gz.astype(jnp.bfloat16)
    p["gauss_b"] = gb
    p["gw_w"], p["gw_b"] = gw, gwb

    # constant 0/1 group-sum selector for the mixture reduction on the MXU
    p["mix_sel"] = (jnp.arange(G_HALF)[:, None] % M_CH
                    == jnp.arange(M_CH)[None, :]).astype(jnp.float32)

    # fuse_feature_z + swin + decoder chain folded into the 768-lane weights
    wfy, bfz = dense(keys[12], M_CH, M_CH)          # FuseFeatures (feature path)
    wfz, _ = dense(keys[13], N_CH, M_CH)            # FuseFeatures (exp(z_hat) path)
    ws, bs = dense(keys[14], M_CH, M_CH)            # forward_swin stand-in
    wd, bd = dense(keys[15], M_CH, DEC_OUT)         # SynthesisNet stand-in
    p["dec_wy"] = wfy @ wd                          # (32, 768) resident in VMEM
    p["dec_wz"] = wfz @ wd                          # (16, 768)
    p["dec_ws"] = ws @ wd                           # (32, 768)
    p["dec_b"] = (bfz + bs) @ wd + bd               # (1, 768)
    return p


# ----------------------------------------------------------------------------------
# forward (eval-mode semantics: quantization by rounding, no uniform noise)
# ----------------------------------------------------------------------------------
def forward(params, x_nchw):
    B, _, H, W = x_nchw.shape
    h16, w16, h64, w64 = H // 16, W // 16, H // 64, W // 64
    hw16 = h16 * w16
    rows64 = B * h64 * w64

    # patch-embed layout: NCHW -> (B, hw16, 3*16*16) with ONE transpose + convert
    # (the (c,py,px) order inside each patch is a row permutation of enc_w).
    xe = x_nchw.reshape(B, 3, h16, 16, w16, 16)
    xe = xe.transpose(0, 2, 4, 1, 3, 5).reshape(B, hw16, 3 * 256).astype(jnp.bfloat16)

    # A: encoder + fuse_feature(+round) + pooled channel sums
    f_all, compressed_feature, pooled_sum = encode(xe, params)

    # B: prior + fuse_z(+round) + factorized bottleneck (space-to-depth by 4)
    zin = f_all.reshape(B, h64, 4, w64, 4, CHANNELS)
    zin = zin.transpose(0, 1, 3, 2, 4, 5).reshape(rows64, 16 * CHANNELS)
    z_all, z_hat, nll_z = prior(zin, params)

    # gaussian-module pooled attention weights (~B rows of work -> plain JAX)
    pooled = pooled_sum[:, 0, :] / float(hw16)
    w_all = jax.nn.softplus(pooled @ params["gw_w"] + params["gw_b"]) + 1e-3
    w_all = w_all.reshape(B, NUM_LAYERS, M_CH)
    # get_recon_mu_sigma mixture-weight prelude (exact reference formula, tiny (B,L,M))
    sw = [jnp.ones_like(w_all[:, 0])]
    for i in range(1, NUM_LAYERS):
        sw.append(w_all[:, i] / w_all[:, i - 1])
    mw0 = jnp.ones_like(w_all[:, 0]) / sum(sw)
    mixture_w = jnp.stack([mw0 * sw[i] for i in range(NUM_LAYERS)], axis=1)
    mw_flat = mixture_w.reshape(B, 1, G_HALF)      # lane order matches mu packing

    # nearest-4x upsample of the prior outputs (broadcast, fused by XLA).
    # TODO(synk): could be avoided entirely by a (h64,w64,4,4) row ordering and an
    # index_map that maps each hw16 tile to its hw64 block; kept in the wrapper.
    def up4(z, c):
        z = z.reshape(B, h64, w64, c)
        z = jnp.broadcast_to(z[:, :, None, :, None, :], (B, h64, 4, w64, 4, c))
        return z.reshape(B, hw16, c)

    z_up = up4(z_all, Z_CH)                        # bf16, (B, hw16, 64)
    zh_up = up4(z_hat, N_CH)                       # f32,  (B, hw16, 16)

    # C: fused gaussian conv + mixture + conditional likelihood + decode
    dec, nll_f = mix_decode(f_all, z_up, compressed_feature, zh_up, mw_flat, params)

    denom = float(B * H * W)
    bpp_feature = jnp.sum(nll_f) / denom
    bpp_z = jnp.sum(nll_z) / denom

    # depth-to-space(16) straight back to NCHW (dec_w column order is (3,16,16))
    recon = dec.astype(jnp.float32).reshape(B, h16, w16, 3, 16, 16)
    recon_image = recon.transpose(0, 3, 1, 4, 2, 5).reshape(B, 3, H, W)

    return recon_image, bpp_feature, bpp_z, jnp.array(0, jnp.int32)


if __name__ == "__main__":
    x = jax.random.uniform(jax.random.PRNGKey(0), (2, 3, 64, 64), jnp.float32)
    params = init_params(jax.random.PRNGKey(42))
    fwd = jax.jit(functools.partial(forward, params))
    recon_image, bpp_feature, bpp_z, zero = fwd(x)
    jax.block_until_ready(recon_image)
    assert recon_image.shape == (2, 3, 64, 64)
    assert not bool(jnp.isnan(bpp_feature + bpp_z))   # mirrors the module's assert
    print("KERNEL_OK")
</pallas_src>

<mosaic_0001>
module attributes {stable_mosaic.version = 11 : i64} {
  func.func @_encode_kernel(%arg0: i32, %arg1: i32, %arg2: memref<1x16x768xbf16, #tpu.memory_space<vmem>>, %arg3: memref<768x80xbf16, #tpu.memory_space<vmem>>, %arg4: memref<1x80xf32, #tpu.memory_space<vmem>>, %arg5: memref<80x32xf32, #tpu.memory_space<vmem>>, %arg6: memref<1x32xf32, #tpu.memory_space<vmem>>, %arg7: memref<1x16x80xbf16, #tpu.memory_space<vmem>>, %arg8: memref<1x16x32xf32, #tpu.memory_space<vmem>>, %arg9: memref<1x1x80xf32, #tpu.memory_space<vmem>>) attributes {dimension_semantics = [#tpu.dimension_semantics<parallel>, #tpu.dimension_semantics<arbitrary>], iteration_bounds = array<i64: 2, 1>, scalar_prefetch = 0 : i64, scratch_operands = 0 : i64, tpu.core_type = #tpu.core_type<tc>, window_params = [{transform_indices = @transform_0, window_bounds = array<i64: 1, 16, 768>}, {pipeline_mode = #tpu.pipeline_mode<synchronous>, transform_indices = @transform_1, window_bounds = array<i64: 768, 80>}, {pipeline_mode = #tpu.pipeline_mode<synchronous>, transform_indices = @transform_2, window_bounds = array<i64: 1, 80>}, {pipeline_mode = #tpu.pipeline_mode<synchronous>, transform_indices = @transform_3, window_bounds = array<i64: 80, 32>}, {pipeline_mode = #tpu.pipeline_mode<synchronous>, transform_indices = @transform_4, window_bounds = array<i64: 1, 32>}, {transform_indices = @transform_5, window_bounds = array<i64: 1, 16, 80>}, {transform_indices = @transform_6, window_bounds = array<i64: 1, 16, 32>}, {transform_indices = @transform_7, window_bounds = array<i64: 1, 1, 80>}]} {
    %c0 = arith.constant 0 : index
    %c0_0 = arith.constant 0 : index
    %c0_1 = arith.constant 0 : index
    %0 = vector.load %arg2[%c0, %c0_0, %c0_1] : memref<1x16x768xbf16, #tpu.memory_space<vmem>>, vector<1x16x768xbf16>
    %1 = vector.shape_cast %0 : vector<1x16x768xbf16> to vector<16x768xbf16>
    %c0_2 = arith.constant 0 : index
    %c0_3 = arith.constant 0 : index
    %2 = vector.load %arg3[%c0_2, %c0_3] : memref<768x80xbf16, #tpu.memory_space<vmem>>, vector<768x80xbf16>
    %cst = arith.constant dense<0.000000e+00> : vector<16x80xf32>
    %3 = tpu.matmul %1, %2, %cst {dimension_numbers = #tpu.dot_dimension_numbers<[1], [0], [0], [1], [0, 0, 1, 1], [], []>} : vector<16x768xbf16>, vector<768x80xbf16>, vector<16x80xf32> -> vector<16x80xf32>
    %c0_4 = arith.constant 0 : index
    %c0_5 = arith.constant 0 : index
    %4 = vector.load %arg4[%c0_4, %c0_5] : memref<1x80xf32, #tpu.memory_space<vmem>>, vector<1x80xf32>
    %5 = vector.broadcast %4 : vector<1x80xf32> to vector<16x80xf32>
    %6 = arith.addf %3, %5 : vector<16x80xf32>
    %7 = arith.truncf %6 : vector<16x80xf32> to vector<16x80xbf16>
    %c0_6 = arith.constant 0 : index
    %c0_7 = arith.constant 0 : index
    %c0_8 = arith.constant 0 : index
    %8 = vector.load %arg7[%c0_6, %c0_7, %c0_8] : memref<1x16x80xbf16, #tpu.memory_space<vmem>>, vector<1x16x80xbf16>
    %9 = vector.shape_cast %8 : vector<1x16x80xbf16> to vector<16x80xbf16>
    %10 = vector.shape_cast %7 : vector<16x80xbf16> to vector<1x16x80xbf16>
    tpu.vector_store %arg7[%c0_6, %c0_7, %c0_8], %10 {strides = array<i32>} : memref<1x16x80xbf16, #tpu.memory_space<vmem>>, vector<1x16x80xbf16>,
    %c0_9 = arith.constant 0 : index
    %c0_10 = arith.constant 0 : index
    %11 = vector.load %arg5[%c0_9, %c0_10] : memref<80x32xf32, #tpu.memory_space<vmem>>, vector<80x32xf32>
    %cst_11 = arith.constant dense<0.000000e+00> : vector<16x32xf32>
    %12 = tpu.matmul %6, %11, %cst_11 {dimension_numbers = #tpu.dot_dimension_numbers<[1], [0], [0], [1], [0, 0, 1, 1], [], []>} : vector<16x80xf32>, vector<80x32xf32>, vector<16x32xf32> -> vector<16x32xf32>
    %c0_12 = arith.constant 0 : index
    %c0_13 = arith.constant 0 : index
    %13 = vector.load %arg6[%c0_12, %c0_13] : memref<1x32xf32, #tpu.memory_space<vmem>>, vector<1x32xf32>
    %14 = vector.broadcast %13 : vector<1x32xf32> to vector<16x32xf32>
    %15 = arith.addf %12, %14 : vector<16x32xf32>
    %16 = math.roundeven %15 : vector<16x32xf32>
    %c0_14 = arith.constant 0 : index
    %c0_15 = arith.constant 0 : index
    %c0_16 = arith.constant 0 : index
    %17 = vector.load %arg8[%c0_14, %c0_15, %c0_16] : memref<1x16x32xf32, #tpu.memory_space<vmem>>, vector<1x16x32xf32>
    %18 = vector.shape_cast %17 : vector<1x16x32xf32> to vector<16x32xf32>
    %19 = vector.shape_cast %16 : vector<16x32xf32> to vector<1x16x32xf32>
    tpu.vector_store %arg8[%c0_14, %c0_15, %c0_16], %19 {strides = array<i32>} : memref<1x16x32xf32, #tpu.memory_space<vmem>>, vector<1x16x32xf32>,
    %c0_i32 = arith.constant 0 : i32
    %20 = arith.cmpi eq, %arg1, %c0_i32 : i32
    %21 = arith.extui %20 : i1 to i32
    %c0_i32_17 = arith.constant 0 : i32
    %22 = arith.cmpi ne, %21, %c0_i32_17 : i32
    scf.if %22 {
      %cst_25 = arith.constant 0.000000e+00 : f32
      %31 = vector.broadcast %cst_25 : f32 to vector<1x80xf32>
      %c0_26 = arith.constant 0 : index
      %c0_27 = arith.constant 0 : index
      %c0_28 = arith.constant 0 : index
      %32 = vector.load %arg9[%c0_26, %c0_27, %c0_28] : memref<1x1x80xf32, #tpu.memory_space<vmem>>, vector<1x1x80xf32>
      %33 = vector.shape_cast %32 : vector<1x1x80xf32> to vector<1x80xf32>
      %34 = vector.shape_cast %31 : vector<1x80xf32> to vector<1x1x80xf32>
      tpu.vector_store %arg9[%c0_26, %c0_27, %c0_28], %34 {strides = array<i32>} : memref<1x1x80xf32, #tpu.memory_space<vmem>>, vector<1x1x80xf32>,
    } else {
    }
    %c0_18 = arith.constant 0 : index
    %c0_19 = arith.constant 0 : index
    %c0_20 = arith.constant 0 : index
    %23 = vector.load %arg9[%c0_18, %c0_19, %c0_20] : memref<1x1x80xf32, #tpu.memory_space<vmem>>, vector<1x1x80xf32>
    %24 = vector.shape_cast %23 : vector<1x1x80xf32> to vector<1x80xf32>
    %cst_21 = arith.constant dense<0.000000e+00> : vector<80xf32>
    %25 = vector.multi_reduction <add>, %6, %cst_21 [0] : vector<16x80xf32> to vector<80xf32>
    %26 = vector.shape_cast %25 : vector<80xf32> to vector<1x80xf32>
    %27 = arith.addf %24, %26 : vector<1x80xf32>
    %c0_22 = arith.constant 0 : index
    %c0_23 = arith.constant 0 : index
    %c0_24 = arith.constant 0 : index
    %28 = vector.load %arg9[%c0_22, %c0_23, %c0_24] : memref<1x1x80xf32, #tpu.memory_space<vmem>>, vector<1x1x80xf32>
    %29 = vector.shape_cast %28 : vector<1x1x80xf32> to vector<1x80xf32>
    %30 = vector.shape_cast %27 : vector<1x80xf32> to vector<1x1x80xf32>
    tpu.vector_store %arg9[%c0_22, %c0_23, %c0_24], %30 {strides = array<i32>} : memref<1x1x80xf32, #tpu.memory_space<vmem>>, vector<1x1x80xf32>,
    return
  }
  func.func @transform_0(%arg0: i32, %arg1: i32) -> (i32, i32, i32) {
    %c0_i32 = arith.constant 0 : i32
    %c0_i32_0 = arith.constant 0 : i32
    return %arg0, %arg1, %c0_i32 : i32, i32, i32
  }
  func.func @transform_1(%arg0: i32, %arg1: i32) -> (i32, i32) {
    %c0_i32 = arith.constant 0 : i32
    %c0_i32_0 = arith.constant 0 : i32
    %c0_i32_1 = arith.constant 0 : i32
    return %c0_i32, %c0_i32_0 : i32, i32
  }
  func.func @transform_2(%arg0: i32, %arg1: i32) -> (i32, i32) {
    %c0_i32 = arith.constant 0 : i32
    %c0_i32_0 = arith.constant 0 : i32
    %c0_i32_1 = arith.constant 0 : i32
    return %c0_i32, %c0_i32_0 : i32, i32
  }
  func.func @transform_3(%arg0: i32, %arg1: i32) -> (i32, i32) {
    %c0_i32 = arith.constant 0 : i32
    %c0_i32_0 = arith.constant 0 : i32
    %c0_i32_1 = arith.constant 0 : i32
    return %c0_i32, %c0_i32_0 : i32, i32
  }
  func.func @transform_4(%arg0: i32, %arg1: i32) -> (i32, i32) {
    %c0_i32 = arith.constant 0 : i32
    %c0_i32_0 = arith.constant 0 : i32
    %c0_i32_1 = arith.constant 0 : i32
    return %c0_i32, %c0_i32_0 : i32, i32
  }
  func.func @transform_5(%arg0: i32, %arg1: i32) -> (i32, i32, i32) {
    %c0_i32 = arith.constant 0 : i32
    %c0_i32_0 = arith.constant 0 : i32
    return %arg0, %arg1, %c0_i32 : i32, i32, i32
  }
  func.func @transform_6(%arg0: i32, %arg1: i32) -> (i32, i32, i32) {
    %c0_i32 = arith.constant 0 : i32
    %c0_i32_0 = arith.constant 0 : i32
    return %arg0, %arg1, %c0_i32 : i32, i32, i32
  }
  func.func @transform_7(%arg0: i32, %arg1: i32) -> (i32, i32, i32) {
    %c0_i32 = arith.constant 0 : i32
    %c0_i32_0 = arith.constant 0 : i32
    %c0_i32_1 = arith.constant 0 : i32
    return %arg0, %c0_i32, %c0_i32_0 : i32, i32, i32
  }
}

module attributes {stable_mosaic.version = 11 : i64} {
  func.func @_mix_decode_kernel(%arg0: i32, %arg1: i32, %arg2: memref<1x16x80xbf16, #tpu.memory_space<vmem>>, %arg3: memref<1x16x64xbf16, #tpu.memory_space<vmem>>, %arg4: memref<1x16x32xf32, #tpu.memory_space<vmem>>, %arg5: memref<1x16x16xf32, #tpu.memory_space<vmem>>, %arg6: memref<1x1x128xf32, #tpu.memory_space<vmem>>, %arg7: memref<80x256xbf16, #tpu.memory_space<vmem>>, %arg8: memref<64x256xbf16, #tpu.memory_space<vmem>>, %arg9: memref<1x256xf32, #tpu.memory_space<vmem>>, %arg10: memref<128x32xf32, #tpu.memory_space<vmem>>, %arg11: memref<32x768xf32, #tpu.memory_space<vmem>>, %arg12: memref<16x768xf32, #tpu.memory_space<vmem>>, %arg13: memref<32x768xf32, #tpu.memory_space<vmem>>, %arg14: memref<1x768xf32, #tpu.memory_space<vmem>>, %arg15: memref<1x16x768xbf16, #tpu.memory_space<vmem>>, %arg16: memref<1x16x1xf32, #tpu.memory_space<vmem>>) attributes {dimension_semantics = [#tpu.dimension_semantics<parallel>, #tpu.dimension_semantics<parallel>], iteration_bounds = array<i64: 2, 1>, scalar_prefetch = 0 : i64, scratch_operands = 0 : i64, tpu.core_type = #tpu.core_type<tc>, window_params = [{transform_indices = @transform_0, window_bounds = array<i64: 1, 16, 80>}, {transform_indices = @transform_1, window_bounds = array<i64: 1, 16, 64>}, {transform_indices = @transform_2, window_bounds = array<i64: 1, 16, 32>}, {transform_indices = @transform_3, window_bounds = array<i64: 1, 16, 16>}, {transform_indices = @transform_4, window_bounds = array<i64: 1, 1, 128>}, {pipeline_mode = #tpu.pipeline_mode<synchronous>, transform_indices = @transform_5, window_bounds = array<i64: 80, 256>}, {pipeline_mode = #tpu.pipeline_mode<synchronous>, transform_indices = @transform_6, window_bounds = array<i64: 64, 256>}, {pipeline_mode = #tpu.pipeline_mode<synchronous>, transform_indices = @transform_7, window_bounds = array<i64: 1, 256>}, {pipeline_mode = #tpu.pipeline_mode<synchronous>, transform_indices = @transform_8, window_bounds = array<i64: 128, 32>}, {pipeline_mode = #tpu.pipeline_mode<synchronous>, transform_indices = @transform_9, window_bounds = array<i64: 32, 768>}, {pipeline_mode = #tpu.pipeline_mode<synchronous>, transform_indices = @transform_10, window_bounds = array<i64: 16, 768>}, {pipeline_mode = #tpu.pipeline_mode<synchronous>, transform_indices = @transform_11, window_bounds = array<i64: 32, 768>}, {pipeline_mode = #tpu.pipeline_mode<synchronous>, transform_indices = @transform_12, window_bounds = array<i64: 1, 768>}, {transform_indices = @transform_13, window_bounds = array<i64: 1, 16, 768>}, {transform_indices = @transform_14, window_bounds = array<i64: 1, 16, 1>}]} {
    %c0 = arith.constant 0 : index
    %c0_0 = arith.constant 0 : index
    %c0_1 = arith.constant 0 : index
    %0 = vector.load %arg2[%c0, %c0_0, %c0_1] : memref<1x16x80xbf16, #tpu.memory_space<vmem>>, vector<1x16x80xbf16>
    %1 = vector.shape_cast %0 : vector<1x16x80xbf16> to vector<16x80xbf16>
    %c0_2 = arith.constant 0 : index
    %c0_3 = arith.constant 0 : index
    %c0_4 = arith.constant 0 : index
    %2 = vector.load %arg3[%c0_2, %c0_3, %c0_4] : memref<1x16x64xbf16, #tpu.memory_space<vmem>>, vector<1x16x64xbf16>
    %3 = vector.shape_cast %2 : vector<1x16x64xbf16> to vector<16x64xbf16>
    %c0_5 = arith.constant 0 : index
    %c0_6 = arith.constant 0 : index
    %4 = vector.load %arg7[%c0_5, %c0_6] : memref<80x256xbf16, #tpu.memory_space<vmem>>, vector<80x256xbf16>
    %cst = arith.constant dense<0.000000e+00> : vector<16x256xf32>
    %5 = tpu.matmul %1, %4, %cst {dimension_numbers = #tpu.dot_dimension_numbers<[1], [0], [0], [1], [0, 0, 1, 1], [], []>} : vector<16x80xbf16>, vector<80x256xbf16>, vector<16x256xf32> -> vector<16x256xf32>
    %c0_7 = arith.constant 0 : index
    %c0_8 = arith.constant 0 : index
    %6 = vector.load %arg8[%c0_7, %c0_8] : memref<64x256xbf16, #tpu.memory_space<vmem>>, vector<64x256xbf16>
    %cst_9 = arith.constant dense<0.000000e+00> : vector<16x256xf32>
    %7 = tpu.matmul %3, %6, %cst_9 {dimension_numbers = #tpu.dot_dimension_numbers<[1], [0], [0], [1], [0, 0, 1, 1], [], []>} : vector<16x64xbf16>, vector<64x256xbf16>, vector<16x256xf32> -> vector<16x256xf32>
    %8 = arith.addf %5, %7 : vector<16x256xf32>
    %c0_10 = arith.constant 0 : index
    %c0_11 = arith.constant 0 : index
    %9 = vector.load %arg9[%c0_10, %c0_11] : memref<1x256xf32, #tpu.memory_space<vmem>>, vector<1x256xf32>
    %10 = vector.broadcast %9 : vector<1x256xf32> to vector<16x256xf32>
    %11 = arith.addf %8, %10 : vector<16x256xf32>
    %12 = vector.extract_strided_slice %11 {offsets = [0, 0], sizes = [16, 128], strides = [1, 1]} : vector<16x256xf32> to vector<16x128xf32>
    %13 = vector.extract_strided_slice %11 {offsets = [0, 128], sizes = [16, 128], strides = [1, 1]} : vector<16x256xf32> to vector<16x128xf32>
    %14 = arith.mulf %13, %13 : vector<16x128xf32>
    %cst_12 = arith.constant 9.99999997E-7 : f32
    %15 = vector.broadcast %cst_12 : f32 to vector<16x128xf32>
    %16 = arith.addf %14, %15 : vector<16x128xf32>
    %c0_13 = arith.constant 0 : index
    %c0_14 = arith.constant 0 : index
    %c0_15 = arith.constant 0 : index
    %17 = vector.load %arg6[%c0_13, %c0_14, %c0_15] : memref<1x1x128xf32, #tpu.memory_space<vmem>>, vector<1x1x128xf32>
    %18 = vector.shape_cast %17 : vector<1x1x128xf32> to vector<1x128xf32>
    %c0_16 = arith.constant 0 : index
    %c0_17 = arith.constant 0 : index
    %19 = vector.load %arg10[%c0_16, %c0_17] : memref<128x32xf32, #tpu.memory_space<vmem>>, vector<128x32xf32>
    %20 = vector.broadcast %18 : vector<1x128xf32> to vector<16x128xf32>
    %21 = arith.mulf %12, %20 : vector<16x128xf32>
    %cst_18 = arith.constant dense<0.000000e+00> : vector<16x32xf32>
    %22 = tpu.matmul %21, %19, %cst_18 {dimension_numbers = #tpu.dot_dimension_numbers<[1], [0], [0], [1], [0, 0, 1, 1], [], []>} : vector<16x128xf32>, vector<128x32xf32>, vector<16x32xf32> -> vector<16x32xf32>
    %23 = arith.mulf %12, %12 : vector<16x128xf32>
    %24 = arith.addf %23, %16 : vector<16x128xf32>
    %25 = vector.broadcast %18 : vector<1x128xf32> to vector<16x128xf32>
    %26 = arith.mulf %24, %25 : vector<16x128xf32>
    %cst_19 = arith.constant dense<0.000000e+00> : vector<16x32xf32>
    %27 = tpu.matmul %26, %19, %cst_19 {dimension_numbers = #tpu.dot_dimension_numbers<[1], [0], [0], [1], [0, 0, 1, 1], [], []>} : vector<16x128xf32>, vector<128x32xf32>, vector<16x32xf32> -> vector<16x32xf32>
    %28 = arith.mulf %22, %22 : vector<16x32xf32>
    %29 = arith.subf %27, %28 : vector<16x32xf32>
    %30 = math.absf %29 : vector<16x32xf32>
    %cst_20 = arith.constant 1.000000e-18 : f32
    %31 = vector.broadcast %cst_20 : f32 to vector<16x32xf32>
    %32 = arith.addf %30, %31 : vector<16x32xf32>
    %33 = math.sqrt %32 : vector<16x32xf32>
    %c0_21 = arith.constant 0 : index
    %c0_22 = arith.constant 0 : index
    %c0_23 = arith.constant 0 : index
    %34 = vector.load %arg4[%c0_21, %c0_22, %c0_23] : memref<1x16x32xf32, #tpu.memory_space<vmem>>, vector<1x16x32xf32>
    %35 = vector.shape_cast %34 : vector<1x16x32xf32> to vector<16x32xf32>
    %36 = arith.subf %35, %22 : vector<16x32xf32>
    %37 = math.roundeven %36 : vector<16x32xf32>
    %38 = arith.addf %37, %22 : vector<16x32xf32>
    %cst_24 = arith.constant 1.100000e-01 : f32
    %39 = vector.broadcast %cst_24 : f32 to vector<16x32xf32>
    %40 = arith.maximumf %33, %39 : vector<16x32xf32>
    %41 = tpu.reciprocal %40 {approx = true} : vector<16x32xf32> -> vector<16x32xf32>
    %42 = arith.mulf %40, %41 : vector<16x32xf32>
    %cst_25 = arith.constant 2.000000e+00 : f32
    %43 = vector.broadcast %cst_25 : f32 to vector<16x32xf32>
    %44 = arith.subf %43, %42 : vector<16x32xf32>
    %45 = arith.mulf %41, %44 : vector<16x32xf32>
    %46 = arith.subf %38, %22 : vector<16x32xf32>
    %47 = math.absf %46 : vector<16x32xf32>
    %cst_26 = arith.constant 5.000000e-01 : f32
    %48 = vector.broadcast %cst_26 : f32 to vector<16x32xf32>
    %49 = arith.subf %48, %47 : vector<16x32xf32>
    %50 = arith.mulf %49, %45 : vector<16x32xf32>
    %cst_27 = arith.constant 0.707106769 : f32
    %51 = vector.broadcast %cst_27 : f32 to vector<16x32xf32>
    %52 = arith.mulf %50, %51 : vector<16x32xf32>
    %cst_28 = arith.constant 0.000000e+00 : f32
    %53 = vector.broadcast %cst_28 : f32 to vector<16x32xf32>
    %54 = arith.cmpf oge, %52, %53 : vector<16x32xf32>
    %cst_29 = arith.constant 1.000000e+00 : f32
    %cst_30 = arith.constant -1.000000e+00 : f32
    %55 = vector.broadcast %cst_29 : f32 to vector<16x32xf32>
    %56 = vector.broadcast %cst_30 : f32 to vector<16x32xf32>
    %57 = arith.select %54, %55, %56 : vector<16x32xi1>, vector<16x32xf32>
    %58 = math.absf %52 : vector<16x32xf32>
    %cst_31 = arith.constant 0.327591091 : f32
    %59 = vector.broadcast %cst_31 : f32 to vector<16x32xf32>
    %60 = arith.mulf %59, %58 : vector<16x32xf32>
    %cst_32 = arith.constant 1.000000e+00 : f32
    %61 = vector.broadcast %cst_32 : f32 to vector<16x32xf32>
    %62 = arith.addf %61, %60 : vector<16x32xf32>
    %cst_33 = arith.constant 1.000000e+00 : f32
    %63 = vector.broadcast %cst_33 : f32 to vector<16x32xf32>
    %64 = arith.divf %63, %62 : vector<16x32xf32>
    %cst_34 = arith.constant 1.06140542 : f32
    %65 = vector.broadcast %cst_34 : f32 to vector<16x32xf32>
    %66 = arith.mulf %65, %64 : vector<16x32xf32>
    %cst_35 = arith.constant -1.45315206 : f32
    %67 = vector.broadcast %cst_35 : f32 to vector<16x32xf32>
    %68 = arith.addf %66, %67 : vector<16x32xf32>
    %69 = arith.mulf %68, %64 : vector<16x32xf32>
    %cst_36 = arith.constant 1.42141378 : f32
    %70 = vector.broadcast %cst_36 : f32 to vector<16x32xf32>
    %71 = arith.addf %69, %70 : vector<16x32xf32>
    %72 = arith.mulf %71, %64 : vector<16x32xf32>
    %cst_37 = arith.constant -0.284496725 : f32
    %73 = vector.broadcast %cst_37 : f32 to vector<16x32xf32>
    %74 = arith.addf %72, %73 : vector<16x32xf32>
    %75 = arith.mulf %74, %64 : vector<16x32xf32>
    %cst_38 = arith.constant 0.254829586 : f32
    %76 = vector.broadcast %cst_38 : f32 to vector<16x32xf32>
    %77 = arith.addf %75, %76 : vector<16x32xf32>
    %78 = arith.mulf %77, %64 : vector<16x32xf32>
    %cst_39 = arith.constant 0.000000e+00 : f32
    %79 = vector.broadcast %cst_39 : f32 to vector<16x32xf32>
    %80 = arith.subf %79, %58 : vector<16x32xf32>
    %81 = arith.mulf %80, %58 : vector<16x32xf32>
    %82 = math.exp %81 : vector<16x32xf32>
    %83 = arith.mulf %78, %82 : vector<16x32xf32>
    %cst_40 = arith.constant 1.000000e+00 : f32
    %84 = vector.broadcast %cst_40 : f32 to vector<16x32xf32>
    %85 = arith.subf %84, %83 : vector<16x32xf32>
    %86 = arith.mulf %57, %85 : vector<16x32xf32>
    %cst_41 = arith.constant 1.000000e+00 : f32
    %87 = vector.broadcast %cst_41 : f32 to vector<16x32xf32>
    %88 = arith.addf %87, %86 : vector<16x32xf32>
    %cst_42 = arith.constant 5.000000e-01 : f32
    %89 = vector.broadcast %cst_42 : f32 to vector<16x32xf32>
    %90 = arith.mulf %89, %88 : vector<16x32xf32>
    %cst_43 = arith.constant -5.000000e-01 : f32
    %91 = vector.broadcast %cst_43 : f32 to vector<16x32xf32>
    %92 = arith.subf %91, %47 : vector<16x32xf32>
    %93 = arith.mulf %92, %45 : vector<16x32xf32>
    %cst_44 = arith.constant 0.707106769 : f32
    %94 = vector.broadcast %cst_44 : f32 to vector<16x32xf32>
    %95 = arith.mulf %93, %94 : vector<16x32xf32>
    %cst_45 = arith.constant 0.000000e+00 : f32
    %96 = vector.broadcast %cst_45 : f32 to vector<16x32xf32>
    %97 = arith.cmpf oge, %95, %96 : vector<16x32xf32>
    %cst_46 = arith.constant 1.000000e+00 : f32
    %cst_47 = arith.constant -1.000000e+00 : f32
    %98 = vector.broadcast %cst_46 : f32 to vector<16x32xf32>
    %99 = vector.broadcast %cst_47 : f32 to vector<16x32xf32>
    %100 = arith.select %97, %98, %99 : vector<16x32xi1>, vector<16x32xf32>
    %101 = math.absf %95 : vector<16x32xf32>
    %cst_48 = arith.constant 0.327591091 : f32
    %102 = vector.broadcast %cst_48 : f32 to vector<16x32xf32>
    %103 = arith.mulf %102, %101 : vector<16x32xf32>
    %cst_49 = arith.constant 1.000000e+00 : f32
    %104 = vector.broadcast %cst_49 : f32 to vector<16x32xf32>
    %105 = arith.addf %104, %103 : vector<16x32xf32>
    %cst_50 = arith.constant 1.000000e+00 : f32
    %106 = vector.broadcast %cst_50 : f32 to vector<16x32xf32>
    %107 = arith.divf %106, %105 : vector<16x32xf32>
    %cst_51 = arith.constant 1.06140542 : f32
    %108 = vector.broadcast %cst_51 : f32 to vector<16x32xf32>
    %109 = arith.mulf %108, %107 : vector<16x32xf32>
    %cst_52 = arith.constant -1.45315206 : f32
    %110 = vector.broadcast %cst_52 : f32 to vector<16x32xf32>
    %111 = arith.addf %109, %110 : vector<16x32xf32>
    %112 = arith.mulf %111, %107 : vector<16x32xf32>
    %cst_53 = arith.constant 1.42141378 : f32
    %113 = vector.broadcast %cst_53 : f32 to vector<16x32xf32>
    %114 = arith.addf %112, %113 : vector<16x32xf32>
    %115 = arith.mulf %114, %107 : vector<16x32xf32>
    %cst_54 = arith.constant -0.284496725 : f32
    %116 = vector.broadcast %cst_54 : f32 to vector<16x32xf32>
    %117 = arith.addf %115, %116 : vector<16x32xf32>
    %118 = arith.mulf %117, %107 : vector<16x32xf32>
    %cst_55 = arith.constant 0.254829586 : f32
    %119 = vector.broadcast %cst_55 : f32 to vector<16x32xf32>
    %120 = arith.addf %118, %119 : vector<16x32xf32>
    %121 = arith.mulf %120, %107 : vector<16x32xf32>
    %cst_56 = arith.constant 0.000000e+00 : f32
    %122 = vector.broadcast %cst_56 : f32 to vector<16x32xf32>
    %123 = arith.subf %122, %101 : vector<16x32xf32>
    %124 = arith.mulf %123, %101 : vector<16x32xf32>
    %125 = math.exp %124 : vector<16x32xf32>
    %126 = arith.mulf %121, %125 : vector<16x32xf32>
    %cst_57 = arith.constant 1.000000e+00 : f32
    %127 = vector.broadcast %cst_57 : f32 to vector<16x32xf32>
    %128 = arith.subf %127, %126 : vector<16x32xf32>
    %129 = arith.mulf %100, %128 : vector<16x32xf32>
    %cst_58 = arith.constant 1.000000e+00 : f32
    %130 = vector.broadcast %cst_58 : f32 to vector<16x32xf32>
    %131 = arith.addf %130, %129 : vector<16x32xf32>
    %cst_59 = arith.constant 5.000000e-01 : f32
    %132 = vector.broadcast %cst_59 : f32 to vector<16x32xf32>
    %133 = arith.mulf %132, %131 : vector<16x32xf32>
    %134 = arith.subf %90, %133 : vector<16x32xf32>
    %135 = math.absf %134 : vector<16x32xf32>
    %cst_60 = arith.constant 1.000000e-10 : f32
    %136 = vector.broadcast %cst_60 : f32 to vector<16x32xf32>
    %137 = arith.addf %135, %136 : vector<16x32xf32>
    %138 = math.log %137 : vector<16x32xf32>
    %cst_61 = arith.constant 0.000000e+00 : f32
    %139 = vector.broadcast %cst_61 : f32 to vector<16x32xf32>
    %140 = arith.subf %139, %138 : vector<16x32xf32>
    %cst_62 = arith.constant 1.44269502 : f32
    %141 = vector.broadcast %cst_62 : f32 to vector<16x32xf32>
    %142 = arith.mulf %140, %141 : vector<16x32xf32>
    %cst_63 = arith.constant dense<0.000000e+00> : vector<16xf32>
    %143 = vector.multi_reduction <add>, %142, %cst_63 [1] : vector<16x32xf32> to vector<16xf32>
    %144 = vector.shape_cast %143 : vector<16xf32> to vector<16x1xf32>
    %c0_64 = arith.constant 0 : index
    %c0_65 = arith.constant 0 : index
    %c0_66 = arith.constant 0 : index
    %145 = vector.load %arg16[%c0_64, %c0_65, %c0_66] : memref<1x16x1xf32, #tpu.memory_space<vmem>>, vector<1x16x1xf32>
    %146 = vector.shape_cast %145 : vector<1x16x1xf32> to vector<16x1xf32>
    %147 = vector.shape_cast %144 : vector<16x1xf32> to vector<1x16x1xf32>
    tpu.vector_store %arg16[%c0_64, %c0_65, %c0_66], %147 {strides = array<i32>} : memref<1x16x1xf32, #tpu.memory_space<vmem>>, vector<1x16x1xf32>,
    %c0_67 = arith.constant 0 : index
    %c0_68 = arith.constant 0 : index
    %c0_69 = arith.constant 0 : index
    %148 = vector.load %arg5[%c0_67, %c0_68, %c0_69] : memref<1x16x16xf32, #tpu.memory_space<vmem>>, vector<1x16x16xf32>
    %149 = vector.shape_cast %148 : vector<1x16x16xf32> to vector<16x16xf32>
    %150 = math.exp %149 : vector<16x16xf32>
    %c0_70 = arith.constant 0 : index
    %c0_71 = arith.constant 0 : index
    %151 = vector.load %arg11[%c0_70, %c0_71] : memref<32x768xf32, #tpu.memory_space<vmem>>, vector<32x768xf32>
    %cst_72 = arith.constant dense<0.000000e+00> : vector<16x768xf32>
    %152 = tpu.matmul %38, %151, %cst_72 {dimension_numbers = #tpu.dot_dimension_numbers<[1], [0], [0], [1], [0, 0, 1, 1], [], []>} : vector<16x32xf32>, vector<32x768xf32>, vector<16x768xf32> -> vector<16x768xf32>
    %c0_73 = arith.constant 0 : index
    %c0_74 = arith.constant 0 : index
    %153 = vector.load %arg12[%c0_73, %c0_74] : memref<16x768xf32, #tpu.memory_space<vmem>>, vector<16x768xf32>
    %cst_75 = arith.constant dense<0.000000e+00> : vector<16x768xf32>
    %154 = tpu.matmul %150, %153, %cst_75 {dimension_numbers = #tpu.dot_dimension_numbers<[1], [0], [0], [1], [0, 0, 1, 1], [], []>} : vector<16x16xf32>, vector<16x768xf32>, vector<16x768xf32> -> vector<16x768xf32>
    %155 = arith.addf %152, %154 : vector<16x768xf32>
    %c0_76 = arith.constant 0 : index
    %c0_77 = arith.constant 0 : index
    %156 = vector.load %arg13[%c0_76, %c0_77] : memref<32x768xf32, #tpu.memory_space<vmem>>, vector<32x768xf32>
    %cst_78 = arith.constant dense<0.000000e+00> : vector<16x768xf32>
    %157 = tpu.matmul %35, %156, %cst_78 {dimension_numbers = #tpu.dot_dimension_numbers<[1], [0], [0], [1], [0, 0, 1, 1], [], []>} : vector<16x32xf32>, vector<32x768xf32>, vector<16x768xf32> -> vector<16x768xf32>
    %158 = arith.addf %155, %157 : vector<16x768xf32>
    %c0_79 = arith.constant 0 : index
    %c0_80 = arith.constant 0 : index
    %159 = vector.load %arg14[%c0_79, %c0_80] : memref<1x768xf32, #tpu.memory_space<vmem>>, vector<1x768xf32>
    %160 = vector.broadcast %159 : vector<1x768xf32> to vector<16x768xf32>
    %161 = arith.addf %158, %160 : vector<16x768xf32>
    %162 = arith.truncf %161 : vector<16x768xf32> to vector<16x768xbf16>
    %c0_81 = arith.constant 0 : index
    %c0_82 = arith.constant 0 : index
    %c0_83 = arith.constant 0 : index
    %163 = vector.load %arg15[%c0_81, %c0_82, %c0_83] : memref<1x16x768xbf16, #tpu.memory_space<vmem>>, vector<1x16x768xbf16>
    %164 = vector.shape_cast %163 : vector<1x16x768xbf16> to vector<16x768xbf16>
    %165 = vector.shape_cast %162 : vector<16x768xbf16> to vector<1x16x768xbf16>
    tpu.vector_store %arg15[%c0_81, %c0_82, %c0_83], %165 {strides = array<i32>} : memref<1x16x768xbf16, #tpu.memory_space<vmem>>, vector<1x16x768xbf16>,
    return
  }
  func.func @transform_0(%arg0: i32, %arg1: i32) -> (i32, i32, i32) {
    %c0_i32 = arith.constant 0 : i32
    %c0_i32_0 = arith.constant 0 : i32
    return %arg0, %arg1, %c0_i32 : i32, i32, i32
  }
  func.func @transform_1(%arg0: i32, %arg1: i32) -> (i32, i32, i32) {
    %c0_i32 = arith.constant 0 : i32
    %c0_i32_0 = arith.constant 0 : i32
    return %arg0, %arg1, %c0_i32 : i32, i32, i32
  }
  func.func @transform_2(%arg0: i32, %arg1: i32) -> (i32, i32, i32) {
    %c0_i32 = arith.constant 0 : i32
    %c0_i32_0 = arith.constant 0 : i32
    return %arg0, %arg1, %c0_i32 : i32, i32, i32
  }
  func.func @transform_3(%arg0: i32, %arg1: i32) -> (i32, i32, i32) {
    %c0_i32 = arith.constant 0 : i32
    %c0_i32_0 = arith.constant 0 : i32
    return %arg0, %arg1, %c0_i32 : i32, i32, i32
  }
  func.func @transform_4(%arg0: i32, %arg1: i32) -> (i32, i32, i32) {
    %c0_i32 = arith.constant 0 : i32
    %c0_i32_0 = arith.constant 0 : i32
    %c0_i32_1 = arith.constant 0 : i32
    return %arg0, %c0_i32, %c0_i32_0 : i32, i32, i32
  }
  func.func @transform_5(%arg0: i32, %arg1: i32) -> (i32, i32) {
    %c0_i32 = arith.constant 0 : i32
    %c0_i32_0 = arith.constant 0 : i32
    %c0_i32_1 = arith.constant 0 : i32
    return %c0_i32, %c0_i32_0 : i32, i32
  }
  func.func @transform_6(%arg0: i32, %arg1: i32) -> (i32, i32) {
    %c0_i32 = arith.constant 0 : i32
    %c0_i32_0 = arith.constant 0 : i32
    %c0_i32_1 = arith.constant 0 : i32
    return %c0_i32, %c0_i32_0 : i32, i32
  }
  func.func @transform_7(%arg0: i32, %arg1: i32) -> (i32, i32) {
    %c0_i32 = arith.constant 0 : i32
    %c0_i32_0 = arith.constant 0 : i32
    %c0_i32_1 = arith.constant 0 : i32
    return %c0_i32, %c0_i32_0 : i32, i32
  }
  func.func @transform_8(%arg0: i32, %arg1: i32) -> (i32, i32) {
    %c0_i32 = arith.constant 0 : i32
    %c0_i32_0 = arith.constant 0 : i32
    %c0_i32_1 = arith.constant 0 : i32
    return %c0_i32, %c0_i32_0 : i32, i32
  }
  func.func @transform_9(%arg0: i32, %arg1: i32) -> (i32, i32) {
    %c0_i32 = arith.constant 0 : i32
    %c0_i32_0 = arith.constant 0 : i32
    %c0_i32_1 = arith.constant 0 : i32
    return %c0_i32, %c0_i32_0 : i32, i32
  }
  func.func @transform_10(%arg0: i32, %arg1: i32) -> (i32, i32) {
    %c0_i32 = arith.constant 0 : i32
    %c0_i32_0 = arith.constant 0 : i32
    %c0_i32_1 = arith.constant 0 : i32
    return %c0_i32, %c0_i32_0 : i32, i32
  }
  func.func @transform_11(%arg0: i32, %arg1: i32) -> (i32, i32) {
    %c0_i32 = arith.constant 0 : i32
    %c0_i32_0 = arith.constant 0 : i32
    %c0_i32_1 = arith.constant 0 : i32
    return %c0_i32, %c0_i32_0 : i32, i32
  }
  func.func @transform_12(%arg0: i32, %arg1: i32) -> (i32, i32) {
    %c0_i32 = arith.constant 0 : i32
    %c0_i32_0 = arith.constant 0 : i32
    %c0_i32_1 = arith.constant 0 : i32
    return %c0_i32, %c0_i32_0 : i32, i32
  }
  func.func @transform_13(%arg0: i32, %arg1: i32) -> (i32, i32, i32) {
    %c0_i32 = arith.constant 0 : i32
    %c0_i32_0 = arith.constant 0 : i32
    return %arg0, %arg1, %c0_i32 : i32, i32, i32
  }
  func.func @transform_14(%arg0: i32, %arg1: i32) -> (i32, i32, i32) {
    %c0_i32 = arith.constant 0 : i32
    %c0_i32_0 = arith.constant 0 : i32
    return %arg0, %arg1, %c0_i32 : i32, i32, i32
  }
}

module attributes {stable_mosaic.version = 11 : i64} {
  func.func @_prior_kernel(%arg0: i32, %arg1: memref<2x1280xbf16, #tpu.memory_space<vmem>>, %arg2: memref<1280x64xbf16, #tpu.memory_space<vmem>>, %arg3: memref<1x64xf32, #tpu.memory_space<vmem>>, %arg4: memref<64x16xf32, #tpu.memory_space<vmem>>, %arg5: memref<1x16xf32, #tpu.memory_space<vmem>>, %arg6: memref<2x64xbf16, #tpu.memory_space<vmem>>, %arg7: memref<2x16xf32, #tpu.memory_space<vmem>>, %arg8: memref<2x1xf32, #tpu.memory_space<vmem>>) attributes {dimension_semantics = [#tpu.dimension_semantics<parallel>], iteration_bounds = array<i64: 1>, scalar_prefetch = 0 : i64, scratch_operands = 0 : i64, tpu.core_type = #tpu.core_type<tc>, window_params = [{transform_indices = @transform_0, window_bounds = array<i64: 2, 1280>}, {pipeline_mode = #tpu.pipeline_mode<synchronous>, transform_indices = @transform_1, window_bounds = array<i64: 1280, 64>}, {pipeline_mode = #tpu.pipeline_mode<synchronous>, transform_indices = @transform_2, window_bounds = array<i64: 1, 64>}, {pipeline_mode = #tpu.pipeline_mode<synchronous>, transform_indices = @transform_3, window_bounds = array<i64: 64, 16>}, {pipeline_mode = #tpu.pipeline_mode<synchronous>, transform_indices = @transform_4, window_bounds = array<i64: 1, 16>}, {transform_indices = @transform_5, window_bounds = array<i64: 2, 64>}, {transform_indices = @transform_6, window_bounds = array<i64: 2, 16>}, {transform_indices = @transform_7, window_bounds = array<i64: 2, 1>}]} {
    %c0 = arith.constant 0 : index
    %c0_0 = arith.constant 0 : index
    %0 = vector.load %arg1[%c0, %c0_0] : memref<2x1280xbf16, #tpu.memory_space<vmem>>, vector<2x1280xbf16>
    %c0_1 = arith.constant 0 : index
    %c0_2 = arith.constant 0 : index
    %1 = vector.load %arg2[%c0_1, %c0_2] : memref<1280x64xbf16, #tpu.memory_space<vmem>>, vector<1280x64xbf16>
    %cst = arith.constant dense<0.000000e+00> : vector<2x64xf32>
    %2 = tpu.matmul %0, %1, %cst {dimension_numbers = #tpu.dot_dimension_numbers<[1], [0], [0], [1], [0, 0, 1, 1], [], []>} : vector<2x1280xbf16>, vector<1280x64xbf16>, vector<2x64xf32> -> vector<2x64xf32>
    %c0_3 = arith.constant 0 : index
    %c0_4 = arith.constant 0 : index
    %3 = vector.load %arg3[%c0_3, %c0_4] : memref<1x64xf32, #tpu.memory_space<vmem>>, vector<1x64xf32>
    %4 = vector.broadcast %3 : vector<1x64xf32> to vector<2x64xf32>
    %5 = arith.addf %2, %4 : vector<2x64xf32>
    %6 = arith.truncf %5 : vector<2x64xf32> to vector<2x64xbf16>
    %c0_5 = arith.constant 0 : index
    %c0_6 = arith.constant 0 : index
    %7 = vector.load %arg6[%c0_5, %c0_6] : memref<2x64xbf16, #tpu.memory_space<vmem>>, vector<2x64xbf16>
    tpu.vector_store %arg6[%c0_5, %c0_6], %6 {strides = array<i32>} : memref<2x64xbf16, #tpu.memory_space<vmem>>, vector<2x64xbf16>,
    %c0_7 = arith.constant 0 : index
    %c0_8 = arith.constant 0 : index
    %8 = vector.load %arg4[%c0_7, %c0_8] : memref<64x16xf32, #tpu.memory_space<vmem>>, vector<64x16xf32>
    %cst_9 = arith.constant dense<0.000000e+00> : vector<2x16xf32>
    %9 = tpu.matmul %5, %8, %cst_9 {dimension_numbers = #tpu.dot_dimension_numbers<[1], [0], [0], [1], [0, 0, 1, 1], [], []>} : vector<2x64xf32>, vector<64x16xf32>, vector<2x16xf32> -> vector<2x16xf32>
    %c0_10 = arith.constant 0 : index
    %c0_11 = arith.constant 0 : index
    %10 = vector.load %arg5[%c0_10, %c0_11] : memref<1x16xf32, #tpu.memory_space<vmem>>, vector<1x16xf32>
    %11 = vector.broadcast %10 : vector<1x16xf32> to vector<2x16xf32>
    %12 = arith.addf %9, %11 : vector<2x16xf32>
    %13 = math.roundeven %12 : vector<2x16xf32>
    %c0_12 = arith.constant 0 : index
    %c0_13 = arith.constant 0 : index
    %14 = vector.load %arg7[%c0_12, %c0_13] : memref<2x16xf32, #tpu.memory_space<vmem>>, vector<2x16xf32>
    tpu.vector_store %arg7[%c0_12, %c0_13], %13 {strides = array<i32>} : memref<2x16xf32, #tpu.memory_space<vmem>>, vector<2x16xf32>,
    %cst_14 = arith.constant 5.000000e-01 : f32
    %15 = vector.broadcast %cst_14 : f32 to vector<2x16xf32>
    %16 = arith.addf %13, %15 : vector<2x16xf32>
    %cst_15 = arith.constant 5.000000e-01 : f32
    %17 = vector.broadcast %cst_15 : f32 to vector<2x16xf32>
    %18 = arith.mulf %17, %16 : vector<2x16xf32>
    %19 = math.tanh %18 : vector<2x16xf32>
    %cst_16 = arith.constant 1.000000e+00 : f32
    %20 = vector.broadcast %cst_16 : f32 to vector<2x16xf32>
    %21 = arith.addf %19, %20 : vector<2x16xf32>
    %cst_17 = arith.constant 5.000000e-01 : f32
    %22 = vector.broadcast %cst_17 : f32 to vector<2x16xf32>
    %23 = arith.mulf %22, %21 : vector<2x16xf32>
    %cst_18 = arith.constant 5.000000e-01 : f32
    %24 = vector.broadcast %cst_18 : f32 to vector<2x16xf32>
    %25 = arith.subf %13, %24 : vector<2x16xf32>
    %cst_19 = arith.constant 5.000000e-01 : f32
    %26 = vector.broadcast %cst_19 : f32 to vector<2x16xf32>
    %27 = arith.mulf %26, %25 : vector<2x16xf32>
    %28 = math.tanh %27 : vector<2x16xf32>
    %cst_20 = arith.constant 1.000000e+00 : f32
    %29 = vector.broadcast %cst_20 : f32 to vector<2x16xf32>
    %30 = arith.addf %28, %29 : vector<2x16xf32>
    %cst_21 = arith.constant 5.000000e-01 : f32
    %31 = vector.broadcast %cst_21 : f32 to vector<2x16xf32>
    %32 = arith.mulf %31, %30 : vector<2x16xf32>
    %33 = arith.subf %23, %32 : vector<2x16xf32>
    %34 = math.absf %33 : vector<2x16xf32>
    %cst_22 = arith.constant 1.000000e-10 : f32
    %35 = vector.broadcast %cst_22 : f32 to vector<2x16xf32>
    %36 = arith.addf %34, %35 : vector<2x16xf32>
    %37 = math.log %36 : vector<2x16xf32>
    %cst_23 = arith.constant 0.000000e+00 : f32
    %38 = vector.broadcast %cst_23 : f32 to vector<2x16xf32>
    %39 = arith.subf %38, %37 : vector<2x16xf32>
    %cst_24 = arith.constant 1.44269502 : f32
    %40 = vector.broadcast %cst_24 : f32 to vector<2x16xf32>
    %41 = arith.mulf %39, %40 : vector<2x16xf32>
    %cst_25 = arith.constant dense<0.000000e+00> : vector<2xf32>
    %42 = vector.multi_reduction <add>, %41, %cst_25 [1] : vector<2x16xf32> to vector<2xf32>
    %43 = vector.shape_cast %42 : vector<2xf32> to vector<2x1xf32>
    %c0_26 = arith.constant 0 : index
    %c0_27 = arith.constant 0 : index
    %44 = vector.load %arg8[%c0_26, %c0_27] : memref<2x1xf32, #tpu.memory_space<vmem>>, vector<2x1xf32>
    tpu.vector_store %arg8[%c0_26, %c0_27], %43 {strides = array<i32>} : memref<2x1xf32, #tpu.memory_space<vmem>>, vector<2x1xf32>,
    return
  }
  func.func @transform_0(%arg0: i32) -> (i32, i32) {
    %c0_i32 = arith.constant 0 : i32
    %c0_i32_0 = arith.constant 0 : i32
    return %arg0, %c0_i32 : i32, i32
  }
  func.func @transform_1(%arg0: i32) -> (i32, i32) {
    %c0_i32 = arith.constant 0 : i32
    %c0_i32_0 = arith.constant 0 : i32
    %c0_i32_1 = arith.constant 0 : i32
    return %c0_i32, %c0_i32_0 : i32, i32
  }
  func.func @transform_2(%arg0: i32) -> (i32, i32) {
    %c0_i32 = arith.constant 0 : i32
    %c0_i32_0 = arith.constant 0 : i32
    %c0_i32_1 = arith.constant 0 : i32
    return %c0_i32, %c0_i32_0 : i32, i32
  }
  func.func @transform_3(%arg0: i32) -> (i32, i32) {
    %c0_i32 = arith.constant 0 : i32
    %c0_i32_0 = arith.constant 0 : i32
    %c0_i32_1 = arith.constant 0 : i32
    return %c0_i32, %c0_i32_0 : i32, i32
  }
  func.func @transform_4(%arg0: i32) -> (i32, i32) {
    %c0_i32 = arith.constant 0 : i32
    %c0_i32_0 = arith.constant 0 : i32
    %c0_i32_1 = arith.constant 0 : i32
    return %c0_i32, %c0_i32_0 : i32, i32
  }
  func.func @transform_5(%arg0: i32) -> (i32, i32) {
    %c0_i32 = arith.constant 0 : i32
    %c0_i32_0 = arith.constant 0 : i32
    return %arg0, %c0_i32 : i32, i32
  }
  func.func @transform_6(%arg0: i32) -> (i32, i32) {
    %c0_i32 = arith.constant 0 : i32
    %c0_i32_0 = arith.constant 0 : i32
    return %arg0, %c0_i32 : i32, i32
  }
  func.func @transform_7(%arg0: i32) -> (i32, i32) {
    %c0_i32 = arith.constant 0 : i32
    %c0_i32_0 = arith.constant 0 : i32
    return %arg0, %c0_i32 : i32, i32
  }
}

</mosaic_0001>

<llo_original>
// kernel: forward.3
$region0: #{forward.3}
  #allocation0 [shape = 'u32[]', space=smem, size = 0x4, offset = 0x4, fixed_abs, tag = 'smem constant byte address 0x4 - core index']
  #allocation1 [shape = 'u32[144,128]{1,0:T(1,128)}', space=vmem, size = 0x12000, scoped, tag = 'internal scratch']
  %s0 = inlined_call_operand.vmem [shape: bf16[2,16,768], index: 0, kind: input, shape index: {}]
  %s1 = inlined_call_operand.vmem [shape: bf16[768,80], index: 1, kind: input, shape index: {}]
  %s2 = inlined_call_operand.vmem [shape: f32[1,80], index: 2, kind: input, shape index: {}]
  %s3 = inlined_call_operand.vmem [shape: f32[80,32], index: 3, kind: input, shape index: {}]
  %s4 = inlined_call_operand.vmem [shape: f32[1,32], index: 4, kind: input, shape index: {}]
  %s5 = inlined_call_operand.vmem [shape: bf16[2,16,80], index: 5, kind: output, shape index: {0}]
  %s6 = inlined_call_operand.vmem [shape: f32[2,16,32], index: 6, kind: output, shape index: {1}]
  %s7 = inlined_call_operand.vmem [shape: f32[2,1,80], index: 7, kind: output, shape index: {2}]
  %8 = xla_tuple %s5, %s6, %s7
  %s9 = sld [smem:[#allocation0]]
  $region73: #{forward.3} parent=0
    _
  %s11 = ssub.s32 1, %s9
  %s12 = scalar_select 0, %s11, %s9
  loop: start=0, step=1, limit=4
  $region2: #{forward.3} parent=0 // loop_pre_header
    _
  $region3: #{forward.3} parent=0 // loop_header
    %s14 = sphi 0, %s18
    %p15 = scmp.ge.s32.totalorder %s14, 4
    %s21 = sphi 0, %s33
    %s22 = sphi 0, %s29
    %s23 = sphi 0, %s21
    %s24 = sphi 0, %s22
    %s25 = sphi 0, %s23
    %s26 = sphi 0, %s24
    %s38 = sphi 0, %s40
    %s41 = sphi 0, %s38
    %s42 = sphi 0, %s41
    %s58 = sphi 0, %s42
    %s62 = sphi 0, %s62
    %s64 = sphi 0, %s62
    %s65 = sphi 0, %s64
    %s79 = sphi 0, %s65
    %s83 = sphi 0, %s83
    %s85 = sphi 0, %s83
    %s86 = sphi 0, %s85
    %s100 = sphi 0, %s86
    %s104 = sphi 0, %s104
    %s106 = sphi 0, %s104
    %s107 = sphi 0, %s106
    %s121 = sphi 0, %s107
    %s125 = sphi 0, %s125
    %s127 = sphi 0, %s125
    %s128 = sphi 0, %s127
    %s142 = sphi 0, %s128
    %s150 = sphi 0, %s152
    %s153 = sphi 0, %s150
    %s154 = sphi 0, %s153
    %s170 = sphi 0, %s154
    %s178 = sphi 0, %s180
    %s181 = sphi 0, %s178
    %s182 = sphi 0, %s181
    %s198 = sphi 0, %s182
    %s204 = sphi 0, %s206
    %s207 = sphi 0, %s204
    %s208 = sphi 0, %s207
    %s224 = sphi 0, %s208
  $region4: #{forward.3} parent=0 // loop_header_branch
    %17 = sbr.rel (%p15) target = $region8
  $region5: #{forward.3} parent=0 // loop_body
    %s19 = ssub.s32 %s14, 1
    %s20 = ssub.s32 %s14, 2
    %s27 = sadd.s32 1, %s22
    %p28 = scmp.ge.s32.totalorder %s27, 1
    %s29 = scalar_select %p28, 0, %s27
    %s30 = sadd.s32 1, %s21
    %s31 = scalar_select %p28, %s30, %s21
    %p32 = scmp.ge.s32.totalorder %s31, 2
    %s33 = scalar_select %p32, 0, %s31
    %s34 = ssub.s32 %s21, %s33
    %s35 = ssub.s32 %s22, %s29
    %s36 = sor.u32 %s34, %s35
    %p37 = scmp.eq.s32.totalorder %s36, 0
    %s39 = sadd.s32 %s38, 1
    %s40 = scalar_select %p37, %s38, %s39
    %p43 = pneg %p37
    %p44 = scmp.eq.s32.totalorder %s14, 1
    %p45 = por %p43, %p44
    %p46 = scmp.ne.s32.totalorder %s38, %s41
    %p47 = scmp.eq.s32.totalorder %s14, 0
    %p48 = por %p46, %p47
    %p49 = scmp.ne.s32.totalorder %s38, %s41
    %p50 = scmp.eq.s32.totalorder %s19, 1
    %p51 = por %p49, %p50
    %p52 = scmp.ne.s32.totalorder %s41, %s42
    %p53 = scmp.eq.s32.totalorder %s19, 0
    %p54 = por %p52, %p53
    %p55 = scmp.ne.s32.totalorder %s41, %s42
    %p56 = scmp.eq.s32.totalorder %s20, 1
    %p57 = por %p55, %p56
    %p59 = scmp.ne.s32.totalorder %s42, %s58
    %p60 = scmp.eq.s32.totalorder %s20, 0
    %p61 = por %p59, %p60
    %s63 = sadd.s32 %s62, 1
    %p66 = scmp.eq.s32.totalorder %s14, 1
    %p67 = scmp.ne.s32.totalorder %s62, %s64
    %p68 = scmp.eq.s32.totalorder %s14, 0
    %p69 = por %p67, %p68
    %p70 = scmp.ne.s32.totalorder %s62, %s64
    %p71 = scmp.eq.s32.totalorder %s19, 1
    %p72 = por %p70, %p71
    %p73 = scmp.ne.s32.totalorder %s64, %s65
    %p74 = scmp.eq.s32.totalorder %s19, 0
    %p75 = por %p73, %p74
    %p76 = scmp.ne.s32.totalorder %s64, %s65
    %p77 = scmp.eq.s32.totalorder %s20, 1
    %p78 = por %p76, %p77
    %p80 = scmp.ne.s32.totalorder %s65, %s79
    %p81 = scmp.eq.s32.totalorder %s20, 0
    %p82 = por %p80, %p81
    %s84 = sadd.s32 %s83, 1
    %p87 = scmp.eq.s32.totalorder %s14, 1
    %p88 = scmp.ne.s32.totalorder %s83, %s85
    %p89 = scmp.eq.s32.totalorder %s14, 0
    %p90 = por %p88, %p89
    %p91 = scmp.ne.s32.totalorder %s83, %s85
    %p92 = scmp.eq.s32.totalorder %s19, 1
    %p93 = por %p91, %p92
    %p94 = scmp.ne.s32.totalorder %s85, %s86
    %p95 = scmp.eq.s32.totalorder %s19, 0
    %p96 = por %p94, %p95
    %p97 = scmp.ne.s32.totalorder %s85, %s86
    %p98 = scmp.eq.s32.totalorder %s20, 1
    %p99 = por %p97, %p98
    %p101 = scmp.ne.s32.totalorder %s86, %s100
    %p102 = scmp.eq.s32.totalorder %s20, 0
    %p103 = por %p101, %p102
    %s105 = sadd.s32 %s104, 1
    %p108 = scmp.eq.s32.totalorder %s14, 1
    %p109 = scmp.ne.s32.totalorder %s104, %s106
    %p110 = scmp.eq.s32.totalorder %s14, 0
    %p111 = por %p109, %p110
    %p112 = scmp.ne.s32.totalorder %s104, %s106
    %p113 = scmp.eq.s32.totalorder %s19, 1
    %p114 = por %p112, %p113
    %p115 = scmp.ne.s32.totalorder %s106, %s107
    %p116 = scmp.eq.s32.totalorder %s19, 0
    %p117 = por %p115, %p116
    %p118 = scmp.ne.s32.totalorder %s106, %s107
    %p119 = scmp.eq.s32.totalorder %s20, 1
    %p120 = por %p118, %p119
    %p122 = scmp.ne.s32.totalorder %s107, %s121
    %p123 = scmp.eq.s32.totalorder %s20, 0
    %p124 = por %p122, %p123
    %s126 = sadd.s32 %s125, 1
    %p129 = scmp.eq.s32.totalorder %s14, 1
    %p130 = scmp.ne.s32.totalorder %s125, %s127
    %p131 = scmp.eq.s32.totalorder %s14, 0
    %p132 = por %p130, %p131
    %p133 = scmp.ne.s32.totalorder %s125, %s127
    %p134 = scmp.eq.s32.totalorder %s19, 1
    %p135 = por %p133, %p134
    %p136 = scmp.ne.s32.totalorder %s127, %s128
    %p137 = scmp.eq.s32.totalorder %s19, 0
    %p138 = por %p136, %p137
    %p139 = scmp.ne.s32.totalorder %s127, %s128
    %p140 = scmp.eq.s32.totalorder %s20, 1
    %p141 = por %p139, %p140
    %p143 = scmp.ne.s32.totalorder %s128, %s142
    %p144 = scmp.eq.s32.totalorder %s20, 0
    %p145 = por %p143, %p144
    %s146 = ssub.s32 %s21, %s33
    %s147 = ssub.s32 %s22, %s29
    %s148 = sor.u32 %s146, %s147
    %p149 = scmp.eq.s32.totalorder %s148, 0
    %s151 = sadd.s32 %s150, 1
    %s152 = scalar_select %p149, %s150, %s151
    %p155 = pneg %p149
    %p156 = scmp.eq.s32.totalorder %s14, 1
    %p157 = por %p155, %p156
    %p158 = scmp.ne.s32.totalorder %s150, %s153
    %p159 = scmp.eq.s32.totalorder %s14, 0
    %p160 = por %p158, %p159
    %p161 = scmp.ne.s32.totalorder %s150, %s153
    %p162 = scmp.eq.s32.totalorder %s19, 1
    %p163 = por %p161, %p162
    %p164 = scmp.ne.s32.totalorder %s153, %s154
    %p165 = scmp.eq.s32.totalorder %s19, 0
    %p166 = por %p164, %p165
    %p167 = scmp.ne.s32.totalorder %s153, %s154
    %p168 = scmp.eq.s32.totalorder %s20, 1
    %p169 = por %p167, %p168
    %p171 = scmp.ne.s32.totalorder %s154, %s170
    %p172 = scmp.eq.s32.totalorder %s20, 0
    %p173 = por %p171, %p172
    %s174 = ssub.s32 %s21, %s33
    %s175 = ssub.s32 %s22, %s29
    %s176 = sor.u32 %s174, %s175
    %p177 = scmp.eq.s32.totalorder %s176, 0
    %s179 = sadd.s32 %s178, 1
    %s180 = scalar_select %p177, %s178, %s179
    %p183 = pneg %p177
    %p184 = scmp.eq.s32.totalorder %s14, 1
    %p185 = por %p183, %p184
    %p186 = scmp.ne.s32.totalorder %s178, %s181
    %p187 = scmp.eq.s32.totalorder %s14, 0
    %p188 = por %p186, %p187
    %p189 = scmp.ne.s32.totalorder %s178, %s181
    %p190 = scmp.eq.s32.totalorder %s19, 1
    %p191 = por %p189, %p190
    %p192 = scmp.ne.s32.totalorder %s181, %s182
    %p193 = scmp.eq.s32.totalorder %s19, 0
    %p194 = por %p192, %p193
    %p195 = scmp.ne.s32.totalorder %s181, %s182
    %p196 = scmp.eq.s32.totalorder %s20, 1
    %p197 = por %p195, %p196
    %p199 = scmp.ne.s32.totalorder %s182, %s198
    %p200 = scmp.eq.s32.totalorder %s20, 0
    %p201 = por %p199, %p200
    %s202 = ssub.s32 %s21, %s33
    %p203 = scmp.eq.s32.totalorder %s202, 0
    %s205 = sadd.s32 %s204, 1
    %s206 = scalar_select %p203, %s204, %s205
    %p209 = pneg %p203
    %p210 = scmp.eq.s32.totalorder %s14, 1
    %p211 = por %p209, %p210
    %p212 = scmp.ne.s32.totalorder %s204, %s207
    %p213 = scmp.eq.s32.totalorder %s14, 0
    %p214 = por %p212, %p213
    %p215 = scmp.ne.s32.totalorder %s204, %s207
    %p216 = scmp.eq.s32.totalorder %s19, 1
    %p217 = por %p215, %p216
    %p218 = scmp.ne.s32.totalorder %s207, %s208
    %p219 = scmp.eq.s32.totalorder %s19, 0
    %p220 = por %p218, %p219
    %p221 = scmp.ne.s32.totalorder %s207, %s208
    %p222 = scmp.eq.s32.totalorder %s20, 1
    %p223 = por %p221, %p222
    %p225 = scmp.ne.s32.totalorder %s208, %s224
    %p226 = scmp.eq.s32.totalorder %s20, 0
    %p227 = por %p225, %p226
    %p228 = scmp.le.s32.totalorder 1, %s14
    %p229 = scmp.lt.s32.totalorder %s14, 3
    %p230 = pnand %p228, %p229
    %p231 = pneg %p230
    // Predicated region
    $region9: #{forward.3} parent=5 // pred_check
      _
    $region10: #{forward.3} parent=5 // pred_check_branch
      %233 = sbr.rel (%p230) target = $region12
    $region11: #{forward.3} parent=5 // pred_region
      %s234 = ssub.s32 %s14, 1
      // Predicated region
      $region13: #{forward.3} parent=11 // pred_check
        %p235 = pneg %p75
      $region14: #{forward.3} parent=11 // pred_check_branch
        %237 = sbr.rel (%p235) target = $region16
      $region15: #{forward.3} parent=11 // pred_region
        _
      $region16: #{forward.3} parent=11 // pred_fallthru
        _
      // Predicated region
      $region17: #{forward.3} parent=11 // pred_check
        %p238 = pneg %p96
      $region18: #{forward.3} parent=11 // pred_check_branch
        %240 = sbr.rel (%p238) target = $region20
      $region19: #{forward.3} parent=11 // pred_region
        _
      $region20: #{forward.3} parent=11 // pred_fallthru
        _
      // Predicated region
      $region21: #{forward.3} parent=11 // pred_check
        %p241 = pneg %p117
      $region22: #{forward.3} parent=11 // pred_check_branch
        %243 = sbr.rel (%p241) target = $region24
      $region23: #{forward.3} parent=11 // pred_region
        _
      $region24: #{forward.3} parent=11 // pred_fallthru
        _
      // Predicated region
      $region25: #{forward.3} parent=11 // pred_check
        %p244 = pneg %p138
      $region26: #{forward.3} parent=11 // pred_check_branch
        %246 = sbr.rel (%p244) target = $region28
      $region27: #{forward.3} parent=11 // pred_region
        _
      $region28: #{forward.3} parent=11 // pred_fallthru
        _
    $region12: #{forward.3} parent=5 // pred_fallthru
      _
    %p247 = scmp.lt.s32.totalorder %s14, 2
    // Predicated region
    $region29: #{forward.3} parent=5 // pred_check
      %p248 = pneg %p247
    $region30: #{forward.3} parent=5 // pred_check_branch
      %250 = sbr.rel (%p248) target = $region32
    $region31: #{forward.3} parent=5 // pred_region
      // Predicated region
      $region33: #{forward.3} parent=31 // pred_check
        %p251 = pneg %p48
      $region34: #{forward.3} parent=31 // pred_check_branch
        %253 = sbr.rel (%p251) target = $region36
      $region35: #{forward.3} parent=31 // pred_region
        %s254 = smul.u32 2, %s22
        %p255 = scmp.lt.s32.totalorder %s21, 1
        %s256 = scalar_select %p255, %s21, 1
        %p257 = scmp.lt.s32.totalorder %s254, 1
        %s258 = scalar_select %p257, %s254, 1
        %s259 = smul.addr %s258, 6
        %s260 = smul.addr %s256, 12
        %s261 = sadd.s32 %s259, %s260
        %s262 = smul.addr %s261, 4
        %s263 = scalar_lea.vmem %s0, %s262
        %s264 = smul.u32 2, %s22
      $region36: #{forward.3} parent=31 // pred_fallthru
        _
    $region32: #{forward.3} parent=5 // pred_fallthru
      _
    %p265 = scmp.le.s32.totalorder 1, %s14
    %p266 = scmp.lt.s32.totalorder %s14, 3
    %p267 = pnand %p265, %p266
    %p268 = pneg %p267
    // Predicated region
    $region37: #{forward.3} parent=5 // pred_check
      _
    $region38: #{forward.3} parent=5 // pred_check_branch
      %270 = sbr.rel (%p267) target = $region40
    $region39: #{forward.3} parent=5 // pred_region
      %s271 = ssub.s32 %s14, 1
      %s272 = smul.u32 2, %s24
      %p273 = scmp.lt.s32.totalorder %s23, 1
      %s274 = scalar_select %p273, %s23, 1
      %p275 = scmp.lt.s32.totalorder %s272, 1
      %s276 = scalar_select %p275, %s272, 1
      %s277 = smul.addr %s276, 6
      %s278 = smul.addr %s274, 12
      %s279 = sadd.s32 %s277, %s278
      %s280 = smul.addr %s279, 4
      %s281 = scalar_lea.vmem %s0, %s280
      %p282 = pneg %p54
      %p283 = pneg %p51
      %p284 = pneg %p75
      %p285 = pneg %p72
      %p286 = pneg %p96
      %p287 = pneg %p93
      %p288 = pneg %p117
      %p289 = pneg %p114
      %p290 = pneg %p138
      %p291 = pneg %p135
      %p292 = pneg %p166
      %p293 = pneg %p163
      %s294 = smul.u32 2, %s24
      %p295 = scmp.lt.s32.totalorder %s23, 1
      %s296 = scalar_select %p295, %s23, 1
      %p297 = scmp.lt.s32.totalorder %s294, 1
      %s298 = scalar_select %p297, %s294, 1
      %s299 = smul.addr %s296, 2
      %s300 = sadd.s32 %s298, %s299
      %s301 = smul.addr %s300, 4
      %s302 = scalar_lea.vmem %s5, %s301
      %p303 = pneg %p194
      %p304 = pneg %p191
      %s305 = smul.u32 2, %s24
      %p306 = scmp.lt.s32.totalorder %s23, 1
      %s307 = scalar_select %p306, %s23, 1
      %p308 = scmp.lt.s32.totalorder %s305, 1
      %s309 = scalar_select %p308, %s305, 1
      %s310 = smul.addr %s307, 2
      %s311 = sadd.s32 %s309, %s310
      %s312 = smul.addr %s311, 8
      %s313 = scalar_lea.vmem %s6, %s312
      %p314 = pneg %p220
      %p315 = pneg %p217
      %p316 = scmp.lt.s32.totalorder %s23, 1
      %s317 = scalar_select %p316, %s23, 1
      %s318 = scalar_lea.vmem %s7, %s317
      %s319 = smul.u32 2, %s24
      %p320 = scmp.lt.s32.totalorder %s23, 1
      %s321 = scalar_select %p320, %s23, 1
      %p322 = scmp.lt.s32.totalorder %s319, 1
      %s323 = scalar_select %p322, %s319, 1
      %s324 = smul.addr %s323, 6
      %s325 = smul.addr %s321, 12
      %s326 = sadd.s32 %s324, %s325
      %s327 = smul.addr %s326, 4
      %s328 = scalar_lea.vmem %s0, %s327
      %s329 = smul.u32 2, %s24
      %s330 = smul.u32 2, %s24
      %p331 = scmp.lt.s32.totalorder %s23, 1
      %s332 = scalar_select %p331, %s23, 1
      %p333 = scmp.lt.s32.totalorder %s330, 1
      %s334 = scalar_select %p333, %s330, 1
      %s335 = smul.addr %s332, 2
      %s336 = sadd.s32 %s334, %s335
      %s337 = smul.addr %s336, 4
      %s338 = scalar_lea.vmem %s5, %s337
      %s339 = smul.u32 2, %s24
      %s340 = smul.u32 2, %s24
      %p341 = scmp.lt.s32.totalorder %s23, 1
      %s342 = scalar_select %p341, %s23, 1
      %p343 = scmp.lt.s32.totalorder %s340, 1
      %s344 = scalar_select %p343, %s340, 1
      %s345 = smul.addr %s342, 2
      %s346 = sadd.s32 %s344, %s345
      %s347 = smul.addr %s346, 8
      %s348 = scalar_lea.vmem %s6, %s347
      %s349 = smul.u32 2, %s24
      %p350 = scmp.lt.s32.totalorder %s23, 1
      %s351 = scalar_select %p350, %s23, 1
      %s352 = scalar_lea.vmem %s7, %s351
      %v354 = vld [vmem:[%s328] sm:$0xff]
      %v355 = vld [vmem:[%s328 + $0x8] sm:$0xff]
      %v356 = vld [vmem:[%s328 + $0x10] sm:$0xff]
      %v357 = vld [vmem:[%s328 + $0x18] sm:$0xff]
      %v358 = vld [vmem:[%s328 + $0x20] sm:$0xff]
      %v359 = vld [vmem:[%s328 + $0x28] sm:$0xff]
      %v360 = vld [vmem:[%s1] sm:$0xf]
      %v361 = vld [vmem:[%s1 + $0x4] sm:$0xf]
      %v362 = vld [vmem:[%s1 + $0x8] sm:$0xf]
      %v363 = vld [vmem:[%s1 + $0xc] sm:$0xf]
      %v364 = vld [vmem:[%s1 + $0x10] sm:$0xf]
      %v365 = vld [vmem:[%s1 + $0x14] sm:$0xf]
      %v366 = vld [vmem:[%s1 + $0x18] sm:$0xf]
      %v367 = vld [vmem:[%s1 + $0x1c] sm:$0xf]
      %v368 = vld [vmem:[%s1 + $0x20] sm:$0xf]
      %v369 = vld [vmem:[%s1 + $0x24] sm:$0xf]
      %v370 = vld [vmem:[%s1 + $0x28] sm:$0xf]
      %v371 = vld [vmem:[%s1 + $0x2c] sm:$0xf]
      %v372 = vld [vmem:[%s1 + $0x30] sm:$0xf]
      %v373 = vld [vmem:[%s1 + $0x34] sm:$0xf]
      %v374 = vld [vmem:[%s1 + $0x38] sm:$0xf]
      %v375 = vld [vmem:[%s1 + $0x3c] sm:$0xf]
      %v376 = vld [vmem:[%s1 + $0x40] sm:$0xf]
      %v377 = vld [vmem:[%s1 + $0x44] sm:$0xf]
      %v378 = vld [vmem:[%s1 + $0x48] sm:$0xf]
      %v379 = vld [vmem:[%s1 + $0x4c] sm:$0xf]
      %v380 = vld [vmem:[%s1 + $0x50] sm:$0xf]
      %v381 = vld [vmem:[%s1 + $0x54] sm:$0xf]
      %v382 = vld [vmem:[%s1 + $0x58] sm:$0xf]
      %v383 = vld [vmem:[%s1 + $0x5c] sm:$0xf]
      %v384 = vld [vmem:[%s1 + $0x60] sm:$0xf]
      %v385 = vld [vmem:[%s1 + $0x64] sm:$0xf]
      %v386 = vld [vmem:[%s1 + $0x68] sm:$0xf]
      %v387 = vld [vmem:[%s1 + $0x6c] sm:$0xf]
      %v388 = vld [vmem:[%s1 + $0x70] sm:$0xf]
      %v389 = vld [vmem:[%s1 + $0x74] sm:$0xf]
      %v390 = vld [vmem:[%s1 + $0x78] sm:$0xf]
      %v391 = vld [vmem:[%s1 + $0x7c] sm:$0xf]
      %v392 = vld [vmem:[%s1 + $0x80] sm:$0xf]
      %v393 = vld [vmem:[%s1 + $0x84] sm:$0xf]
      %v394 = vld [vmem:[%s1 + $0x88] sm:$0xf]
      %v395 = vld [vmem:[%s1 + $0x8c] sm:$0xf]
      %v396 = vld [vmem:[%s1 + $0x90] sm:$0xf]
      %v397 = vld [vmem:[%s1 + $0x94] sm:$0xf]
      %v398 = vld [vmem:[%s1 + $0x98] sm:$0xf]
      %v399 = vld [vmem:[%s1 + $0x9c] sm:$0xf]
      %v400 = vld [vmem:[%s1 + $0xa0] sm:$0xf]
      %v401 = vld [vmem:[%s1 + $0xa4] sm:$0xf]
      %v402 = vld [vmem:[%s1 + $0xa8] sm:$0xf]
      %v403 = vld [vmem:[%s1 + $0xac] sm:$0xf]
      %v404 = vld [vmem:[%s1 + $0xb0] sm:$0xf]
      %v405 = vld [vmem:[%s1 + $0xb4] sm:$0xf]
      %v406 = vld [vmem:[%s1 + $0xb8] sm:$0xf]
      %v407 = vld [vmem:[%s1 + $0xbc] sm:$0xf]
      %v408 = vld [vmem:[%s1 + $0xc0] sm:$0xf]
      %v409 = vld [vmem:[%s1 + $0xc4] sm:$0xf]
      %v410 = vld [vmem:[%s1 + $0xc8] sm:$0xf]
      %v411 = vld [vmem:[%s1 + $0xcc] sm:$0xf]
      %v412 = vld [vmem:[%s1 + $0xd0] sm:$0xf]
      %v413 = vld [vmem:[%s1 + $0xd4] sm:$0xf]
      %v414 = vld [vmem:[%s1 + $0xd8] sm:$0xf]
      %v415 = vld [vmem:[%s1 + $0xdc] sm:$0xf]
      %v416 = vld [vmem:[%s1 + $0xe0] sm:$0xf]
      %v417 = vld [vmem:[%s1 + $0xe4] sm:$0xf]
      %v418 = vld [vmem:[%s1 + $0xe8] sm:$0xf]
      %v419 = vld [vmem:[%s1 + $0xec] sm:$0xf]
      %v420 = vld [vmem:[%s1 + $0xf0] sm:$0xf]
      %v421 = vld [vmem:[%s1 + $0xf4] sm:$0xf]
      %v422 = vld [vmem:[%s1 + $0xf8] sm:$0xf]
      %v423 = vld [vmem:[%s1 + $0xfc] sm:$0xf]
      %v424 = vld [vmem:[%s1 + $0x100] sm:$0xf]
      %v425 = vld [vmem:[%s1 + $0x104] sm:$0xf]
      %v426 = vld [vmem:[%s1 + $0x108] sm:$0xf]
      %v427 = vld [vmem:[%s1 + $0x10c] sm:$0xf]
      %v428 = vld [vmem:[%s1 + $0x110] sm:$0xf]
      %v429 = vld [vmem:[%s1 + $0x114] sm:$0xf]
      %v430 = vld [vmem:[%s1 + $0x118] sm:$0xf]
      %v431 = vld [vmem:[%s1 + $0x11c] sm:$0xf]
      %v432 = vld [vmem:[%s1 + $0x120] sm:$0xf]
      %v433 = vld [vmem:[%s1 + $0x124] sm:$0xf]
      %v434 = vld [vmem:[%s1 + $0x128] sm:$0xf]
      %v435 = vld [vmem:[%s1 + $0x12c] sm:$0xf]
      %v436 = vld [vmem:[%s1 + $0x130] sm:$0xf]
      %v437 = vld [vmem:[%s1 + $0x134] sm:$0xf]
      %v438 = vld [vmem:[%s1 + $0x138] sm:$0xf]
      %v439 = vld [vmem:[%s1 + $0x13c] sm:$0xf]
      %v440 = vld [vmem:[%s1 + $0x140] sm:$0xf]
      %v441 = vld [vmem:[%s1 + $0x144] sm:$0xf]
      %v442 = vld [vmem:[%s1 + $0x148] sm:$0xf]
      %v443 = vld [vmem:[%s1 + $0x14c] sm:$0xf]
      %v444 = vld [vmem:[%s1 + $0x150] sm:$0xf]
      %v445 = vld [vmem:[%s1 + $0x154] sm:$0xf]
      %v446 = vld [vmem:[%s1 + $0x158] sm:$0xf]
      %v447 = vld [vmem:[%s1 + $0x15c] sm:$0xf]
      %v448 = vld [vmem:[%s1 + $0x160] sm:$0xf]
      %v449 = vld [vmem:[%s1 + $0x164] sm:$0xf]
      %v450 = vld [vmem:[%s1 + $0x168] sm:$0xf]
      %v451 = vld [vmem:[%s1 + $0x16c] sm:$0xf]
      %v452 = vld [vmem:[%s1 + $0x170] sm:$0xf]
      %v453 = vld [vmem:[%s1 + $0x174] sm:$0xf]
      %v454 = vld [vmem:[%s1 + $0x178] sm:$0xf]
      %v455 = vld [vmem:[%s1 + $0x17c] sm:$0xf]
      %v456 = vld [vmem:[%s2] sm:$0x1]
      %v458 = vlaneseq
      %v459 = vshrl.u32 %v458, 7
      %v460 = vsub.s32 0, %v459
      %v461 = vrot.slane %v456, %v460
      %v469 = vunpack.c.l.b16 %v354
      %v470 = vunpack.c.h.b16 %v354
      %v471 = vunpack.c.l.b16 %v355
      %v472 = vunpack.c.h.b16 %v355
      %v473 = vunpack.c.l.b16 %v356
      %v474 = vunpack.c.h.b16 %v356
      %v475 = vunpack.c.l.b16 %v357
      %v476 = vunpack.c.h.b16 %v357
      %v477 = vunpack.c.l.b16 %v358
      %v478 = vunpack.c.h.b16 %v358
      %v479 = vunpack.c.l.b16 %v359
      %v480 = vunpack.c.h.b16 %v359
      %v481 = vpack.c.b16 %v475, %v469
      %v482 = vpack.c.b16 %v476, %v470
      %v483 = vpack.c.b16 %v477, %v471
      %v484 = vpack.c.b16 %v478, %v472
      %v485 = vpack.c.b16 %v479, %v473
      %v486 = vpack.c.b16 %v480, %v474
      %v589 = vunpack.c.l.b16 %v360
      %v590 = vunpack.c.l.b16 %v361
      %v591 = vunpack.c.l.b16 %v362
      %v592 = vunpack.c.l.b16 %v363
      %v593 = vunpack.c.l.b16 %v364
      %v594 = vunpack.c.l.b16 %v365
      %v595 = vunpack.c.l.b16 %v366
      %v596 = vunpack.c.l.b16 %v367
      %v597 = vunpack.c.l.b16 %v368
      %v598 = vunpack.c.l.b16 %v369
      %v599 = vunpack.c.l.b16 %v370
      %v600 = vunpack.c.l.b16 %v371
      %v601 = vunpack.c.l.b16 %v372
      %v602 = vunpack.c.l.b16 %v373
      %v603 = vunpack.c.l.b16 %v374
      %v604 = vunpack.c.l.b16 %v375
      %v605 = vunpack.c.l.b16 %v376
      %v606 = vunpack.c.l.b16 %v377
      %v607 = vunpack.c.l.b16 %v378
      %v608 = vunpack.c.l.b16 %v379
      %v609 = vunpack.c.l.b16 %v380
      %v610 = vunpack.c.l.b16 %v381
      %v611 = vunpack.c.l.b16 %v382
      %v612 = vunpack.c.l.b16 %v383
      %v613 = vunpack.c.l.b16 %v384
      %v614 = vunpack.c.l.b16 %v385
      %v615 = vunpack.c.l.b16 %v386
      %v616 = vunpack.c.l.b16 %v387
      %v617 = vunpack.c.l.b16 %v388
      %v618 = vunpack.c.l.b16 %v389
      %v619 = vunpack.c.l.b16 %v390
      %v620 = vunpack.c.l.b16 %v391
      %v621 = vunpack.c.l.b16 %v392
      %v622 = vunpack.c.l.b16 %v393
      %v623 = vunpack.c.l.b16 %v394
      %v624 = vunpack.c.l.b16 %v395
      %v625 = vunpack.c.l.b16 %v396
      %v626 = vunpack.c.l.b16 %v397
      %v627 = vunpack.c.l.b16 %v398
      %v628 = vunpack.c.l.b16 %v399
      %v629 = vunpack.c.l.b16 %v400
      %v630 = vunpack.c.l.b16 %v401
      %v631 = vunpack.c.l.b16 %v402
      %v632 = vunpack.c.l.b16 %v403
      %v633 = vunpack.c.l.b16 %v404
      %v634 = vunpack.c.l.b16 %v405
      %v635 = vunpack.c.l.b16 %v406
      %v636 = vunpack.c.l.b16 %v407
      %v637 = vunpack.c.l.b16 %v408
      %v638 = vunpack.c.l.b16 %v409
      %v639 = vunpack.c.l.b16 %v410
      %v640 = vunpack.c.l.b16 %v411
      %v641 = vunpack.c.l.b16 %v412
      %v642 = vunpack.c.l.b16 %v413
      %v643 = vunpack.c.l.b16 %v414
      %v644 = vunpack.c.l.b16 %v415
      %v645 = vunpack.c.l.b16 %v416
      %v646 = vunpack.c.l.b16 %v417
      %v647 = vunpack.c.l.b16 %v418
      %v648 = vunpack.c.l.b16 %v419
      %v649 = vunpack.c.l.b16 %v420
      %v650 = vunpack.c.l.b16 %v421
      %v651 = vunpack.c.l.b16 %v422
      %v652 = vunpack.c.l.b16 %v423
      %v653 = vunpack.c.l.b16 %v424
      %v654 = vunpack.c.l.b16 %v425
      %v655 = vunpack.c.l.b16 %v426
      %v656 = vunpack.c.l.b16 %v427
      %v657 = vunpack.c.l.b16 %v428
      %v658 = vunpack.c.l.b16 %v429
      %v659 = vunpack.c.l.b16 %v430
      %v660 = vunpack.c.l.b16 %v431
      %v661 = vunpack.c.l.b16 %v432
      %v662 = vunpack.c.l.b16 %v433
      %v663 = vunpack.c.l.b16 %v434
      %v664 = vunpack.c.l.b16 %v435
      %v665 = vunpack.c.l.b16 %v436
      %v666 = vunpack.c.l.b16 %v437
      %v667 = vunpack.c.l.b16 %v438
      %v668 = vunpack.c.l.b16 %v439
      %v669 = vunpack.c.l.b16 %v440
      %v670 = vunpack.c.l.b16 %v441
      %v671 = vunpack.c.l.b16 %v442
      %v672 = vunpack.c.l.b16 %v443
      %v673 = vunpack.c.l.b16 %v444
      %v674 = vunpack.c.l.b16 %v445
      %v675 = vunpack.c.l.b16 %v446
      %v676 = vunpack.c.l.b16 %v447
      %v677 = vunpack.c.l.b16 %v448
      %v678 = vunpack.c.l.b16 %v449
      %v679 = vunpack.c.l.b16 %v450
      %v680 = vunpack.c.l.b16 %v451
      %v681 = vunpack.c.l.b16 %v452
      %v682 = vunpack.c.l.b16 %v453
      %v683 = vunpack.c.l.b16 %v454
      %v684 = vunpack.c.l.b16 %v455
      %v685 = vpack.c.b16 %v590, %v589
      %v686 = vpack.c.b16 %v592, %v591
      %v687 = vpack.c.b16 %v594, %v593
      %v688 = vpack.c.b16 %v596, %v595
      %v689 = vpack.c.b16 %v598, %v597
      %v690 = vpack.c.b16 %v600, %v599
      %v691 = vpack.c.b16 %v602, %v601
      %v692 = vpack.c.b16 %v604, %v603
      %v693 = vpack.c.b16 %v606, %v605
      %v694 = vpack.c.b16 %v608, %v607
      %v695 = vpack.c.b16 %v610, %v609
      %v696 = vpack.c.b16 %v612, %v611
      %v697 = vpack.c.b16 %v614, %v613
      %v698 = vpack.c.b16 %v616, %v615
      %v699 = vpack.c.b16 %v618, %v617
      %v700 = vpack.c.b16 %v620, %v619
      %v701 = vpack.c.b16 %v622, %v621
      %v702 = vpack.c.b16 %v624, %v623
      %v703 = vpack.c.b16 %v626, %v625
      %v704 = vpack.c.b16 %v628, %v627
      %v705 = vpack.c.b16 %v630, %v629
      %v706 = vpack.c.b16 %v632, %v631
      %v707 = vpack.c.b16 %v634, %v633
      %v708 = vpack.c.b16 %v636, %v635
      %v709 = vpack.c.b16 %v638, %v637
      %v710 = vpack.c.b16 %v640, %v639
      %v711 = vpack.c.b16 %v642, %v641
      %v712 = vpack.c.b16 %v644, %v643
      %v713 = vpack.c.b16 %v646, %v645
      %v714 = vpack.c.b16 %v648, %v647
      %v715 = vpack.c.b16 %v650, %v649
      %v716 = vpack.c.b16 %v652, %v651
      %v717 = vpack.c.b16 %v654, %v653
      %v718 = vpack.c.b16 %v656, %v655
      %v719 = vpack.c.b16 %v658, %v657
      %v720 = vpack.c.b16 %v660, %v659
      %v721 = vpack.c.b16 %v662, %v661
      %v722 = vpack.c.b16 %v664, %v663
      %v723 = vpack.c.b16 %v666, %v665
      %v724 = vpack.c.b16 %v668, %v667
      %v725 = vpack.c.b16 %v670, %v669
      %v726 = vpack.c.b16 %v672, %v671
      %v727 = vpack.c.b16 %v674, %v673
      %v728 = vpack.c.b16 %v676, %v675
      %v729 = vpack.c.b16 %v678, %v677
      %v730 = vpack.c.b16 %v680, %v679
      %v731 = vpack.c.b16 %v682, %v681
      %v732 = vpack.c.b16 %v684, %v683
      %781 = vmatprep.subr.bf16.mxu0 0
      %782 = vmatpush1.bf16.msra.mxu0 %v685
      %783 = vmatprep.subr.bf16.mxu0 0
      %784 = vmatpush1.bf16.msra.mxu0 %v686
      %785 = vmatprep.subr.bf16.mxu0 0
      %786 = vmatpush1.bf16.msra.mxu0 %v687
      %787 = vmatprep.subr.bf16.mxu0 0
      %788 = vmatpush1.bf16.msra.mxu0 %v688
      %789 = vmatprep.subr.bf16.mxu0 0
      %790 = vmatpush1.bf16.msra.mxu0 %v689
      %791 = vmatprep.subr.bf16.mxu0 0
      %792 = vmatpush1.bf16.msra.mxu0 %v690
      %793 = vmatprep.subr.bf16.mxu0 0
      %794 = vmatpush1.bf16.msra.mxu0 %v691
      %795 = vmatprep.subr.bf16.mxu0 0
      %796 = vmatpush1.bf16.msra.mxu0 %v692
      %797 = vmatprep.subr.bf16.mxu0 0
      %798 = vmatpush1.bf16.msra.mxu0 %v693
      %799 = vmatprep.subr.bf16.mxu0 0
      %800 = vmatpush1.bf16.msra.mxu0 %v694
      %801 = vmatprep.subr.bf16.mxu0 0
      %802 = vmatpush1.bf16.msra.mxu0 %v695
      %803 = vmatprep.subr.bf16.mxu0 0
      %804 = vmatpush1.bf16.msra.mxu0 %v696
      %805 = vmatprep.subr.bf16.mxu0 0
      %806 = vmatpush1.bf16.msra.mxu0 %v697
      %807 = vmatprep.subr.bf16.mxu0 0
      %808 = vmatpush1.bf16.msra.mxu0 %v698
      %809 = vmatprep.subr.bf16.mxu0 0
      %810 = vmatpush1.bf16.msra.mxu0 %v699
      %811 = vmatprep.subr.bf16.mxu0 0
      %812 = vmatpush1.bf16.msra.mxu0 %v700
      %813 = vmatprep.mubr.bf16.mxu0 %v482
      %814 = vmatmul.mubr.bf16.gmra.mrb[0].mxu0 %v481
      %v815 = vpop.f32.mrb[0].mxu0
      %v816 = vadd.f32 %v461, %v815
      %v817 = vpop.f32.mrb[0].mxu0
      %v818 = vpop.f32.mrb[0].mxu0
      %v819 = vadd.f32 %v461, %v818
      %v820 = vpop.f32.mrb[0].mxu0
      %821 = vdwg.mxu0
      %822 = vmatprep.subr.bf16.mxu0 0
      %823 = vmatpush1.bf16.msra.mxu0 %v701
      %824 = vmatprep.subr.bf16.mxu0 0
      %825 = vmatpush1.bf16.msra.mxu0 %v702
      %826 = vmatprep.subr.bf16.mxu0 0
      %827 = vmatpush1.bf16.msra.mxu0 %v703
      %828 = vmatprep.subr.bf16.mxu0 0
      %829 = vmatpush1.bf16.msra.mxu0 %v704
      %830 = vmatprep.subr.bf16.mxu0 0
      %831 = vmatpush1.bf16.msra.mxu0 %v705
      %832 = vmatprep.subr.bf16.mxu0 0
      %833 = vmatpush1.bf16.msra.mxu0 %v706
      %834 = vmatprep.subr.bf16.mxu0 0
      %835 = vmatpush1.bf16.msra.mxu0 %v707
      %836 = vmatprep.subr.bf16.mxu0 0
      %837 = vmatpush1.bf16.msra.mxu0 %v708
      %838 = vmatprep.subr.bf16.mxu0 0
      %839 = vmatpush1.bf16.msra.mxu0 %v709
      %840 = vmatprep.subr.bf16.mxu0 0
      %841 = vmatpush1.bf16.msra.mxu0 %v710
      %842 = vmatprep.subr.bf16.mxu0 0
      %843 = vmatpush1.bf16.msra.mxu0 %v711
      %844 = vmatprep.subr.bf16.mxu0 0
      %845 = vmatpush1.bf16.msra.mxu0 %v712
      %846 = vmatprep.subr.bf16.mxu0 0
      %847 = vmatpush1.bf16.msra.mxu0 %v713
      %848 = vmatprep.subr.bf16.mxu0 0
      %849 = vmatpush1.bf16.msra.mxu0 %v714
      %850 = vmatprep.subr.bf16.mxu0 0
      %851 = vmatpush1.bf16.msra.mxu0 %v715
      %852 = vmatprep.subr.bf16.mxu0 0
      %853 = vmatpush1.bf16.msra.mxu0 %v716
      %854 = vmatprep.mubr.bf16.mxu0 %v484
      %855 = vmatmul.mubr.bf16.gmra.mrb[0].mxu0 %v483
      %v856 = vpop.f32.mrb[0].mxu0
      %v857 = vadd.f32 %v816, %v856
      %v858 = vpop.f32.mrb[0].mxu0
      %v859 = vpop.f32.mrb[0].mxu0
      %v860 = vadd.f32 %v819, %v859
      %v861 = vpop.f32.mrb[0].mxu0
      %862 = vdwg.mxu0
      %863 = vmatprep.subr.bf16.mxu0 0
      %864 = vmatpush1.bf16.msra.mxu0 %v717
      %865 = vmatprep.subr.bf16.mxu0 0
      %866 = vmatpush1.bf16.msra.mxu0 %v718
      %867 = vmatprep.subr.bf16.mxu0 0
      %868 = vmatpush1.bf16.msra.mxu0 %v719
      %869 = vmatprep.subr.bf16.mxu0 0
      %870 = vmatpush1.bf16.msra.mxu0 %v720
      %871 = vmatprep.subr.bf16.mxu0 0
      %872 = vmatpush1.bf16.msra.mxu0 %v721
      %873 = vmatprep.subr.bf16.mxu0 0
      %874 = vmatpush1.bf16.msra.mxu0 %v722
      %875 = vmatprep.subr.bf16.mxu0 0
      %876 = vmatpush1.bf16.msra.mxu0 %v723
      %877 = vmatprep.subr.bf16.mxu0 0
      %878 = vmatpush1.bf16.msra.mxu0 %v724
      %879 = vmatprep.subr.bf16.mxu0 0
      %880 = vmatpush1.bf16.msra.mxu0 %v725
      %881 = vmatprep.subr.bf16.mxu0 0
      %882 = vmatpush1.bf16.msra.mxu0 %v726
      %883 = vmatprep.subr.bf16.mxu0 0
      %884 = vmatpush1.bf16.msra.mxu0 %v727
      %885 = vmatprep.subr.bf16.mxu0 0
      %886 = vmatpush1.bf16.msra.mxu0 %v728
      %887 = vmatprep.subr.bf16.mxu0 0
      %888 = vmatpush1.bf16.msra.mxu0 %v729
      %889 = vmatprep.subr.bf16.mxu0 0
      %890 = vmatpush1.bf16.msra.mxu0 %v730
      %891 = vmatprep.subr.bf16.mxu0 0
      %892 = vmatpush1.bf16.msra.mxu0 %v731
      %893 = vmatprep.subr.bf16.mxu0 0
      %894 = vmatpush1.bf16.msra.mxu0 %v732
      %895 = vmatprep.mubr.bf16.mxu0 %v486
      %896 = vmatmul.mubr.bf16.gmra.mrb[0].mxu0 %v485
      %v897 = vpop.f32.mrb[0].mxu0
      %v898 = vadd.f32 %v857, %v897
      %v899 = vpop.f32.mrb[0].mxu0
      %v900 = vpop.f32.mrb[0].mxu0
      %v901 = vadd.f32 %v860, %v900
      %v902 = vpop.f32.mrb[0].mxu0
      %903 = vdwg.mxu0
      %v904 = vpack.c.bf16 %v901, %v898
      %v906 = vunpack.c.l.b16 %v904
      %v907 = vunpack.c.h.b16 %v904
      %v908 = vpack.c.b16 %v906, %v906
      %v909 = vpack.c.b16 %v907, %v907
      %vm912 = vcmask 650240
      %913 = vst.msk [vmem:[%s338] sm:$0xf] %vm912, %v908
      %914 = vst.msk [vmem:[%s338 + $0x4] sm:$0xf] %vm912, %v909
      %v915 = vld [vmem:[%s3] sm:$0xff]
      %v916 = vld [vmem:[%s3 + $0x8] sm:$0xff]
      %v917 = vld [vmem:[%s3 + $0x10] sm:$0xff]
      %v918 = vld [vmem:[%s3 + $0x18] sm:$0xff]
      %v919 = vld [vmem:[%s3 + $0x20] sm:$0xff]
      %v920 = vld [vmem:[%s3 + $0x28] sm:$0xff]
      %v921 = vld [vmem:[%s3 + $0x30] sm:$0xff]
      %v922 = vld [vmem:[%s3 + $0x38] sm:$0xff]
      %v923 = vld [vmem:[%s3 + $0x40] sm:$0xff]
      %v924 = vld [vmem:[%s3 + $0x48] sm:$0xff]
      %v925 = vld [vmem:[%s4] sm:$0x1]
      %v927 = vlaneseq
      %v928 = vshrl.u32 %v927, 7
      %v929 = vsub.s32 0, %v928
      %v930 = vrot.slane %v925, %v929
      %vm932 = vcmask 654336
      %v934 = vsel %vm932, %v898, 0
      %v937 = vsel %vm932, %v901, 0
      %939 = vmatprep.subr.mxu0 0.0
      %940 = vmatpush1.msra.mxu0 %v915
      %941 = vmatprep.subr.mxu0 0.0
      %942 = vmatpush1.msra.mxu0 %v916
      %943 = vmatprep.subr.mxu0 0.0
      %944 = vmatpush1.msra.mxu0 %v917
      %945 = vmatprep.subr.mxu0 0.0
      %946 = vmatpush1.msra.mxu0 %v918
      %947 = vmatprep.subr.mxu0 0.0
      %948 = vmatpush1.msra.mxu0 %v919
      %949 = vmatprep.subr.mxu0 0.0
      %950 = vmatpush1.msra.mxu0 %v920
      %951 = vmatprep.subr.mxu0 0.0
      %952 = vmatpush1.msra.mxu0 %v921
      %953 = vmatprep.subr.mxu0 0.0
      %954 = vmatpush1.msra.mxu0 %v922
      %955 = vmatprep.subr.mxu0 0.0
      %956 = vmatpush1.msra.mxu0 %v923
      %957 = vmatprep.subr.mxu0 0.0
      %958 = vmatpush1.msra.mxu0 %v924
      %959 = vmatprep.subr.mxu0 0.0
      %960 = vmatpush1.msra.mxu0 0.0
      %961 = vmatprep.subr.mxu0 0.0
      %962 = vmatpush1.msra.mxu0 0.0
      %963 = vmatprep.subr.mxu0 0.0
      %964 = vmatpush1.msra.mxu0 0.0
      %965 = vmatprep.subr.mxu0 0.0
      %966 = vmatpush1.msra.mxu0 0.0
      %967 = vmatprep.subr.mxu0 0.0
      %968 = vmatpush1.msra.mxu0 0.0
      %969 = vmatprep.subr.mxu0 0.0
      %970 = vmatpush1.msra.mxu0 0.0
      %971 = vmatprep.subr.mxu0 0.0
      %972 = vmatpush1.msra.mxu0 0.0
      %973 = vmatprep.subr.mxu0 0.0
      %974 = vmatpush1.msra.mxu0 0.0
      %975 = vmatprep.subr.mxu0 0.0
      %976 = vmatpush1.msra.mxu0 0.0
      %977 = vmatprep.subr.mxu0 0.0
      %978 = vmatpush1.msra.mxu0 0.0
      %979 = vmatprep.subr.mxu0 0.0
      %980 = vmatpush1.msra.mxu0 0.0
      %981 = vmatprep.subr.mxu0 0.0
      %982 = vmatpush1.msra.mxu0 0.0
      %983 = vmatprep.subr.mxu0 0.0
      %984 = vmatpush1.msra.mxu0 0.0
      %985 = vmatprep.subr.mxu0 0.0
      %986 = vmatpush1.msra.mxu0 0.0
      %987 = vmatprep.subr.mxu0 0.0
      %988 = vmatpush1.msra.mxu0 0.0
      %989 = vmatprep.subr.mxu0 0.0
      %990 = vmatpush1.msra.mxu0 0.0
      %991 = vmatprep.subr.mxu0 0.0
      %992 = vmatpush1.msra.mxu0 0.0
      %993 = vmatprep.subr.mxu0 0.0
      %994 = vmatpush1.msra.mxu0 0.0
      %995 = vmatprep.subr.mxu0 0.0
      %996 = vmatpush1.msra.mxu0 0.0
      %997 = vmatprep.subr.mxu0 0.0
      %998 = vmatpush1.msra.mxu0 0.0
      %999 = vmatprep.subr.mxu0 0.0
      %1000 = vmatpush1.msra.mxu0 0.0
      %1001 = vmatprep.subr.mxu0 0.0
      %1002 = vmatpush1.msra.mxu0 0.0
      %1003 = vmatprep.mubr.f32.mxu0 0.0
      %1004 = vmatmul.mubr.f32.gmra.mrb[0].mxu0 %v934
      %v1005 = vpop.f32.mrb[0].mxu0
      %v1006 = vadd.f32 %v930, %v1005
      %v1007 = vpop.f32.mrb[0].mxu0
      %1008 = vmatprep.mubr.f32.mxu0 0.0
      %1009 = vmatmul.mubr.f32.gmra.mrb[0].mxu0 %v937
      %v1010 = vpop.f32.mrb[0].mxu0
      %v1011 = vadd.f32 %v930, %v1010
      %v1012 = vpop.f32.mrb[0].mxu0
      %1013 = vdwg.mxu0
      %v1014 = vround.ne.pseudo %v1006
      %v1015 = vround.ne.pseudo %v1011
      %vm1016 = vcmask 261120
      %1017 = vst.msk [vmem:[%s348] sm:$0xff] %vm1016, %v1014
      %1018 = vst.msk [vmem:[%s348 + $0x8] sm:$0xff] %vm1016, %v1015
      %p1019 = scmp.eq.s32.totalorder %s24, 0
      // Predicated region
      $region41: #{forward.3} parent=39 // pred_check
        %p1020 = pneg %p1019
      $region42: #{forward.3} parent=39 // pred_check_branch
        %1022 = sbr.rel (%p1020) target = $region44
      $region43: #{forward.3} parent=39 // pred_region
        %vm1023 = vcmask 647168
        %1024 = vst.msk [vmem:[%s352] sm:$0x1] %vm1023, 0.0
      $region44: #{forward.3} parent=39 // pred_fallthru
        _
      %v1025 = vld [vmem:[%s352] sm:$0x1]
      %v1026 = vsel %vm932, %v898, 0.0
      %v1027 = vsel %vm932, %v901, 0.0
      %v1028 = vadd.f32 %v1026, %v1027
      %v1029 = vrot.slane %v1028, 4
      %v1030 = vadd.f32 %v1028, %v1029
      %v1031 = vrot.slane %v1030, 2
      %v1032 = vadd.f32 %v1030, %v1031
      %v1033 = vrot.slane %v1032, 1
      %v1034 = vadd.f32 %v1032, %v1033
      %v1035 = vadd.f32 %v1025, %v1034
      %vm1036 = vcmask 647168
      %1037 = vst.msk [vmem:[%s352] sm:$0x1] %vm1036, %v1035
      %s1038 = smul.u32 2, %s24
      %p1039 = scmp.lt.s32.totalorder %s23, 1
      %s1040 = scalar_select %p1039, %s23, 1
      %p1041 = scmp.lt.s32.totalorder %s1038, 1
      %s1042 = scalar_select %p1041, %s1038, 1
      %s1043 = smul.addr %s1040, 2
      %s1044 = sadd.s32 %s1042, %s1043
      %s1045 = smul.addr %s1044, 4
      %s1046 = scalar_lea.vmem %s5, %s1045
      %s1047 = smul.u32 2, %s24
      %p1048 = scmp.lt.s32.totalorder %s23, 1
      %s1049 = scalar_select %p1048, %s23, 1
      %p1050 = scmp.lt.s32.totalorder %s1047, 1
      %s1051 = scalar_select %p1050, %s1047, 1
      %s1052 = smul.addr %s1049, 2
      %s1053 = sadd.s32 %s1051, %s1052
      %s1054 = smul.addr %s1053, 8
      %s1055 = scalar_lea.vmem %s6, %s1054
      %p1056 = scmp.lt.s32.totalorder %s23, 1
      %s1057 = scalar_select %p1056, %s23, 1
      %s1058 = scalar_lea.vmem %s7, %s1057
      // Predicated region
      $region45: #{forward.3} parent=39 // pred_check
        %p1059 = pneg %p163
      $region46: #{forward.3} parent=39 // pred_check_branch
        %1061 = sbr.rel (%p1059) target = $region48
      $region47: #{forward.3} parent=39 // pred_region
        %s1062 = smul.u32 2, %s24
      $region48: #{forward.3} parent=39 // pred_fallthru
        _
      // Predicated region
      $region49: #{forward.3} parent=39 // pred_check
        %p1063 = pneg %p191
      $region50: #{forward.3} parent=39 // pred_check_branch
        %1065 = sbr.rel (%p1063) target = $region52
      $region51: #{forward.3} parent=39 // pred_region
        %s1066 = smul.u32 2, %s24
      $region52: #{forward.3} parent=39 // pred_fallthru
        _
      // Predicated region
      $region53: #{forward.3} parent=39 // pred_check
        %p1067 = pneg %p217
      $region54: #{forward.3} parent=39 // pred_check_branch
        %1069 = sbr.rel (%p1067) target = $region56
      $region55: #{forward.3} parent=39 // pred_region
        _
      $region56: #{forward.3} parent=39 // pred_fallthru
        _
    $region40: #{forward.3} parent=5 // pred_fallthru
      _
    %p1070 = scmp.le.s32.totalorder 2, %s14
    // Predicated region
    $region57: #{forward.3} parent=5 // pred_check
      %p1071 = pneg %p1070
    $region58: #{forward.3} parent=5 // pred_check_branch
      %1073 = sbr.rel (%p1071) target = $region60
    $region59: #{forward.3} parent=5 // pred_region
      %s1074 = ssub.s32 %s14, 2
      // Predicated region
      $region61: #{forward.3} parent=59 // pred_check
        %p1075 = pneg %p169
      $region62: #{forward.3} parent=59 // pred_check_branch
        %1077 = sbr.rel (%p1075) target = $region64
      $region63: #{forward.3} parent=59 // pred_region
        %s1078 = smul.u32 2, %s26
        %p1079 = scmp.lt.s32.totalorder %s25, 1
        %s1080 = scalar_select %p1079, %s25, 1
        %p1081 = scmp.lt.s32.totalorder %s1078, 1
        %s1082 = scalar_select %p1081, %s1078, 1
        %s1083 = smul.addr %s1080, 2
        %s1084 = sadd.s32 %s1082, %s1083
        %s1085 = smul.addr %s1084, 4
        %s1086 = scalar_lea.vmem %s5, %s1085
      $region64: #{forward.3} parent=59 // pred_fallthru
        _
      // Predicated region
      $region65: #{forward.3} parent=59 // pred_check
        %p1087 = pneg %p197
      $region66: #{forward.3} parent=59 // pred_check_branch
        %1089 = sbr.rel (%p1087) target = $region68
      $region67: #{forward.3} parent=59 // pred_region
        %s1090 = smul.u32 2, %s26
        %p1091 = scmp.lt.s32.totalorder %s25, 1
        %s1092 = scalar_select %p1091, %s25, 1
        %p1093 = scmp.lt.s32.totalorder %s1090, 1
        %s1094 = scalar_select %p1093, %s1090, 1
        %s1095 = smul.addr %s1092, 2
        %s1096 = sadd.s32 %s1094, %s1095
        %s1097 = smul.addr %s1096, 8
        %s1098 = scalar_lea.vmem %s6, %s1097
      $region68: #{forward.3} parent=59 // pred_fallthru
        _
      // Predicated region
      $region69: #{forward.3} parent=59 // pred_check
        %p1099 = pneg %p223
      $region70: #{forward.3} parent=59 // pred_check_branch
        %1101 = sbr.rel (%p1099) target = $region72
      $region71: #{forward.3} parent=59 // pred_region
        %p1102 = scmp.lt.s32.totalorder %s25, 1
        %s1103 = scalar_select %p1102, %s25, 1
        %s1104 = scalar_lea.vmem %s7, %s1103
      $region72: #{forward.3} parent=59 // pred_fallthru
        _
    $region60: #{forward.3} parent=5 // pred_fallthru
      _
  $region6: #{forward.3} parent=0 // loop_footer
    %s18 = sadd.s32 1, %s14
  $region7: #{forward.3} parent=0 // loop_footer_branch
    %13 = sbr.rel target = $region3
  $region8: #{forward.3} parent=0 // loop_exit
    _

// kernel: forward.5
$region0: #{forward.5}
  #allocation0 [shape = 'u32[]', space=smem, size = 0x4, offset = 0x4, fixed_abs, tag = 'smem constant byte address 0x4 - core index']
  #allocation1 [shape = 'u32[144,128]{1,0:T(1,128)}', space=vmem, size = 0x12000, scoped, tag = 'internal scratch']
  %s0 = inlined_call_operand.vmem [shape: bf16[2,16,80], index: 0, kind: input, shape index: {}]
  %s1 = inlined_call_operand.vmem [shape: bf16[2,16,64], index: 1, kind: input, shape index: {}]
  %s2 = inlined_call_operand.vmem [shape: f32[2,16,32], index: 2, kind: input, shape index: {}]
  %s3 = inlined_call_operand.vmem [shape: f32[2,16,16], index: 3, kind: input, shape index: {}]
  %s4 = inlined_call_operand.vmem [shape: f32[2,1,128], index: 4, kind: input, shape index: {}]
  %s5 = inlined_call_operand.vmem [shape: bf16[80,256], index: 5, kind: input, shape index: {}]
  %s6 = inlined_call_operand.vmem [shape: bf16[64,256], index: 6, kind: input, shape index: {}]
  %s7 = inlined_call_operand.vmem [shape: f32[1,256], index: 7, kind: input, shape index: {}]
  %s8 = inlined_call_operand.vmem [shape: f32[128,32], index: 8, kind: input, shape index: {}]
  %s9 = inlined_call_operand.vmem [shape: f32[32,768], index: 9, kind: input, shape index: {}]
  %s10 = inlined_call_operand.vmem [shape: f32[16,768], index: 10, kind: input, shape index: {}]
  %s11 = inlined_call_operand.vmem [shape: f32[32,768], index: 11, kind: input, shape index: {}]
  %s12 = inlined_call_operand.vmem [shape: f32[1,768], index: 12, kind: input, shape index: {}]
  %s13 = inlined_call_operand.vmem [shape: bf16[2,16,768], index: 13, kind: output, shape index: {0}]
  %s14 = inlined_call_operand.vmem [shape: f32[2,16,1], index: 14, kind: output, shape index: {1}]
  %15 = xla_tuple %s13, %s14
  %s16 = sld [smem:[#allocation0]]
  $region93: #{forward.5} parent=0
    _
  %s18 = ssub.s32 1, %s16
  %s19 = scalar_select 0, %s18, %s16
  loop: start=0, step=1, limit=4
  $region2: #{forward.5} parent=0 // loop_pre_header
    _
  $region3: #{forward.5} parent=0 // loop_header
    %s21 = sphi 0, %s25
    %p22 = scmp.ge.s32.totalorder %s21, 4
    %s28 = sphi 0, %s40
    %s29 = sphi 0, %s36
    %s30 = sphi 0, %s28
    %s31 = sphi 0, %s29
    %s32 = sphi 0, %s30
    %s33 = sphi 0, %s31
    %s45 = sphi 0, %s47
    %s48 = sphi 0, %s45
    %s49 = sphi 0, %s48
    %s65 = sphi 0, %s49
    %s73 = sphi 0, %s75
    %s76 = sphi 0, %s73
    %s77 = sphi 0, %s76
    %s93 = sphi 0, %s77
    %s101 = sphi 0, %s103
    %s104 = sphi 0, %s101
    %s105 = sphi 0, %s104
    %s121 = sphi 0, %s105
    %s129 = sphi 0, %s131
    %s132 = sphi 0, %s129
    %s133 = sphi 0, %s132
    %s149 = sphi 0, %s133
    %s155 = sphi 0, %s157
    %s158 = sphi 0, %s155
    %s159 = sphi 0, %s158
    %s175 = sphi 0, %s159
    %s179 = sphi 0, %s179
    %s181 = sphi 0, %s179
    %s182 = sphi 0, %s181
    %s196 = sphi 0, %s182
    %s200 = sphi 0, %s200
    %s202 = sphi 0, %s200
    %s203 = sphi 0, %s202
    %s217 = sphi 0, %s203
    %s221 = sphi 0, %s221
    %s223 = sphi 0, %s221
    %s224 = sphi 0, %s223
    %s238 = sphi 0, %s224
    %s242 = sphi 0, %s242
    %s244 = sphi 0, %s242
    %s245 = sphi 0, %s244
    %s259 = sphi 0, %s245
    %s263 = sphi 0, %s263
    %s265 = sphi 0, %s263
    %s266 = sphi 0, %s265
    %s280 = sphi 0, %s266
    %s284 = sphi 0, %s284
    %s286 = sphi 0, %s284
    %s287 = sphi 0, %s286
    %s301 = sphi 0, %s287
    %s305 = sphi 0, %s305
    %s307 = sphi 0, %s305
    %s308 = sphi 0, %s307
    %s322 = sphi 0, %s308
    %s326 = sphi 0, %s326
    %s328 = sphi 0, %s326
    %s329 = sphi 0, %s328
    %s343 = sphi 0, %s329
    %s351 = sphi 0, %s353
    %s354 = sphi 0, %s351
    %s355 = sphi 0, %s354
    %s371 = sphi 0, %s355
    %s379 = sphi 0, %s381
    %s382 = sphi 0, %s379
    %s383 = sphi 0, %s382
    %s399 = sphi 0, %s383
  $region4: #{forward.5} parent=0 // loop_header_branch
    %24 = sbr.rel (%p22) target = $region8
  $region5: #{forward.5} parent=0 // loop_body
    %s26 = ssub.s32 %s21, 1
    %s27 = ssub.s32 %s21, 2
    %s34 = sadd.s32 1, %s29
    %p35 = scmp.ge.s32.totalorder %s34, 1
    %s36 = scalar_select %p35, 0, %s34
    %s37 = sadd.s32 1, %s28
    %s38 = scalar_select %p35, %s37, %s28
    %p39 = scmp.ge.s32.totalorder %s38, 2
    %s40 = scalar_select %p39, 0, %s38
    %s41 = ssub.s32 %s28, %s40
    %s42 = ssub.s32 %s29, %s36
    %s43 = sor.u32 %s41, %s42
    %p44 = scmp.eq.s32.totalorder %s43, 0
    %s46 = sadd.s32 %s45, 1
    %s47 = scalar_select %p44, %s45, %s46
    %p50 = pneg %p44
    %p51 = scmp.eq.s32.totalorder %s21, 1
    %p52 = por %p50, %p51
    %p53 = scmp.ne.s32.totalorder %s45, %s48
    %p54 = scmp.eq.s32.totalorder %s21, 0
    %p55 = por %p53, %p54
    %p56 = scmp.ne.s32.totalorder %s45, %s48
    %p57 = scmp.eq.s32.totalorder %s26, 1
    %p58 = por %p56, %p57
    %p59 = scmp.ne.s32.totalorder %s48, %s49
    %p60 = scmp.eq.s32.totalorder %s26, 0
    %p61 = por %p59, %p60
    %p62 = scmp.ne.s32.totalorder %s48, %s49
    %p63 = scmp.eq.s32.totalorder %s27, 1
    %p64 = por %p62, %p63
    %p66 = scmp.ne.s32.totalorder %s49, %s65
    %p67 = scmp.eq.s32.totalorder %s27, 0
    %p68 = por %p66, %p67
    %s69 = ssub.s32 %s28, %s40
    %s70 = ssub.s32 %s29, %s36
    %s71 = sor.u32 %s69, %s70
    %p72 = scmp.eq.s32.totalorder %s71, 0
    %s74 = sadd.s32 %s73, 1
    %s75 = scalar_select %p72, %s73, %s74
    %p78 = pneg %p72
    %p79 = scmp.eq.s32.totalorder %s21, 1
    %p80 = por %p78, %p79
    %p81 = scmp.ne.s32.totalorder %s73, %s76
    %p82 = scmp.eq.s32.totalorder %s21, 0
    %p83 = por %p81, %p82
    %p84 = scmp.ne.s32.totalorder %s73, %s76
    %p85 = scmp.eq.s32.totalorder %s26, 1
    %p86 = por %p84, %p85
    %p87 = scmp.ne.s32.totalorder %s76, %s77
    %p88 = scmp.eq.s32.totalorder %s26, 0
    %p89 = por %p87, %p88
    %p90 = scmp.ne.s32.totalorder %s76, %s77
    %p91 = scmp.eq.s32.totalorder %s27, 1
    %p92 = por %p90, %p91
    %p94 = scmp.ne.s32.totalorder %s77, %s93
    %p95 = scmp.eq.s32.totalorder %s27, 0
    %p96 = por %p94, %p95
    %s97 = ssub.s32 %s28, %s40
    %s98 = ssub.s32 %s29, %s36
    %s99 = sor.u32 %s97, %s98
    %p100 = scmp.eq.s32.totalorder %s99, 0
    %s102 = sadd.s32 %s101, 1
    %s103 = scalar_select %p100, %s101, %s102
    %p106 = pneg %p100
    %p107 = scmp.eq.s32.totalorder %s21, 1
    %p108 = por %p106, %p107
    %p109 = scmp.ne.s32.totalorder %s101, %s104
    %p110 = scmp.eq.s32.totalorder %s21, 0
    %p111 = por %p109, %p110
    %p112 = scmp.ne.s32.totalorder %s101, %s104
    %p113 = scmp.eq.s32.totalorder %s26, 1
    %p114 = por %p112, %p113
    %p115 = scmp.ne.s32.totalorder %s104, %s105
    %p116 = scmp.eq.s32.totalorder %s26, 0
    %p117 = por %p115, %p116
    %p118 = scmp.ne.s32.totalorder %s104, %s105
    %p119 = scmp.eq.s32.totalorder %s27, 1
    %p120 = por %p118, %p119
    %p122 = scmp.ne.s32.totalorder %s105, %s121
    %p123 = scmp.eq.s32.totalorder %s27, 0
    %p124 = por %p122, %p123
    %s125 = ssub.s32 %s28, %s40
    %s126 = ssub.s32 %s29, %s36
    %s127 = sor.u32 %s125, %s126
    %p128 = scmp.eq.s32.totalorder %s127, 0
    %s130 = sadd.s32 %s129, 1
    %s131 = scalar_select %p128, %s129, %s130
    %p134 = pneg %p128
    %p135 = scmp.eq.s32.totalorder %s21, 1
    %p136 = por %p134, %p135
    %p137 = scmp.ne.s32.totalorder %s129, %s132
    %p138 = scmp.eq.s32.totalorder %s21, 0
    %p139 = por %p137, %p138
    %p140 = scmp.ne.s32.totalorder %s129, %s132
    %p141 = scmp.eq.s32.totalorder %s26, 1
    %p142 = por %p140, %p141
    %p143 = scmp.ne.s32.totalorder %s132, %s133
    %p144 = scmp.eq.s32.totalorder %s26, 0
    %p145 = por %p143, %p144
    %p146 = scmp.ne.s32.totalorder %s132, %s133
    %p147 = scmp.eq.s32.totalorder %s27, 1
    %p148 = por %p146, %p147
    %p150 = scmp.ne.s32.totalorder %s133, %s149
    %p151 = scmp.eq.s32.totalorder %s27, 0
    %p152 = por %p150, %p151
    %s153 = ssub.s32 %s28, %s40
    %p154 = scmp.eq.s32.totalorder %s153, 0
    %s156 = sadd.s32 %s155, 1
    %s157 = scalar_select %p154, %s155, %s156
    %p160 = pneg %p154
    %p161 = scmp.eq.s32.totalorder %s21, 1
    %p162 = por %p160, %p161
    %p163 = scmp.ne.s32.totalorder %s155, %s158
    %p164 = scmp.eq.s32.totalorder %s21, 0
    %p165 = por %p163, %p164
    %p166 = scmp.ne.s32.totalorder %s155, %s158
    %p167 = scmp.eq.s32.totalorder %s26, 1
    %p168 = por %p166, %p167
    %p169 = scmp.ne.s32.totalorder %s158, %s159
    %p170 = scmp.eq.s32.totalorder %s26, 0
    %p171 = por %p169, %p170
    %p172 = scmp.ne.s32.totalorder %s158, %s159
    %p173 = scmp.eq.s32.totalorder %s27, 1
    %p174 = por %p172, %p173
    %p176 = scmp.ne.s32.totalorder %s159, %s175
    %p177 = scmp.eq.s32.totalorder %s27, 0
    %p178 = por %p176, %p177
    %s180 = sadd.s32 %s179, 1
    %p183 = scmp.eq.s32.totalorder %s21, 1
    %p184 = scmp.ne.s32.totalorder %s179, %s181
    %p185 = scmp.eq.s32.totalorder %s21, 0
    %p186 = por %p184, %p185
    %p187 = scmp.ne.s32.totalorder %s179, %s181
    %p188 = scmp.eq.s32.totalorder %s26, 1
    %p189 = por %p187, %p188
    %p190 = scmp.ne.s32.totalorder %s181, %s182
    %p191 = scmp.eq.s32.totalorder %s26, 0
    %p192 = por %p190, %p191
    %p193 = scmp.ne.s32.totalorder %s181, %s182
    %p194 = scmp.eq.s32.totalorder %s27, 1
    %p195 = por %p193, %p194
    %p197 = scmp.ne.s32.totalorder %s182, %s196
    %p198 = scmp.eq.s32.totalorder %s27, 0
    %p199 = por %p197, %p198
    %s201 = sadd.s32 %s200, 1
    %p204 = scmp.eq.s32.totalorder %s21, 1
    %p205 = scmp.ne.s32.totalorder %s200, %s202
    %p206 = scmp.eq.s32.totalorder %s21, 0
    %p207 = por %p205, %p206
    %p208 = scmp.ne.s32.totalorder %s200, %s202
    %p209 = scmp.eq.s32.totalorder %s26, 1
    %p210 = por %p208, %p209
    %p211 = scmp.ne.s32.totalorder %s202, %s203
    %p212 = scmp.eq.s32.totalorder %s26, 0
    %p213 = por %p211, %p212
    %p214 = scmp.ne.s32.totalorder %s202, %s203
    %p215 = scmp.eq.s32.totalorder %s27, 1
    %p216 = por %p214, %p215
    %p218 = scmp.ne.s32.totalorder %s203, %s217
    %p219 = scmp.eq.s32.totalorder %s27, 0
    %p220 = por %p218, %p219
    %s222 = sadd.s32 %s221, 1
    %p225 = scmp.eq.s32.totalorder %s21, 1
    %p226 = scmp.ne.s32.totalorder %s221, %s223
    %p227 = scmp.eq.s32.totalorder %s21, 0
    %p228 = por %p226, %p227
    %p229 = scmp.ne.s32.totalorder %s221, %s223
    %p230 = scmp.eq.s32.totalorder %s26, 1
    %p231 = por %p229, %p230
    %p232 = scmp.ne.s32.totalorder %s223, %s224
    %p233 = scmp.eq.s32.totalorder %s26, 0
    %p234 = por %p232, %p233
    %p235 = scmp.ne.s32.totalorder %s223, %s224
    %p236 = scmp.eq.s32.totalorder %s27, 1
    %p237 = por %p235, %p236
    %p239 = scmp.ne.s32.totalorder %s224, %s238
    %p240 = scmp.eq.s32.totalorder %s27, 0
    %p241 = por %p239, %p240
    %s243 = sadd.s32 %s242, 1
    %p246 = scmp.eq.s32.totalorder %s21, 1
    %p247 = scmp.ne.s32.totalorder %s242, %s244
    %p248 = scmp.eq.s32.totalorder %s21, 0
    %p249 = por %p247, %p248
    %p250 = scmp.ne.s32.totalorder %s242, %s244
    %p251 = scmp.eq.s32.totalorder %s26, 1
    %p252 = por %p250, %p251
    %p253 = scmp.ne.s32.totalorder %s244, %s245
    %p254 = scmp.eq.s32.totalorder %s26, 0
    %p255 = por %p253, %p254
    %p256 = scmp.ne.s32.totalorder %s244, %s245
    %p257 = scmp.eq.s32.totalorder %s27, 1
    %p258 = por %p256, %p257
    %p260 = scmp.ne.s32.totalorder %s245, %s259
    %p261 = scmp.eq.s32.totalorder %s27, 0
    %p262 = por %p260, %p261
    %s264 = sadd.s32 %s263, 1
    %p267 = scmp.eq.s32.totalorder %s21, 1
    %p268 = scmp.ne.s32.totalorder %s263, %s265
    %p269 = scmp.eq.s32.totalorder %s21, 0
    %p270 = por %p268, %p269
    %p271 = scmp.ne.s32.totalorder %s263, %s265
    %p272 = scmp.eq.s32.totalorder %s26, 1
    %p273 = por %p271, %p272
    %p274 = scmp.ne.s32.totalorder %s265, %s266
    %p275 = scmp.eq.s32.totalorder %s26, 0
    %p276 = por %p274, %p275
    %p277 = scmp.ne.s32.totalorder %s265, %s266
    %p278 = scmp.eq.s32.totalorder %s27, 1
    %p279 = por %p277, %p278
    %p281 = scmp.ne.s32.totalorder %s266, %s280
    %p282 = scmp.eq.s32.totalorder %s27, 0
    %p283 = por %p281, %p282
    %s285 = sadd.s32 %s284, 1
    %p288 = scmp.eq.s32.totalorder %s21, 1
    %p289 = scmp.ne.s32.totalorder %s284, %s286
    %p290 = scmp.eq.s32.totalorder %s21, 0
    %p291 = por %p289, %p290
    %p292 = scmp.ne.s32.totalorder %s284, %s286
    %p293 = scmp.eq.s32.totalorder %s26, 1
    %p294 = por %p292, %p293
    %p295 = scmp.ne.s32.totalorder %s286, %s287
    %p296 = scmp.eq.s32.totalorder %s26, 0
    %p297 = por %p295, %p296
    %p298 = scmp.ne.s32.totalorder %s286, %s287
    %p299 = scmp.eq.s32.totalorder %s27, 1
    %p300 = por %p298, %p299
    %p302 = scmp.ne.s32.totalorder %s287, %s301
    %p303 = scmp.eq.s32.totalorder %s27, 0
    %p304 = por %p302, %p303
    %s306 = sadd.s32 %s305, 1
    %p309 = scmp.eq.s32.totalorder %s21, 1
    %p310 = scmp.ne.s32.totalorder %s305, %s307
    %p311 = scmp.eq.s32.totalorder %s21, 0
    %p312 = por %p310, %p311
    %p313 = scmp.ne.s32.totalorder %s305, %s307
    %p314 = scmp.eq.s32.totalorder %s26, 1
    %p315 = por %p313, %p314
    %p316 = scmp.ne.s32.totalorder %s307, %s308
    %p317 = scmp.eq.s32.totalorder %s26, 0
    %p318 = por %p316, %p317
    %p319 = scmp.ne.s32.totalorder %s307, %s308
    %p320 = scmp.eq.s32.totalorder %s27, 1
    %p321 = por %p319, %p320
    %p323 = scmp.ne.s32.totalorder %s308, %s322
    %p324 = scmp.eq.s32.totalorder %s27, 0
    %p325 = por %p323, %p324
    %s327 = sadd.s32 %s326, 1
    %p330 = scmp.eq.s32.totalorder %s21, 1
    %p331 = scmp.ne.s32.totalorder %s326, %s328
    %p332 = scmp.eq.s32.totalorder %s21, 0
    %p333 = por %p331, %p332
    %p334 = scmp.ne.s32.totalorder %s326, %s328
    %p335 = scmp.eq.s32.totalorder %s26, 1
    %p336 = por %p334, %p335
    %p337 = scmp.ne.s32.totalorder %s328, %s329
    %p338 = scmp.eq.s32.totalorder %s26, 0
    %p339 = por %p337, %p338
    %p340 = scmp.ne.s32.totalorder %s328, %s329
    %p341 = scmp.eq.s32.totalorder %s27, 1
    %p342 = por %p340, %p341
    %p344 = scmp.ne.s32.totalorder %s329, %s343
    %p345 = scmp.eq.s32.totalorder %s27, 0
    %p346 = por %p344, %p345
    %s347 = ssub.s32 %s28, %s40
    %s348 = ssub.s32 %s29, %s36
    %s349 = sor.u32 %s347, %s348
    %p350 = scmp.eq.s32.totalorder %s349, 0
    %s352 = sadd.s32 %s351, 1
    %s353 = scalar_select %p350, %s351, %s352
    %p356 = pneg %p350
    %p357 = scmp.eq.s32.totalorder %s21, 1
    %p358 = por %p356, %p357
    %p359 = scmp.ne.s32.totalorder %s351, %s354
    %p360 = scmp.eq.s32.totalorder %s21, 0
    %p361 = por %p359, %p360
    %p362 = scmp.ne.s32.totalorder %s351, %s354
    %p363 = scmp.eq.s32.totalorder %s26, 1
    %p364 = por %p362, %p363
    %p365 = scmp.ne.s32.totalorder %s354, %s355
    %p366 = scmp.eq.s32.totalorder %s26, 0
    %p367 = por %p365, %p366
    %p368 = scmp.ne.s32.totalorder %s354, %s355
    %p369 = scmp.eq.s32.totalorder %s27, 1
    %p370 = por %p368, %p369
    %p372 = scmp.ne.s32.totalorder %s355, %s371
    %p373 = scmp.eq.s32.totalorder %s27, 0
    %p374 = por %p372, %p373
    %s375 = ssub.s32 %s28, %s40
    %s376 = ssub.s32 %s29, %s36
    %s377 = sor.u32 %s375, %s376
    %p378 = scmp.eq.s32.totalorder %s377, 0
    %s380 = sadd.s32 %s379, 1
    %s381 = scalar_select %p378, %s379, %s380
    %p384 = pneg %p378
    %p385 = scmp.eq.s32.totalorder %s21, 1
    %p386 = por %p384, %p385
    %p387 = scmp.ne.s32.totalorder %s379, %s382
    %p388 = scmp.eq.s32.totalorder %s21, 0
    %p389 = por %p387, %p388
    %p390 = scmp.ne.s32.totalorder %s379, %s382
    %p391 = scmp.eq.s32.totalorder %s26, 1
    %p392 = por %p390, %p391
    %p393 = scmp.ne.s32.totalorder %s382, %s383
    %p394 = scmp.eq.s32.totalorder %s26, 0
    %p395 = por %p393, %p394
    %p396 = scmp.ne.s32.totalorder %s382, %s383
    %p397 = scmp.eq.s32.totalorder %s27, 1
    %p398 = por %p396, %p397
    %p400 = scmp.ne.s32.totalorder %s383, %s399
    %p401 = scmp.eq.s32.totalorder %s27, 0
    %p402 = por %p400, %p401
    %p403 = scmp.le.s32.totalorder 1, %s21
    %p404 = scmp.lt.s32.totalorder %s21, 3
    %p405 = pnand %p403, %p404
    %p406 = pneg %p405
    // Predicated region
    $region9: #{forward.5} parent=5 // pred_check
      _
    $region10: #{forward.5} parent=5 // pred_check_branch
      %408 = sbr.rel (%p405) target = $region12
    $region11: #{forward.5} parent=5 // pred_region
      %s409 = ssub.s32 %s21, 1
      // Predicated region
      $region13: #{forward.5} parent=11 // pred_check
        %p410 = pneg %p192
      $region14: #{forward.5} parent=11 // pred_check_branch
        %412 = sbr.rel (%p410) target = $region16
      $region15: #{forward.5} parent=11 // pred_region
        _
      $region16: #{forward.5} parent=11 // pred_fallthru
        _
      // Predicated region
      $region17: #{forward.5} parent=11 // pred_check
        %p413 = pneg %p213
      $region18: #{forward.5} parent=11 // pred_check_branch
        %415 = sbr.rel (%p413) target = $region20
      $region19: #{forward.5} parent=11 // pred_region
        _
      $region20: #{forward.5} parent=11 // pred_fallthru
        _
      // Predicated region
      $region21: #{forward.5} parent=11 // pred_check
        %p416 = pneg %p234
      $region22: #{forward.5} parent=11 // pred_check_branch
        %418 = sbr.rel (%p416) target = $region24
      $region23: #{forward.5} parent=11 // pred_region
        _
      $region24: #{forward.5} parent=11 // pred_fallthru
        _
      // Predicated region
      $region25: #{forward.5} parent=11 // pred_check
        %p419 = pneg %p255
      $region26: #{forward.5} parent=11 // pred_check_branch
        %421 = sbr.rel (%p419) target = $region28
      $region27: #{forward.5} parent=11 // pred_region
        _
      $region28: #{forward.5} parent=11 // pred_fallthru
        _
      // Predicated region
      $region29: #{forward.5} parent=11 // pred_check
        %p422 = pneg %p276
      $region30: #{forward.5} parent=11 // pred_check_branch
        %424 = sbr.rel (%p422) target = $region32
      $region31: #{forward.5} parent=11 // pred_region
        _
      $region32: #{forward.5} parent=11 // pred_fallthru
        _
      // Predicated region
      $region33: #{forward.5} parent=11 // pred_check
        %p425 = pneg %p297
      $region34: #{forward.5} parent=11 // pred_check_branch
        %427 = sbr.rel (%p425) target = $region36
      $region35: #{forward.5} parent=11 // pred_region
        _
      $region36: #{forward.5} parent=11 // pred_fallthru
        _
      // Predicated region
      $region37: #{forward.5} parent=11 // pred_check
        %p428 = pneg %p318
      $region38: #{forward.5} parent=11 // pred_check_branch
        %430 = sbr.rel (%p428) target = $region40
      $region39: #{forward.5} parent=11 // pred_region
        _
      $region40: #{forward.5} parent=11 // pred_fallthru
        _
      // Predicated region
      $region41: #{forward.5} parent=11 // pred_check
        %p431 = pneg %p339
      $region42: #{forward.5} parent=11 // pred_check_branch
        %433 = sbr.rel (%p431) target = $region44
      $region43: #{forward.5} parent=11 // pred_region
        _
      $region44: #{forward.5} parent=11 // pred_fallthru
        _
    $region12: #{forward.5} parent=5 // pred_fallthru
      _
    %p434 = scmp.lt.s32.totalorder %s21, 2
    // Predicated region
    $region45: #{forward.5} parent=5 // pred_check
      %p435 = pneg %p434
    $region46: #{forward.5} parent=5 // pred_check_branch
      %437 = sbr.rel (%p435) target = $region48
    $region47: #{forward.5} parent=5 // pred_region
      // Predicated region
      $region49: #{forward.5} parent=47 // pred_check
        %p438 = pneg %p55
      $region50: #{forward.5} parent=47 // pred_check_branch
        %440 = sbr.rel (%p438) target = $region52
      $region51: #{forward.5} parent=47 // pred_region
        %s441 = smul.u32 2, %s29
        %p442 = scmp.lt.s32.totalorder %s28, 1
        %s443 = scalar_select %p442, %s28, 1
        %p444 = scmp.lt.s32.totalorder %s441, 1
        %s445 = scalar_select %p444, %s441, 1
        %s446 = smul.addr %s443, 2
        %s447 = sadd.s32 %s445, %s446
        %s448 = smul.addr %s447, 4
        %s449 = scalar_lea.vmem %s0, %s448
        %s450 = smul.u32 2, %s29
      $region52: #{forward.5} parent=47 // pred_fallthru
        _
      // Predicated region
      $region53: #{forward.5} parent=47 // pred_check
        %p451 = pneg %p83
      $region54: #{forward.5} parent=47 // pred_check_branch
        %453 = sbr.rel (%p451) target = $region56
      $region55: #{forward.5} parent=47 // pred_region
        %s454 = smul.u32 2, %s29
        %p455 = scmp.lt.s32.totalorder %s28, 1
        %s456 = scalar_select %p455, %s28, 1
        %p457 = scmp.lt.s32.totalorder %s454, 1
        %s458 = scalar_select %p457, %s454, 1
        %s459 = smul.addr %s456, 2
        %s460 = sadd.s32 %s458, %s459
        %s461 = smul.addr %s460, 4
        %s462 = scalar_lea.vmem %s1, %s461
        %s463 = smul.u32 2, %s29
      $region56: #{forward.5} parent=47 // pred_fallthru
        _
      // Predicated region
      $region57: #{forward.5} parent=47 // pred_check
        %p464 = pneg %p111
      $region58: #{forward.5} parent=47 // pred_check_branch
        %466 = sbr.rel (%p464) target = $region60
      $region59: #{forward.5} parent=47 // pred_region
        %s467 = smul.u32 2, %s29
        %p468 = scmp.lt.s32.totalorder %s28, 1
        %s469 = scalar_select %p468, %s28, 1
        %p470 = scmp.lt.s32.totalorder %s467, 1
        %s471 = scalar_select %p470, %s467, 1
        %s472 = smul.addr %s469, 2
        %s473 = sadd.s32 %s471, %s472
        %s474 = smul.addr %s473, 8
        %s475 = scalar_lea.vmem %s2, %s474
        %s476 = smul.u32 2, %s29
      $region60: #{forward.5} parent=47 // pred_fallthru
        _
      // Predicated region
      $region61: #{forward.5} parent=47 // pred_check
        %p477 = pneg %p139
      $region62: #{forward.5} parent=47 // pred_check_branch
        %479 = sbr.rel (%p477) target = $region64
      $region63: #{forward.5} parent=47 // pred_region
        %s480 = smul.u32 2, %s29
        %p481 = scmp.lt.s32.totalorder %s28, 1
        %s482 = scalar_select %p481, %s28, 1
        %p483 = scmp.lt.s32.totalorder %s480, 1
        %s484 = scalar_select %p483, %s480, 1
        %s485 = smul.addr %s482, 2
        %s486 = sadd.s32 %s484, %s485
        %s487 = smul.addr %s486, 8
        %s488 = scalar_lea.vmem %s3, %s487
        %s489 = smul.u32 2, %s29
      $region64: #{forward.5} parent=47 // pred_fallthru
        _
      // Predicated region
      $region65: #{forward.5} parent=47 // pred_check
        %p490 = pneg %p165
      $region66: #{forward.5} parent=47 // pred_check_branch
        %492 = sbr.rel (%p490) target = $region68
      $region67: #{forward.5} parent=47 // pred_region
        %p493 = scmp.lt.s32.totalorder %s28, 1
        %s494 = scalar_select %p493, %s28, 1
        %s495 = scalar_lea.vmem %s4, %s494
      $region68: #{forward.5} parent=47 // pred_fallthru
        _
    $region48: #{forward.5} parent=5 // pred_fallthru
      _
    %p496 = scmp.le.s32.totalorder 1, %s21
    %p497 = scmp.lt.s32.totalorder %s21, 3
    %p498 = pnand %p496, %p497
    %p499 = pneg %p498
    // Predicated region
    $region69: #{forward.5} parent=5 // pred_check
      _
    $region70: #{forward.5} parent=5 // pred_check_branch
      %501 = sbr.rel (%p498) target = $region72
    $region71: #{forward.5} parent=5 // pred_region
      %s502 = ssub.s32 %s21, 1
      %s503 = smul.u32 2, %s31
      %p504 = scmp.lt.s32.totalorder %s30, 1
      %s505 = scalar_select %p504, %s30, 1
      %p506 = scmp.lt.s32.totalorder %s503, 1
      %s507 = scalar_select %p506, %s503, 1
      %s508 = smul.addr %s505, 2
      %s509 = sadd.s32 %s507, %s508
      %s510 = smul.addr %s509, 4
      %s511 = scalar_lea.vmem %s0, %s510
      %p512 = pneg %p61
      %p513 = pneg %p58
      %s514 = smul.u32 2, %s31
      %p515 = scmp.lt.s32.totalorder %s30, 1
      %s516 = scalar_select %p515, %s30, 1
      %p517 = scmp.lt.s32.totalorder %s514, 1
      %s518 = scalar_select %p517, %s514, 1
      %s519 = smul.addr %s516, 2
      %s520 = sadd.s32 %s518, %s519
      %s521 = smul.addr %s520, 4
      %s522 = scalar_lea.vmem %s1, %s521
      %p523 = pneg %p89
      %p524 = pneg %p86
      %s525 = smul.u32 2, %s31
      %p526 = scmp.lt.s32.totalorder %s30, 1
      %s527 = scalar_select %p526, %s30, 1
      %p528 = scmp.lt.s32.totalorder %s525, 1
      %s529 = scalar_select %p528, %s525, 1
      %s530 = smul.addr %s527, 2
      %s531 = sadd.s32 %s529, %s530
      %s532 = smul.addr %s531, 8
      %s533 = scalar_lea.vmem %s2, %s532
      %p534 = pneg %p117
      %p535 = pneg %p114
      %s536 = smul.u32 2, %s31
      %p537 = scmp.lt.s32.totalorder %s30, 1
      %s538 = scalar_select %p537, %s30, 1
      %p539 = scmp.lt.s32.totalorder %s536, 1
      %s540 = scalar_select %p539, %s536, 1
      %s541 = smul.addr %s538, 2
      %s542 = sadd.s32 %s540, %s541
      %s543 = smul.addr %s542, 8
      %s544 = scalar_lea.vmem %s3, %s543
      %p545 = pneg %p145
      %p546 = pneg %p142
      %p547 = scmp.lt.s32.totalorder %s30, 1
      %s548 = scalar_select %p547, %s30, 1
      %s549 = scalar_lea.vmem %s4, %s548
      %p550 = pneg %p171
      %p551 = pneg %p168
      %p552 = pneg %p192
      %p553 = pneg %p189
      %p554 = pneg %p213
      %p555 = pneg %p210
      %p556 = pneg %p234
      %p557 = pneg %p231
      %p558 = pneg %p255
      %p559 = pneg %p252
      %p560 = pneg %p276
      %p561 = pneg %p273
      %p562 = pneg %p297
      %p563 = pneg %p294
      %p564 = pneg %p318
      %p565 = pneg %p315
      %p566 = pneg %p339
      %p567 = pneg %p336
      %p568 = pneg %p367
      %p569 = pneg %p364
      %s570 = smul.u32 2, %s31
      %p571 = scmp.lt.s32.totalorder %s30, 1
      %s572 = scalar_select %p571, %s30, 1
      %p573 = scmp.lt.s32.totalorder %s570, 1
      %s574 = scalar_select %p573, %s570, 1
      %s575 = smul.addr %s574, 6
      %s576 = smul.addr %s572, 12
      %s577 = sadd.s32 %s575, %s576
      %s578 = smul.addr %s577, 4
      %s579 = scalar_lea.vmem %s13, %s578
      %p580 = pneg %p395
      %p581 = pneg %p392
      %s582 = smul.u32 2, %s31
      %p583 = scmp.lt.s32.totalorder %s30, 1
      %s584 = scalar_select %p583, %s30, 1
      %p585 = scmp.lt.s32.totalorder %s582, 1
      %s586 = scalar_select %p585, %s582, 1
      %s587 = smul.addr %s584, 2
      %s588 = sadd.s32 %s586, %s587
      %s589 = smul.addr %s588, 8
      %s590 = scalar_lea.vmem %s14, %s589
      %s591 = smul.u32 2, %s31
      %p592 = scmp.lt.s32.totalorder %s30, 1
      %s593 = scalar_select %p592, %s30, 1
      %p594 = scmp.lt.s32.totalorder %s591, 1
      %s595 = scalar_select %p594, %s591, 1
      %s596 = smul.addr %s593, 2
      %s597 = sadd.s32 %s595, %s596
      %s598 = smul.addr %s597, 4
      %s599 = scalar_lea.vmem %s0, %s598
      %s600 = smul.u32 2, %s31
      %s601 = smul.u32 2, %s31
      %p602 = scmp.lt.s32.totalorder %s30, 1
      %s603 = scalar_select %p602, %s30, 1
      %p604 = scmp.lt.s32.totalorder %s601, 1
      %s605 = scalar_select %p604, %s601, 1
      %s606 = smul.addr %s603, 2
      %s607 = sadd.s32 %s605, %s606
      %s608 = smul.addr %s607, 4
      %s609 = scalar_lea.vmem %s1, %s608
      %s610 = smul.u32 2, %s31
      %s611 = smul.u32 2, %s31
      %p612 = scmp.lt.s32.totalorder %s30, 1
      %s613 = scalar_select %p612, %s30, 1
      %p614 = scmp.lt.s32.totalorder %s611, 1
      %s615 = scalar_select %p614, %s611, 1
      %s616 = smul.addr %s613, 2
      %s617 = sadd.s32 %s615, %s616
      %s618 = smul.addr %s617, 8
      %s619 = scalar_lea.vmem %s2, %s618
      %s620 = smul.u32 2, %s31
      %s621 = smul.u32 2, %s31
      %p622 = scmp.lt.s32.totalorder %s30, 1
      %s623 = scalar_select %p622, %s30, 1
      %p624 = scmp.lt.s32.totalorder %s621, 1
      %s625 = scalar_select %p624, %s621, 1
      %s626 = smul.addr %s623, 2
      %s627 = sadd.s32 %s625, %s626
      %s628 = smul.addr %s627, 8
      %s629 = scalar_lea.vmem %s3, %s628
      %s630 = smul.u32 2, %s31
      %p631 = scmp.lt.s32.totalorder %s30, 1
      %s632 = scalar_select %p631, %s30, 1
      %s633 = scalar_lea.vmem %s4, %s632
      %s634 = smul.u32 2, %s31
      %p635 = scmp.lt.s32.totalorder %s30, 1
      %s636 = scalar_select %p635, %s30, 1
      %p637 = scmp.lt.s32.totalorder %s634, 1
      %s638 = scalar_select %p637, %s634, 1
      %s639 = smul.addr %s638, 6
      %s640 = smul.addr %s636, 12
      %s641 = sadd.s32 %s639, %s640
      %s642 = smul.addr %s641, 4
      %s643 = scalar_lea.vmem %s13, %s642
      %s644 = smul.u32 2, %s31
      %s645 = smul.u32 2, %s31
      %p646 = scmp.lt.s32.totalorder %s30, 1
      %s647 = scalar_select %p646, %s30, 1
      %p648 = scmp.lt.s32.totalorder %s645, 1
      %s649 = scalar_select %p648, %s645, 1
      %s650 = smul.addr %s647, 2
      %s651 = sadd.s32 %s649, %s650
      %s652 = smul.addr %s651, 8
      %s653 = scalar_lea.vmem %s14, %s652
      %s654 = smul.u32 2, %s31
      %v656 = vld [vmem:[%s599] sm:$0xf]
      %v657 = vld [vmem:[%s599 + $0x4] sm:$0xf]
      %v658 = vld [vmem:[%s609] sm:$0xf]
      %v659 = vld [vmem:[%s609 + $0x4] sm:$0xf]
      %v660 = vld [vmem:[%s5] sm:$0xff]
      %v661 = vld [vmem:[%s5 + $0x8] sm:$0xff]
      %v662 = vld [vmem:[%s5 + $0x10] sm:$0xff]
      %v663 = vld [vmem:[%s5 + $0x18] sm:$0xff]
      %v664 = vld [vmem:[%s5 + $0x20] sm:$0xff]
      %v665 = vld [vmem:[%s5 + $0x28] sm:$0xff]
      %v666 = vld [vmem:[%s5 + $0x30] sm:$0xff]
      %v667 = vld [vmem:[%s5 + $0x38] sm:$0xff]
      %v668 = vld [vmem:[%s5 + $0x40] sm:$0xff]
      %v669 = vld [vmem:[%s5 + $0x48] sm:$0xff]
      %v670 = vld [vmem:[%s6] sm:$0xff]
      %v671 = vld [vmem:[%s6 + $0x8] sm:$0xff]
      %v672 = vld [vmem:[%s6 + $0x10] sm:$0xff]
      %v673 = vld [vmem:[%s6 + $0x18] sm:$0xff]
      %v674 = vld [vmem:[%s6 + $0x20] sm:$0xff]
      %v675 = vld [vmem:[%s6 + $0x28] sm:$0xff]
      %v676 = vld [vmem:[%s6 + $0x30] sm:$0xff]
      %v677 = vld [vmem:[%s6 + $0x38] sm:$0xff]
      %v680 = vunpack.c.l.b16 %v658
      %v681 = vunpack.c.l.b16 %v659
      %v682 = vpack.c.b16 %v681, %v680
      %v691 = vunpack.c.l.b16 %v670
      %v692 = vunpack.c.h.b16 %v670
      %v693 = vunpack.c.l.b16 %v671
      %v694 = vunpack.c.h.b16 %v671
      %v695 = vunpack.c.l.b16 %v672
      %v696 = vunpack.c.h.b16 %v672
      %v697 = vunpack.c.l.b16 %v673
      %v698 = vunpack.c.h.b16 %v673
      %v699 = vunpack.c.l.b16 %v674
      %v700 = vunpack.c.h.b16 %v674
      %v701 = vunpack.c.l.b16 %v675
      %v702 = vunpack.c.h.b16 %v675
      %v703 = vunpack.c.l.b16 %v676
      %v704 = vunpack.c.h.b16 %v676
      %v705 = vunpack.c.l.b16 %v677
      %v706 = vunpack.c.h.b16 %v677
      %v707 = vpack.c.b16 %v693, %v691
      %v708 = vpack.c.b16 %v694, %v692
      %v709 = vpack.c.b16 %v697, %v695
      %v710 = vpack.c.b16 %v698, %v696
      %v711 = vpack.c.b16 %v701, %v699
      %v712 = vpack.c.b16 %v702, %v700
      %v713 = vpack.c.b16 %v705, %v703
      %v714 = vpack.c.b16 %v706, %v704
      %vm723 = vcmask 523264
      %v725 = vsel %vm723, %v682, 0
      %727 = vmatprep.subr.bf16.mxu0 %v708
      %728 = vmatpush1.bf16.msra.mxu0 %v707
      %729 = vmatprep.subr.bf16.mxu0 %v710
      %730 = vmatpush1.bf16.msra.mxu0 %v709
      %731 = vmatprep.subr.bf16.mxu0 %v712
      %732 = vmatpush1.bf16.msra.mxu0 %v711
      %733 = vmatprep.subr.bf16.mxu0 %v714
      %734 = vmatpush1.bf16.msra.mxu0 %v713
      %735 = vmatprep.subr.bf16.mxu0 0
      %736 = vmatpush1.bf16.msra.mxu0 0
      %737 = vmatprep.subr.bf16.mxu0 0
      %738 = vmatpush1.bf16.msra.mxu0 0
      %739 = vmatprep.subr.bf16.mxu0 0
      %740 = vmatpush1.bf16.msra.mxu0 0
      %741 = vmatprep.subr.bf16.mxu0 0
      %742 = vmatpush1.bf16.msra.mxu0 0
      %743 = vmatprep.subr.bf16.mxu0 0
      %744 = vmatpush1.bf16.msra.mxu0 0
      %745 = vmatprep.subr.bf16.mxu0 0
      %746 = vmatpush1.bf16.msra.mxu0 0
      %747 = vmatprep.subr.bf16.mxu0 0
      %748 = vmatpush1.bf16.msra.mxu0 0
      %749 = vmatprep.subr.bf16.mxu0 0
      %750 = vmatpush1.bf16.msra.mxu0 0
      %751 = vmatprep.subr.bf16.mxu0 0
      %752 = vmatpush1.bf16.msra.mxu0 0
      %753 = vmatprep.subr.bf16.mxu0 0
      %754 = vmatpush1.bf16.msra.mxu0 0
      %755 = vmatprep.subr.bf16.mxu0 0
      %756 = vmatpush1.bf16.msra.mxu0 0
      %757 = vmatprep.subr.bf16.mxu0 0
      %758 = vmatpush1.bf16.msra.mxu0 0
      %759 = vmatprep.mubr.bf16.mxu0 0
      %760 = vmatmul.mubr.bf16.gmra.mrb[0].mxu0 %v725
      %v761 = vpop.f32.mrb[0].mxu0
      %v762 = vadd.f32 0.0, %v761
      %v763 = vpop.f32.mrb[0].mxu0
      %v764 = vadd.f32 0.0, %v763
      %v765 = vpop.f32.mrb[0].mxu0
      %v766 = vadd.f32 0.0, %v765
      %v767 = vpop.f32.mrb[0].mxu0
      %v768 = vadd.f32 0.0, %v767
      %769 = vdwg.mxu0
      %v772 = vunpack.c.l.b16 %v656
      %v773 = vunpack.c.l.b16 %v657
      %v774 = vpack.c.b16 %v773, %v772
      %v785 = vunpack.c.l.b16 %v660
      %v786 = vunpack.c.h.b16 %v660
      %v787 = vunpack.c.l.b16 %v661
      %v788 = vunpack.c.h.b16 %v661
      %v789 = vunpack.c.l.b16 %v662
      %v790 = vunpack.c.h.b16 %v662
      %v791 = vunpack.c.l.b16 %v663
      %v792 = vunpack.c.h.b16 %v663
      %v793 = vunpack.c.l.b16 %v664
      %v794 = vunpack.c.h.b16 %v664
      %v795 = vunpack.c.l.b16 %v665
      %v796 = vunpack.c.h.b16 %v665
      %v797 = vunpack.c.l.b16 %v666
      %v798 = vunpack.c.h.b16 %v666
      %v799 = vunpack.c.l.b16 %v667
      %v800 = vunpack.c.h.b16 %v667
      %v801 = vunpack.c.l.b16 %v668
      %v802 = vunpack.c.h.b16 %v668
      %v803 = vunpack.c.l.b16 %v669
      %v804 = vunpack.c.h.b16 %v669
      %v805 = vpack.c.b16 %v787, %v785
      %v806 = vpack.c.b16 %v788, %v786
      %v807 = vpack.c.b16 %v791, %v789
      %v808 = vpack.c.b16 %v792, %v790
      %v809 = vpack.c.b16 %v795, %v793
      %v810 = vpack.c.b16 %v796, %v794
      %v811 = vpack.c.b16 %v799, %v797
      %v812 = vpack.c.b16 %v800, %v798
      %v813 = vpack.c.b16 %v803, %v801
      %v814 = vpack.c.b16 %v804, %v802
      %vm825 = vcmask 654336
      %v827 = vsel %vm825, %v774, 0
      %829 = vmatprep.subr.bf16.mxu0 %v806
      %830 = vmatpush1.bf16.msra.mxu0 %v805
      %831 = vmatprep.subr.bf16.mxu0 %v808
      %832 = vmatpush1.bf16.msra.mxu0 %v807
      %833 = vmatprep.subr.bf16.mxu0 %v810
      %834 = vmatpush1.bf16.msra.mxu0 %v809
      %835 = vmatprep.subr.bf16.mxu0 %v812
      %836 = vmatpush1.bf16.msra.mxu0 %v811
      %837 = vmatprep.subr.bf16.mxu0 %v814
      %838 = vmatpush1.bf16.msra.mxu0 %v813
      %839 = vmatprep.subr.bf16.mxu0 0
      %840 = vmatpush1.bf16.msra.mxu0 0
      %841 = vmatprep.subr.bf16.mxu0 0
      %842 = vmatpush1.bf16.msra.mxu0 0
      %843 = vmatprep.subr.bf16.mxu0 0
      %844 = vmatpush1.bf16.msra.mxu0 0
      %845 = vmatprep.subr.bf16.mxu0 0
      %846 = vmatpush1.bf16.msra.mxu0 0
      %847 = vmatprep.subr.bf16.mxu0 0
      %848 = vmatpush1.bf16.msra.mxu0 0
      %849 = vmatprep.subr.bf16.mxu0 0
      %850 = vmatpush1.bf16.msra.mxu0 0
      %851 = vmatprep.subr.bf16.mxu0 0
      %852 = vmatpush1.bf16.msra.mxu0 0
      %853 = vmatprep.subr.bf16.mxu0 0
      %854 = vmatpush1.bf16.msra.mxu0 0
      %855 = vmatprep.subr.bf16.mxu0 0
      %856 = vmatpush1.bf16.msra.mxu0 0
      %857 = vmatprep.subr.bf16.mxu0 0
      %858 = vmatpush1.bf16.msra.mxu0 0
      %859 = vmatprep.subr.bf16.mxu0 0
      %860 = vmatpush1.bf16.msra.mxu0 0
      %861 = vmatprep.mubr.bf16.mxu0 0
      %862 = vmatmul.mubr.bf16.gmra.mrb[0].mxu0 %v827
      %v863 = vpop.f32.mrb[0].mxu0
      %v864 = vadd.f32 %v762, %v863
      %v865 = vpop.f32.mrb[0].mxu0
      %v866 = vadd.f32 %v764, %v865
      %v867 = vpop.f32.mrb[0].mxu0
      %v868 = vadd.f32 %v766, %v867
      %v869 = vpop.f32.mrb[0].mxu0
      %v870 = vadd.f32 %v768, %v869
      %871 = vdwg.mxu0
      %v872 = vld [vmem:[%s7] sm:$0x3]
      %v874 = vlaneseq
      %v875 = vshrl.u32 %v874, 7
      %v876 = vsub.s32 0, %v875
      %v877 = vrot.slane %v872, %v876
      %v878 = vlaneseq
      %v879 = vshrl.u32 %v878, 7
      %v880 = vsub.s32 1, %v879
      %v881 = vrot.slane %v872, %v880
      %v884 = vadd.f32 %v864, %v877
      %v885 = vadd.f32 %v866, %v881
      %v886 = vadd.f32 %v868, %v877
      %v887 = vadd.f32 %v870, %v881
      %v888 = vmul.f32 %v885, %v885
      %v889 = vmul.f32 %v887, %v887
      %v890 = vadd.f32 %v888, 1e-06
      %v891 = vadd.f32 %v889, 1e-06
      %v892 = vld [vmem:[%s633] sm:$0x1]
      %v893 = vld [vmem:[%s8] sm:$0xff]
      %v894 = vld [vmem:[%s8 + $0x8] sm:$0xff]
      %v895 = vld [vmem:[%s8 + $0x10] sm:$0xff]
      %v896 = vld [vmem:[%s8 + $0x18] sm:$0xff]
      %v897 = vld [vmem:[%s8 + $0x20] sm:$0xff]
      %v898 = vld [vmem:[%s8 + $0x28] sm:$0xff]
      %v899 = vld [vmem:[%s8 + $0x30] sm:$0xff]
      %v900 = vld [vmem:[%s8 + $0x38] sm:$0xff]
      %v901 = vld [vmem:[%s8 + $0x40] sm:$0xff]
      %v902 = vld [vmem:[%s8 + $0x48] sm:$0xff]
      %v903 = vld [vmem:[%s8 + $0x50] sm:$0xff]
      %v904 = vld [vmem:[%s8 + $0x58] sm:$0xff]
      %v905 = vld [vmem:[%s8 + $0x60] sm:$0xff]
      %v906 = vld [vmem:[%s8 + $0x68] sm:$0xff]
      %v907 = vld [vmem:[%s8 + $0x70] sm:$0xff]
      %v908 = vld [vmem:[%s8 + $0x78] sm:$0xff]
      %v910 = vlaneseq
      %v911 = vshrl.u32 %v910, 7
      %v912 = vsub.s32 0, %v911
      %v913 = vrot.slane %v892, %v912
      %v915 = vmul.f32 %v884, %v913
      %v916 = vmul.f32 %v886, %v913
      %917 = vmatprep.subr.mxu0 0.0
      %918 = vmatpush1.msra.mxu0 %v893
      %919 = vmatprep.subr.mxu0 0.0
      %920 = vmatpush1.msra.mxu0 %v894
      %921 = vmatprep.subr.mxu0 0.0
      %922 = vmatpush1.msra.mxu0 %v895
      %923 = vmatprep.subr.mxu0 0.0
      %924 = vmatpush1.msra.mxu0 %v896
      %925 = vmatprep.subr.mxu0 0.0
      %926 = vmatpush1.msra.mxu0 %v897
      %927 = vmatprep.subr.mxu0 0.0
      %928 = vmatpush1.msra.mxu0 %v898
      %929 = vmatprep.subr.mxu0 0.0
      %930 = vmatpush1.msra.mxu0 %v899
      %931 = vmatprep.subr.mxu0 0.0
      %932 = vmatpush1.msra.mxu0 %v900
      %933 = vmatprep.subr.mxu0 0.0
      %934 = vmatpush1.msra.mxu0 %v901
      %935 = vmatprep.subr.mxu0 0.0
      %936 = vmatpush1.msra.mxu0 %v902
      %937 = vmatprep.subr.mxu0 0.0
      %938 = vmatpush1.msra.mxu0 %v903
      %939 = vmatprep.subr.mxu0 0.0
      %940 = vmatpush1.msra.mxu0 %v904
      %941 = vmatprep.subr.mxu0 0.0
      %942 = vmatpush1.msra.mxu0 %v905
      %943 = vmatprep.subr.mxu0 0.0
      %944 = vmatpush1.msra.mxu0 %v906
      %945 = vmatprep.subr.mxu0 0.0
      %946 = vmatpush1.msra.mxu0 %v907
      %947 = vmatprep.subr.mxu0 0.0
      %948 = vmatpush1.msra.mxu0 %v908
      %949 = vmatprep.subr.mxu0 0.0
      %950 = vmatpush1.msra.mxu0 0.0
      %951 = vmatprep.subr.mxu0 0.0
      %952 = vmatpush1.msra.mxu0 0.0
      %953 = vmatprep.subr.mxu0 0.0
      %954 = vmatpush1.msra.mxu0 0.0
      %955 = vmatprep.subr.mxu0 0.0
      %956 = vmatpush1.msra.mxu0 0.0
      %957 = vmatprep.subr.mxu0 0.0
      %958 = vmatpush1.msra.mxu0 0.0
      %959 = vmatprep.subr.mxu0 0.0
      %960 = vmatpush1.msra.mxu0 0.0
      %961 = vmatprep.subr.mxu0 0.0
      %962 = vmatpush1.msra.mxu0 0.0
      %963 = vmatprep.subr.mxu0 0.0
      %964 = vmatpush1.msra.mxu0 0.0
      %965 = vmatprep.subr.mxu0 0.0
      %966 = vmatpush1.msra.mxu0 0.0
      %967 = vmatprep.subr.mxu0 0.0
      %968 = vmatpush1.msra.mxu0 0.0
      %969 = vmatprep.subr.mxu0 0.0
      %970 = vmatpush1.msra.mxu0 0.0
      %971 = vmatprep.subr.mxu0 0.0
      %972 = vmatpush1.msra.mxu0 0.0
      %973 = vmatprep.subr.mxu0 0.0
      %974 = vmatpush1.msra.mxu0 0.0
      %975 = vmatprep.subr.mxu0 0.0
      %976 = vmatpush1.msra.mxu0 0.0
      %977 = vmatprep.subr.mxu0 0.0
      %978 = vmatpush1.msra.mxu0 0.0
      %979 = vmatprep.subr.mxu0 0.0
      %980 = vmatpush1.msra.mxu0 0.0
      %981 = vmatprep.mubr.f32.mxu0 0.0
      %982 = vmatmul.mubr.f32.gmra.mrb[0].mxu0 %v915
      %v983 = vpop.f32.mrb[0].mxu0
      %v984 = vadd.f32 0.0, %v983
      %v985 = vpop.f32.mrb[0].mxu0
      %986 = vmatprep.mubr.f32.mxu0 0.0
      %987 = vmatmul.mubr.f32.gmra.mrb[0].mxu0 %v916
      %v988 = vpop.f32.mrb[0].mxu0
      %v989 = vadd.f32 0.0, %v988
      %v990 = vpop.f32.mrb[0].mxu0
      %991 = vdwg.mxu0
      %v992 = vmul.f32 %v884, %v884
      %v993 = vmul.f32 %v886, %v886
      %v994 = vadd.f32 %v992, %v890
      %v995 = vadd.f32 %v993, %v891
      %v996 = vmul.f32 %v994, %v913
      %v997 = vmul.f32 %v995, %v913
      %998 = vmatprep.subr.mxu0 0.0
      %999 = vmatpush1.msra.mxu0 %v893
      %1000 = vmatprep.subr.mxu0 0.0
      %1001 = vmatpush1.msra.mxu0 %v894
      %1002 = vmatprep.subr.mxu0 0.0
      %1003 = vmatpush1.msra.mxu0 %v895
      %1004 = vmatprep.subr.mxu0 0.0
      %1005 = vmatpush1.msra.mxu0 %v896
      %1006 = vmatprep.subr.mxu0 0.0
      %1007 = vmatpush1.msra.mxu0 %v897
      %1008 = vmatprep.subr.mxu0 0.0
      %1009 = vmatpush1.msra.mxu0 %v898
      %1010 = vmatprep.subr.mxu0 0.0
      %1011 = vmatpush1.msra.mxu0 %v899
      %1012 = vmatprep.subr.mxu0 0.0
      %1013 = vmatpush1.msra.mxu0 %v900
      %1014 = vmatprep.subr.mxu0 0.0
      %1015 = vmatpush1.msra.mxu0 %v901
      %1016 = vmatprep.subr.mxu0 0.0
      %1017 = vmatpush1.msra.mxu0 %v902
      %1018 = vmatprep.subr.mxu0 0.0
      %1019 = vmatpush1.msra.mxu0 %v903
      %1020 = vmatprep.subr.mxu0 0.0
      %1021 = vmatpush1.msra.mxu0 %v904
      %1022 = vmatprep.subr.mxu0 0.0
      %1023 = vmatpush1.msra.mxu0 %v905
      %1024 = vmatprep.subr.mxu0 0.0
      %1025 = vmatpush1.msra.mxu0 %v906
      %1026 = vmatprep.subr.mxu0 0.0
      %1027 = vmatpush1.msra.mxu0 %v907
      %1028 = vmatprep.subr.mxu0 0.0
      %1029 = vmatpush1.msra.mxu0 %v908
      %1030 = vmatprep.subr.mxu0 0.0
      %1031 = vmatpush1.msra.mxu0 0.0
      %1032 = vmatprep.subr.mxu0 0.0
      %1033 = vmatpush1.msra.mxu0 0.0
      %1034 = vmatprep.subr.mxu0 0.0
      %1035 = vmatpush1.msra.mxu0 0.0
      %1036 = vmatprep.subr.mxu0 0.0
      %1037 = vmatpush1.msra.mxu0 0.0
      %1038 = vmatprep.subr.mxu0 0.0
      %1039 = vmatpush1.msra.mxu0 0.0
      %1040 = vmatprep.subr.mxu0 0.0
      %1041 = vmatpush1.msra.mxu0 0.0
      %1042 = vmatprep.subr.mxu0 0.0
      %1043 = vmatpush1.msra.mxu0 0.0
      %1044 = vmatprep.subr.mxu0 0.0
      %1045 = vmatpush1.msra.mxu0 0.0
      %1046 = vmatprep.subr.mxu0 0.0
      %1047 = vmatpush1.msra.mxu0 0.0
      %1048 = vmatprep.subr.mxu0 0.0
      %1049 = vmatpush1.msra.mxu0 0.0
      %1050 = vmatprep.subr.mxu0 0.0
      %1051 = vmatpush1.msra.mxu0 0.0
      %1052 = vmatprep.subr.mxu0 0.0
      %1053 = vmatpush1.msra.mxu0 0.0
      %1054 = vmatprep.subr.mxu0 0.0
      %1055 = vmatpush1.msra.mxu0 0.0
      %1056 = vmatprep.subr.mxu0 0.0
      %1057 = vmatpush1.msra.mxu0 0.0
      %1058 = vmatprep.subr.mxu0 0.0
      %1059 = vmatpush1.msra.mxu0 0.0
      %1060 = vmatprep.subr.mxu0 0.0
      %1061 = vmatpush1.msra.mxu0 0.0
      %1062 = vmatprep.mubr.f32.mxu0 0.0
      %1063 = vmatmul.mubr.f32.gmra.mrb[0].mxu0 %v996
      %v1064 = vpop.f32.mrb[0].mxu0
      %v1065 = vadd.f32 0.0, %v1064
      %v1066 = vpop.f32.mrb[0].mxu0
      %1067 = vmatprep.mubr.f32.mxu0 0.0
      %1068 = vmatmul.mubr.f32.gmra.mrb[0].mxu0 %v997
      %v1069 = vpop.f32.mrb[0].mxu0
      %v1070 = vadd.f32 0.0, %v1069
      %v1071 = vpop.f32.mrb[0].mxu0
      %1072 = vdwg.mxu0
      %v1073 = vmul.f32 %v984, %v984
      %v1074 = vmul.f32 %v989, %v989
      %v1075 = vsub.f32 %v1065, %v1073
      %v1076 = vsub.f32 %v1070, %v1074
      %v1077 = vand.u32 2147483647, %v1075
      %v1078 = vand.u32 2147483647, %v1076
      %v1079 = vadd.f32 %v1077, 1e-18
      %v1080 = vadd.f32 %v1078, 1e-18
      %v1081 = vrsqrt.pop %v1079
      %v1082 = vmul.f32 %v1079, %v1081
      %vm1083 = vcmp.eq.f32.partialorder %v1079, inf
      %v1084 = vsel %vm1083, %v1079, %v1082
      %vm1085 = vcmp.eq.f32.partialorder %v1079, 0.0
      %v1086 = vand.u32 %v1079, 2147483648
      %v1087 = vsel %vm1085, %v1086, %v1084
      %v1088 = vrsqrt.pop %v1080
      %v1089 = vmul.f32 %v1080, %v1088
      %vm1090 = vcmp.eq.f32.partialorder %v1080, inf
      %v1091 = vsel %vm1090, %v1080, %v1089
      %vm1092 = vcmp.eq.f32.partialorder %v1080, 0.0
      %v1093 = vand.u32 %v1080, 2147483648
      %v1094 = vsel %vm1092, %v1093, %v1091
      %v1095 = vld [vmem:[%s619] sm:$0xff]
      %v1096 = vld [vmem:[%s619 + $0x8] sm:$0xff]
      %v1097 = vsub.f32 %v1095, %v984
      %v1098 = vsub.f32 %v1096, %v989
      %v1099 = vround.ne.pseudo %v1097
      %v1100 = vround.ne.pseudo %v1098
      %v1101 = vadd.f32 %v1099, %v984
      %v1102 = vadd.f32 %v1100, %v989
      %v1103 = vmax.f32 %v1087, 0.11
      %v1104 = vmax.f32 %v1094, 0.11
      %v1105 = vrcp.pop %v1103
      %v1106 = vrcp.pop %v1104
      %v1107 = vmul.f32 %v1103, %v1105
      %v1108 = vmul.f32 %v1104, %v1106
      %v1109 = vsub.f32 2.0, %v1107
      %v1110 = vsub.f32 2.0, %v1108
      %v1111 = vmul.f32 %v1105, %v1109
      %v1112 = vmul.f32 %v1106, %v1110
      %v1113 = vsub.f32 %v1101, %v984
      %v1114 = vsub.f32 %v1102, %v989
      %v1115 = vand.u32 2147483647, %v1113
      %v1116 = vand.u32 2147483647, %v1114
      %v1117 = vsub.f32 0.5, %v1115
      %v1118 = vsub.f32 0.5, %v1116
      %v1119 = vmul.f32 %v1117, %v1111
      %v1120 = vmul.f32 %v1118, %v1112
      %v1121 = vmul.f32 %v1119, 0.70710677
      %v1122 = vmul.f32 %v1120, 0.70710677
      %vm1123 = vcmp.ge.f32.partialorder %v1121, 0.0
      %vm1124 = vcmp.ge.f32.partialorder %v1122, 0.0
      %v1125 = vsel %vm1123, 1.0, -1.0
      %v1126 = vsel %vm1124, 1.0, -1.0
      %v1127 = vand.u32 2147483647, %v1121
      %v1128 = vand.u32 2147483647, %v1122
      %v1129 = vmul.f32 %v1127, 0.3275911
      %v1130 = vmul.f32 %v1128, 0.3275911
      %v1131 = vadd.f32 %v1129, 1.0
      %v1132 = vadd.f32 %v1130, 1.0
      %v1133 = vrcp.pop %v1131
      %v1134 = vmul.f32 1.0, %v1133
      %v1135 = vrcp.pop %v1132
      %v1136 = vmul.f32 1.0, %v1135
      %v1137 = vmul.f32 %v1134, 1.0614054
      %v1138 = vmul.f32 %v1136, 1.0614054
      %v1139 = vadd.f32 %v1137, -1.4531521
      %v1140 = vadd.f32 %v1138, -1.4531521
      %v1141 = vmul.f32 %v1139, %v1134
      %v1142 = vmul.f32 %v1140, %v1136
      %v1143 = vadd.f32 %v1141, 1.4214138
      %v1144 = vadd.f32 %v1142, 1.4214138
      %v1145 = vmul.f32 %v1143, %v1134
      %v1146 = vmul.f32 %v1144, %v1136
      %v1147 = vadd.f32 %v1145, -0.28449672
      %v1148 = vadd.f32 %v1146, -0.28449672
      %v1149 = vmul.f32 %v1147, %v1134
      %v1150 = vmul.f32 %v1148, %v1136
      %v1151 = vadd.f32 %v1149, 0.2548296
      %v1152 = vadd.f32 %v1150, 0.2548296
      %v1153 = vmul.f32 %v1151, %v1134
      %v1154 = vmul.f32 %v1152, %v1136
      %v1155 = vsub.f32 0.0, %v1127
      %v1156 = vsub.f32 0.0, %v1128
      %v1157 = vmul.f32 %v1155, %v1127
      %v1158 = vmul.f32 %v1156, %v1128
      %v1159 = vmul.f32 %v1157, 1.442695
      %v1160 = vpow.pop %v1159
      %v1161 = vmul.f32 %v1158, 1.442695
      %v1162 = vpow.pop %v1161
      %v1163 = vmul.f32 %v1153, %v1160
      %v1164 = vmul.f32 %v1154, %v1162
      %v1165 = vsub.f32 1.0, %v1163
      %v1166 = vsub.f32 1.0, %v1164
      %v1167 = vmul.f32 %v1125, %v1165
      %v1168 = vmul.f32 %v1126, %v1166
      %v1169 = vadd.f32 %v1167, 1.0
      %v1170 = vadd.f32 %v1168, 1.0
      %v1171 = vmul.f32 %v1169, 0.5
      %v1172 = vmul.f32 %v1170, 0.5
      %v1173 = vsub.f32 -0.5, %v1115
      %v1174 = vsub.f32 -0.5, %v1116
      %v1175 = vmul.f32 %v1173, %v1111
      %v1176 = vmul.f32 %v1174, %v1112
      %v1177 = vmul.f32 %v1175, 0.70710677
      %v1178 = vmul.f32 %v1176, 0.70710677
      %vm1179 = vcmp.ge.f32.partialorder %v1177, 0.0
      %vm1180 = vcmp.ge.f32.partialorder %v1178, 0.0
      %v1181 = vsel %vm1179, 1.0, -1.0
      %v1182 = vsel %vm1180, 1.0, -1.0
      %v1183 = vand.u32 2147483647, %v1177
      %v1184 = vand.u32 2147483647, %v1178
      %v1185 = vmul.f32 %v1183, 0.3275911
      %v1186 = vmul.f32 %v1184, 0.3275911
      %v1187 = vadd.f32 %v1185, 1.0
      %v1188 = vadd.f32 %v1186, 1.0
      %v1189 = vrcp.pop %v1187
      %v1190 = vmul.f32 1.0, %v1189
      %v1191 = vrcp.pop %v1188
      %v1192 = vmul.f32 1.0, %v1191
      %v1193 = vmul.f32 %v1190, 1.0614054
      %v1194 = vmul.f32 %v1192, 1.0614054
      %v1195 = vadd.f32 %v1193, -1.4531521
      %v1196 = vadd.f32 %v1194, -1.4531521
      %v1197 = vmul.f32 %v1195, %v1190
      %v1198 = vmul.f32 %v1196, %v1192
      %v1199 = vadd.f32 %v1197, 1.4214138
      %v1200 = vadd.f32 %v1198, 1.4214138
      %v1201 = vmul.f32 %v1199, %v1190
      %v1202 = vmul.f32 %v1200, %v1192
      %v1203 = vadd.f32 %v1201, -0.28449672
      %v1204 = vadd.f32 %v1202, -0.28449672
      %v1205 = vmul.f32 %v1203, %v1190
      %v1206 = vmul.f32 %v1204, %v1192
      %v1207 = vadd.f32 %v1205, 0.2548296
      %v1208 = vadd.f32 %v1206, 0.2548296
      %v1209 = vmul.f32 %v1207, %v1190
      %v1210 = vmul.f32 %v1208, %v1192
      %v1211 = vsub.f32 0.0, %v1183
      %v1212 = vsub.f32 0.0, %v1184
      %v1213 = vmul.f32 %v1211, %v1183
      %v1214 = vmul.f32 %v1212, %v1184
      %v1215 = vmul.f32 %v1213, 1.442695
      %v1216 = vpow.pop %v1215
      %v1217 = vmul.f32 %v1214, 1.442695
      %v1218 = vpow.pop %v1217
      %v1219 = vmul.f32 %v1209, %v1216
      %v1220 = vmul.f32 %v1210, %v1218
      %v1221 = vsub.f32 1.0, %v1219
      %v1222 = vsub.f32 1.0, %v1220
      %v1223 = vmul.f32 %v1181, %v1221
      %v1224 = vmul.f32 %v1182, %v1222
      %v1225 = vadd.f32 %v1223, 1.0
      %v1226 = vadd.f32 %v1224, 1.0
      %v1227 = vmul.f32 %v1225, 0.5
      %v1228 = vmul.f32 %v1226, 0.5
      %v1229 = vsub.f32 %v1171, %v1227
      %v1230 = vsub.f32 %v1172, %v1228
      %v1231 = vand.u32 2147483647, %v1229
      %v1232 = vand.u32 2147483647, %v1230
      %v1233 = vadd.f32 %v1231, 1e-10
      %v1234 = vadd.f32 %v1232, 1e-10
      %v1235 = vlog2.pop %v1233
      %v1236 = vmul.f32 %v1235, 0.6931472
      %v1237 = vlog2.pop %v1234
      %v1238 = vmul.f32 %v1237, 0.6931472
      %v1239 = vsub.f32 0.0, %v1236
      %v1240 = vsub.f32 0.0, %v1238
      %v1241 = vmul.f32 %v1239, 1.442695
      %v1242 = vmul.f32 %v1240, 1.442695
      %vm1243 = vcmask 261120
      %v1244 = vsel %vm1243, %v1241, 0.0
      %1245 = vadd.xlane.f32.xlu0 %v1244
      %v1246 = vpop.xlane.xlu0 %1245
      %v1247 = vsel %vm1243, %v1242, 0.0
      %1248 = vadd.xlane.f32.xlu0 %v1247
      %v1249 = vpop.xlane.xlu0 %1248
      %vm1250 = vcmask 7168
      %1251 = vst.msk [vmem:[%s653] sm:$0xff] %vm1250, %v1246
      %1252 = vst.msk [vmem:[%s653 + $0x8] sm:$0xff] %vm1250, %v1249
      %v1253 = vld [vmem:[%s629] sm:$0xff]
      %v1254 = vld [vmem:[%s629 + $0x8] sm:$0xff]
      %v1255 = vmul.f32 %v1253, 1.442695
      %v1256 = vpow.pop %v1255
      %v1257 = vmul.f32 %v1254, 1.442695
      %v1258 = vpow.pop %v1257
      %v1259 = vld [vmem:[%s9] sm:$0xff]
      %v1260 = vld [vmem:[%s9 + $0x8] sm:$0xff]
      %v1261 = vld [vmem:[%s9 + $0x10] sm:$0xff]
      %v1262 = vld [vmem:[%s9 + $0x18] sm:$0xff]
      %v1263 = vld [vmem:[%s9 + $0x20] sm:$0xff]
      %v1264 = vld [vmem:[%s9 + $0x28] sm:$0xff]
      %v1265 = vld [vmem:[%s9 + $0x30] sm:$0xff]
      %v1266 = vld [vmem:[%s9 + $0x38] sm:$0xff]
      %v1267 = vld [vmem:[%s9 + $0x40] sm:$0xff]
      %v1268 = vld [vmem:[%s9 + $0x48] sm:$0xff]
      %v1269 = vld [vmem:[%s9 + $0x50] sm:$0xff]
      %v1270 = vld [vmem:[%s9 + $0x58] sm:$0xff]
      %v1271 = vld [vmem:[%s9 + $0x60] sm:$0xff]
      %v1272 = vld [vmem:[%s9 + $0x68] sm:$0xff]
      %v1273 = vld [vmem:[%s9 + $0x70] sm:$0xff]
      %v1274 = vld [vmem:[%s9 + $0x78] sm:$0xff]
      %v1275 = vld [vmem:[%s9 + $0x80] sm:$0xff]
      %v1276 = vld [vmem:[%s9 + $0x88] sm:$0xff]
      %v1277 = vld [vmem:[%s9 + $0x90] sm:$0xff]
      %v1278 = vld [vmem:[%s9 + $0x98] sm:$0xff]
      %v1279 = vld [vmem:[%s9 + $0xa0] sm:$0xff]
      %v1280 = vld [vmem:[%s9 + $0xa8] sm:$0xff]
      %v1281 = vld [vmem:[%s9 + $0xb0] sm:$0xff]
      %v1282 = vld [vmem:[%s9 + $0xb8] sm:$0xff]
      %v1283 = vld [vmem:[%s10] sm:$0xff]
      %v1284 = vld [vmem:[%s10 + $0x8] sm:$0xff]
      %v1285 = vld [vmem:[%s10 + $0x10] sm:$0xff]
      %v1286 = vld [vmem:[%s10 + $0x18] sm:$0xff]
      %v1287 = vld [vmem:[%s10 + $0x20] sm:$0xff]
      %v1288 = vld [vmem:[%s10 + $0x28] sm:$0xff]
      %v1289 = vld [vmem:[%s10 + $0x30] sm:$0xff]
      %v1290 = vld [vmem:[%s10 + $0x38] sm:$0xff]
      %v1291 = vld [vmem:[%s10 + $0x40] sm:$0xff]
      %v1292 = vld [vmem:[%s10 + $0x48] sm:$0xff]
      %v1293 = vld [vmem:[%s10 + $0x50] sm:$0xff]
      %v1294 = vld [vmem:[%s10 + $0x58] sm:$0xff]
      %vm1295 = vcmask 130048
      %v1297 = vsel %vm1295, %v1256, 0
      %v1300 = vsel %vm1295, %v1258, 0
      %1302 = vmatprep.subr.mxu0 %v1284
      %1303 = vmatpush1.msra.mxu0 %v1283
      %1304 = vmatprep.subr.mxu0 %v1290
      %1305 = vmatpush1.msra.mxu0 %v1289
      %1306 = vmatprep.subr.mxu0 0.0
      %1307 = vmatpush1.msra.mxu0 0.0
      %1308 = vmatprep.subr.mxu0 0.0
      %1309 = vmatpush1.msra.mxu0 0.0
      %1310 = vmatprep.subr.mxu0 0.0
      %1311 = vmatpush1.msra.mxu0 0.0
      %1312 = vmatprep.subr.mxu0 0.0
      %1313 = vmatpush1.msra.mxu0 0.0
      %1314 = vmatprep.subr.mxu0 0.0
      %1315 = vmatpush1.msra.mxu0 0.0
      %1316 = vmatprep.subr.mxu0 0.0
      %1317 = vmatpush1.msra.mxu0 0.0
      %1318 = vmatprep.subr.mxu0 0.0
      %1319 = vmatpush1.msra.mxu0 0.0
      %1320 = vmatprep.subr.mxu0 0.0
      %1321 = vmatpush1.msra.mxu0 0.0
      %1322 = vmatprep.subr.mxu0 0.0
      %1323 = vmatpush1.msra.mxu0 0.0
      %1324 = vmatprep.subr.mxu0 0.0
      %1325 = vmatpush1.msra.mxu0 0.0
      %1326 = vmatprep.subr.mxu0 0.0
      %1327 = vmatpush1.msra.mxu0 0.0
      %1328 = vmatprep.subr.mxu0 0.0
      %1329 = vmatpush1.msra.mxu0 0.0
      %1330 = vmatprep.subr.mxu0 0.0
      %1331 = vmatpush1.msra.mxu0 0.0
      %1332 = vmatprep.subr.mxu0 0.0
      %1333 = vmatpush1.msra.mxu0 0.0
      %1334 = vmatprep.subr.mxu0 0.0
      %1335 = vmatpush1.msra.mxu0 0.0
      %1336 = vmatprep.subr.mxu0 0.0
      %1337 = vmatpush1.msra.mxu0 0.0
      %1338 = vmatprep.subr.mxu0 0.0
      %1339 = vmatpush1.msra.mxu0 0.0
      %1340 = vmatprep.subr.mxu0 0.0
      %1341 = vmatpush1.msra.mxu0 0.0
      %1342 = vmatprep.subr.mxu0 0.0
      %1343 = vmatpush1.msra.mxu0 0.0
      %1344 = vmatprep.subr.mxu0 0.0
      %1345 = vmatpush1.msra.mxu0 0.0
      %1346 = vmatprep.subr.mxu0 0.0
      %1347 = vmatpush1.msra.mxu0 0.0
      %1348 = vmatprep.subr.mxu0 0.0
      %1349 = vmatpush1.msra.mxu0 0.0
      %1350 = vmatprep.subr.mxu0 0.0
      %1351 = vmatpush1.msra.mxu0 0.0
      %1352 = vmatprep.subr.mxu0 0.0
      %1353 = vmatpush1.msra.mxu0 0.0
      %1354 = vmatprep.subr.mxu0 0.0
      %1355 = vmatpush1.msra.mxu0 0.0
      %1356 = vmatprep.subr.mxu0 0.0
      %1357 = vmatpush1.msra.mxu0 0.0
      %1358 = vmatprep.subr.mxu0 0.0
      %1359 = vmatpush1.msra.mxu0 0.0
      %1360 = vmatprep.subr.mxu0 0.0
      %1361 = vmatpush1.msra.mxu0 0.0
      %1362 = vmatprep.subr.mxu0 0.0
      %1363 = vmatpush1.msra.mxu0 0.0
      %1364 = vmatprep.subr.mxu0 0.0
      %1365 = vmatpush1.msra.mxu0 0.0
      %1366 = vmatprep.mubr.f32.mxu0 0.0
      %1367 = vmatmul.mubr.f32.gmra.mrb[0].mxu0 %v1297
      %v1368 = vpop.f32.mrb[0].mxu0
      %v1369 = vadd.f32 0.0, %v1368
      %v1370 = vpop.f32.mrb[0].mxu0
      %v1371 = vadd.f32 0.0, %v1370
      %1372 = vmatprep.mubr.f32.mxu0 0.0
      %1373 = vmatmul.mubr.f32.gmra.mrb[0].mxu0 %v1300
      %v1374 = vpop.f32.mrb[0].mxu0
      %v1375 = vadd.f32 0.0, %v1374
      %v1376 = vpop.f32.mrb[0].mxu0
      %v1377 = vadd.f32 0.0, %v1376
      %1378 = vdwg.mxu0
      %1379 = vmatprep.subr.mxu0 %v1286
      %1380 = vmatpush1.msra.mxu0 %v1285
      %1381 = vmatprep.subr.mxu0 %v1292
      %1382 = vmatpush1.msra.mxu0 %v1291
      %1383 = vmatprep.subr.mxu0 0.0
      %1384 = vmatpush1.msra.mxu0 0.0
      %1385 = vmatprep.subr.mxu0 0.0
      %1386 = vmatpush1.msra.mxu0 0.0
      %1387 = vmatprep.subr.mxu0 0.0
      %1388 = vmatpush1.msra.mxu0 0.0
      %1389 = vmatprep.subr.mxu0 0.0
      %1390 = vmatpush1.msra.mxu0 0.0
      %1391 = vmatprep.subr.mxu0 0.0
      %1392 = vmatpush1.msra.mxu0 0.0
      %1393 = vmatprep.subr.mxu0 0.0
      %1394 = vmatpush1.msra.mxu0 0.0
      %1395 = vmatprep.subr.mxu0 0.0
      %1396 = vmatpush1.msra.mxu0 0.0
      %1397 = vmatprep.subr.mxu0 0.0
      %1398 = vmatpush1.msra.mxu0 0.0
      %1399 = vmatprep.subr.mxu0 0.0
      %1400 = vmatpush1.msra.mxu0 0.0
      %1401 = vmatprep.subr.mxu0 0.0
      %1402 = vmatpush1.msra.mxu0 0.0
      %1403 = vmatprep.subr.mxu0 0.0
      %1404 = vmatpush1.msra.mxu0 0.0
      %1405 = vmatprep.subr.mxu0 0.0
      %1406 = vmatpush1.msra.mxu0 0.0
      %1407 = vmatprep.subr.mxu0 0.0
      %1408 = vmatpush1.msra.mxu0 0.0
      %1409 = vmatprep.subr.mxu0 0.0
      %1410 = vmatpush1.msra.mxu0 0.0
      %1411 = vmatprep.subr.mxu0 0.0
      %1412 = vmatpush1.msra.mxu0 0.0
      %1413 = vmatprep.subr.mxu0 0.0
      %1414 = vmatpush1.msra.mxu0 0.0
      %1415 = vmatprep.subr.mxu0 0.0
      %1416 = vmatpush1.msra.mxu0 0.0
      %1417 = vmatprep.subr.mxu0 0.0
      %1418 = vmatpush1.msra.mxu0 0.0
      %1419 = vmatprep.subr.mxu0 0.0
      %1420 = vmatpush1.msra.mxu0 0.0
      %1421 = vmatprep.subr.mxu0 0.0
      %1422 = vmatpush1.msra.mxu0 0.0
      %1423 = vmatprep.subr.mxu0 0.0
      %1424 = vmatpush1.msra.mxu0 0.0
      %1425 = vmatprep.subr.mxu0 0.0
      %1426 = vmatpush1.msra.mxu0 0.0
      %1427 = vmatprep.subr.mxu0 0.0
      %1428 = vmatpush1.msra.mxu0 0.0
      %1429 = vmatprep.subr.mxu0 0.0
      %1430 = vmatpush1.msra.mxu0 0.0
      %1431 = vmatprep.subr.mxu0 0.0
      %1432 = vmatpush1.msra.mxu0 0.0
      %1433 = vmatprep.subr.mxu0 0.0
      %1434 = vmatpush1.msra.mxu0 0.0
      %1435 = vmatprep.subr.mxu0 0.0
      %1436 = vmatpush1.msra.mxu0 0.0
      %1437 = vmatprep.subr.mxu0 0.0
      %1438 = vmatpush1.msra.mxu0 0.0
      %1439 = vmatprep.subr.mxu0 0.0
      %1440 = vmatpush1.msra.mxu0 0.0
      %1441 = vmatprep.subr.mxu0 0.0
      %1442 = vmatpush1.msra.mxu0 0.0
      %1443 = vmatprep.mubr.f32.mxu0 0.0
      %1444 = vmatmul.mubr.f32.gmra.mrb[0].mxu0 %v1297
      %v1445 = vpop.f32.mrb[0].mxu0
      %v1446 = vadd.f32 0.0, %v1445
      %v1447 = vpop.f32.mrb[0].mxu0
      %v1448 = vadd.f32 0.0, %v1447
      %1449 = vmatprep.mubr.f32.mxu0 0.0
      %1450 = vmatmul.mubr.f32.gmra.mrb[0].mxu0 %v1300
      %v1451 = vpop.f32.mrb[0].mxu0
      %v1452 = vadd.f32 0.0, %v1451
      %v1453 = vpop.f32.mrb[0].mxu0
      %v1454 = vadd.f32 0.0, %v1453
      %1455 = vdwg.mxu0
      %1456 = vmatprep.subr.mxu0 %v1288
      %1457 = vmatpush1.msra.mxu0 %v1287
      %1458 = vmatprep.subr.mxu0 %v1294
      %1459 = vmatpush1.msra.mxu0 %v1293
      %1460 = vmatprep.subr.mxu0 0.0
      %1461 = vmatpush1.msra.mxu0 0.0
      %1462 = vmatprep.subr.mxu0 0.0
      %1463 = vmatpush1.msra.mxu0 0.0
      %1464 = vmatprep.subr.mxu0 0.0
      %1465 = vmatpush1.msra.mxu0 0.0
      %1466 = vmatprep.subr.mxu0 0.0
      %1467 = vmatpush1.msra.mxu0 0.0
      %1468 = vmatprep.subr.mxu0 0.0
      %1469 = vmatpush1.msra.mxu0 0.0
      %1470 = vmatprep.subr.mxu0 0.0
      %1471 = vmatpush1.msra.mxu0 0.0
      %1472 = vmatprep.subr.mxu0 0.0
      %1473 = vmatpush1.msra.mxu0 0.0
      %1474 = vmatprep.subr.mxu0 0.0
      %1475 = vmatpush1.msra.mxu0 0.0
      %1476 = vmatprep.subr.mxu0 0.0
      %1477 = vmatpush1.msra.mxu0 0.0
      %1478 = vmatprep.subr.mxu0 0.0
      %1479 = vmatpush1.msra.mxu0 0.0
      %1480 = vmatprep.subr.mxu0 0.0
      %1481 = vmatpush1.msra.mxu0 0.0
      %1482 = vmatprep.subr.mxu0 0.0
      %1483 = vmatpush1.msra.mxu0 0.0
      %1484 = vmatprep.subr.mxu0 0.0
      %1485 = vmatpush1.msra.mxu0 0.0
      %1486 = vmatprep.subr.mxu0 0.0
      %1487 = vmatpush1.msra.mxu0 0.0
      %1488 = vmatprep.subr.mxu0 0.0
      %1489 = vmatpush1.msra.mxu0 0.0
      %1490 = vmatprep.subr.mxu0 0.0
      %1491 = vmatpush1.msra.mxu0 0.0
      %1492 = vmatprep.subr.mxu0 0.0
      %1493 = vmatpush1.msra.mxu0 0.0
      %1494 = vmatprep.subr.mxu0 0.0
      %1495 = vmatpush1.msra.mxu0 0.0
      %1496 = vmatprep.subr.mxu0 0.0
      %1497 = vmatpush1.msra.mxu0 0.0
      %1498 = vmatprep.subr.mxu0 0.0
      %1499 = vmatpush1.msra.mxu0 0.0
      %1500 = vmatprep.subr.mxu0 0.0
      %1501 = vmatpush1.msra.mxu0 0.0
      %1502 = vmatprep.subr.mxu0 0.0
      %1503 = vmatpush1.msra.mxu0 0.0
      %1504 = vmatprep.subr.mxu0 0.0
      %1505 = vmatpush1.msra.mxu0 0.0
      %1506 = vmatprep.subr.mxu0 0.0
      %1507 = vmatpush1.msra.mxu0 0.0
      %1508 = vmatprep.subr.mxu0 0.0
      %1509 = vmatpush1.msra.mxu0 0.0
      %1510 = vmatprep.subr.mxu0 0.0
      %1511 = vmatpush1.msra.mxu0 0.0
      %1512 = vmatprep.subr.mxu0 0.0
      %1513 = vmatpush1.msra.mxu0 0.0
      %1514 = vmatprep.subr.mxu0 0.0
      %1515 = vmatpush1.msra.mxu0 0.0
      %1516 = vmatprep.subr.mxu0 0.0
      %1517 = vmatpush1.msra.mxu0 0.0
      %1518 = vmatprep.subr.mxu0 0.0
      %1519 = vmatpush1.msra.mxu0 0.0
      %1520 = vmatprep.mubr.f32.mxu0 0.0
      %1521 = vmatmul.mubr.f32.gmra.mrb[0].mxu0 %v1297
      %v1522 = vpop.f32.mrb[0].mxu0
      %v1523 = vadd.f32 0.0, %v1522
      %v1524 = vpop.f32.mrb[0].mxu0
      %v1525 = vadd.f32 0.0, %v1524
      %1526 = vmatprep.mubr.f32.mxu0 0.0
      %1527 = vmatmul.mubr.f32.gmra.mrb[0].mxu0 %v1300
      %v1528 = vpop.f32.mrb[0].mxu0
      %v1529 = vadd.f32 0.0, %v1528
      %v1530 = vpop.f32.mrb[0].mxu0
      %v1531 = vadd.f32 0.0, %v1530
      %1532 = vdwg.mxu0
      %v1534 = vsel %vm1243, %v1101, 0
      %v1537 = vsel %vm1243, %v1102, 0
      %1539 = vmatprep.subr.mxu0 %v1260
      %1540 = vmatpush1.msra.mxu0 %v1259
      %1541 = vmatprep.subr.mxu0 %v1266
      %1542 = vmatpush1.msra.mxu0 %v1265
      %1543 = vmatprep.subr.mxu0 %v1272
      %1544 = vmatpush1.msra.mxu0 %v1271
      %1545 = vmatprep.subr.mxu0 %v1278
      %1546 = vmatpush1.msra.mxu0 %v1277
      %1547 = vmatprep.subr.mxu0 0.0
      %1548 = vmatpush1.msra.mxu0 0.0
      %1549 = vmatprep.subr.mxu0 0.0
      %1550 = vmatpush1.msra.mxu0 0.0
      %1551 = vmatprep.subr.mxu0 0.0
      %1552 = vmatpush1.msra.mxu0 0.0
      %1553 = vmatprep.subr.mxu0 0.0
      %1554 = vmatpush1.msra.mxu0 0.0
      %1555 = vmatprep.subr.mxu0 0.0
      %1556 = vmatpush1.msra.mxu0 0.0
      %1557 = vmatprep.subr.mxu0 0.0
      %1558 = vmatpush1.msra.mxu0 0.0
      %1559 = vmatprep.subr.mxu0 0.0
      %1560 = vmatpush1.msra.mxu0 0.0
      %1561 = vmatprep.subr.mxu0 0.0
      %1562 = vmatpush1.msra.mxu0 0.0
      %1563 = vmatprep.subr.mxu0 0.0
      %1564 = vmatpush1.msra.mxu0 0.0
      %1565 = vmatprep.subr.mxu0 0.0
      %1566 = vmatpush1.msra.mxu0 0.0
      %1567 = vmatprep.subr.mxu0 0.0
      %1568 = vmatpush1.msra.mxu0 0.0
      %1569 = vmatprep.subr.mxu0 0.0
      %1570 = vmatpush1.msra.mxu0 0.0
      %1571 = vmatprep.subr.mxu0 0.0
      %1572 = vmatpush1.msra.mxu0 0.0
      %1573 = vmatprep.subr.mxu0 0.0
      %1574 = vmatpush1.msra.mxu0 0.0
      %1575 = vmatprep.subr.mxu0 0.0
      %1576 = vmatpush1.msra.mxu0 0.0
      %1577 = vmatprep.subr.mxu0 0.0
      %1578 = vmatpush1.msra.mxu0 0.0
      %1579 = vmatprep.subr.mxu0 0.0
      %1580 = vmatpush1.msra.mxu0 0.0
      %1581 = vmatprep.subr.mxu0 0.0
      %1582 = vmatpush1.msra.mxu0 0.0
      %1583 = vmatprep.subr.mxu0 0.0
      %1584 = vmatpush1.msra.mxu0 0.0
      %1585 = vmatprep.subr.mxu0 0.0
      %1586 = vmatpush1.msra.mxu0 0.0
      %1587 = vmatprep.subr.mxu0 0.0
      %1588 = vmatpush1.msra.mxu0 0.0
      %1589 = vmatprep.subr.mxu0 0.0
      %1590 = vmatpush1.msra.mxu0 0.0
      %1591 = vmatprep.subr.mxu0 0.0
      %1592 = vmatpush1.msra.mxu0 0.0
      %1593 = vmatprep.subr.mxu0 0.0
      %1594 = vmatpush1.msra.mxu0 0.0
      %1595 = vmatprep.subr.mxu0 0.0
      %1596 = vmatpush1.msra.mxu0 0.0
      %1597 = vmatprep.subr.mxu0 0.0
      %1598 = vmatpush1.msra.mxu0 0.0
      %1599 = vmatprep.subr.mxu0 0.0
      %1600 = vmatpush1.msra.mxu0 0.0
      %1601 = vmatprep.subr.mxu0 0.0
      %1602 = vmatpush1.msra.mxu0 0.0
      %1603 = vmatprep.mubr.f32.mxu0 0.0
      %1604 = vmatmul.mubr.f32.gmra.mrb[0].mxu0 %v1534
      %v1605 = vpop.f32.mrb[0].mxu0
      %v1606 = vadd.f32 %v1369, %v1605
      %v1607 = vpop.f32.mrb[0].mxu0
      %v1608 = vadd.f32 %v1371, %v1607
      %1609 = vmatprep.mubr.f32.mxu0 0.0
      %1610 = vmatmul.mubr.f32.gmra.mrb[0].mxu0 %v1537
      %v1611 = vpop.f32.mrb[0].mxu0
      %v1612 = vadd.f32 %v1375, %v1611
      %v1613 = vpop.f32.mrb[0].mxu0
      %v1614 = vadd.f32 %v1377, %v1613
      %1615 = vdwg.mxu0
      %1616 = vmatprep.subr.mxu0 %v1262
      %1617 = vmatpush1.msra.mxu0 %v1261
      %1618 = vmatprep.subr.mxu0 %v1268
      %1619 = vmatpush1.msra.mxu0 %v1267
      %1620 = vmatprep.subr.mxu0 %v1274
      %1621 = vmatpush1.msra.mxu0 %v1273
      %1622 = vmatprep.subr.mxu0 %v1280
      %1623 = vmatpush1.msra.mxu0 %v1279
      %1624 = vmatprep.subr.mxu0 0.0
      %1625 = vmatpush1.msra.mxu0 0.0
      %1626 = vmatprep.subr.mxu0 0.0
      %1627 = vmatpush1.msra.mxu0 0.0
      %1628 = vmatprep.subr.mxu0 0.0
      %1629 = vmatpush1.msra.mxu0 0.0
      %1630 = vmatprep.subr.mxu0 0.0
      %1631 = vmatpush1.msra.mxu0 0.0
      %1632 = vmatprep.subr.mxu0 0.0
      %1633 = vmatpush1.msra.mxu0 0.0
      %1634 = vmatprep.subr.mxu0 0.0
      %1635 = vmatpush1.msra.mxu0 0.0
      %1636 = vmatprep.subr.mxu0 0.0
      %1637 = vmatpush1.msra.mxu0 0.0
      %1638 = vmatprep.subr.mxu0 0.0
      %1639 = vmatpush1.msra.mxu0 0.0
      %1640 = vmatprep.subr.mxu0 0.0
      %1641 = vmatpush1.msra.mxu0 0.0
      %1642 = vmatprep.subr.mxu0 0.0
      %1643 = vmatpush1.msra.mxu0 0.0
      %1644 = vmatprep.subr.mxu0 0.0
      %1645 = vmatpush1.msra.mxu0 0.0
      %1646 = vmatprep.subr.mxu0 0.0
      %1647 = vmatpush1.msra.mxu0 0.0
      %1648 = vmatprep.subr.mxu0 0.0
      %1649 = vmatpush1.msra.mxu0 0.0
      %1650 = vmatprep.subr.mxu0 0.0
      %1651 = vmatpush1.msra.mxu0 0.0
      %1652 = vmatprep.subr.mxu0 0.0
      %1653 = vmatpush1.msra.mxu0 0.0
      %1654 = vmatprep.subr.mxu0 0.0
      %1655 = vmatpush1.msra.mxu0 0.0
      %1656 = vmatprep.subr.mxu0 0.0
      %1657 = vmatpush1.msra.mxu0 0.0
      %1658 = vmatprep.subr.mxu0 0.0
      %1659 = vmatpush1.msra.mxu0 0.0
      %1660 = vmatprep.subr.mxu0 0.0
      %1661 = vmatpush1.msra.mxu0 0.0
      %1662 = vmatprep.subr.mxu0 0.0
      %1663 = vmatpush1.msra.mxu0 0.0
      %1664 = vmatprep.subr.mxu0 0.0
      %1665 = vmatpush1.msra.mxu0 0.0
      %1666 = vmatprep.subr.mxu0 0.0
      %1667 = vmatpush1.msra.mxu0 0.0
      %1668 = vmatprep.subr.mxu0 0.0
      %1669 = vmatpush1.msra.mxu0 0.0
      %1670 = vmatprep.subr.mxu0 0.0
      %1671 = vmatpush1.msra.mxu0 0.0
      %1672 = vmatprep.subr.mxu0 0.0
      %1673 = vmatpush1.msra.mxu0 0.0
      %1674 = vmatprep.subr.mxu0 0.0
      %1675 = vmatpush1.msra.mxu0 0.0
      %1676 = vmatprep.subr.mxu0 0.0
      %1677 = vmatpush1.msra.mxu0 0.0
      %1678 = vmatprep.subr.mxu0 0.0
      %1679 = vmatpush1.msra.mxu0 0.0
      %1680 = vmatprep.mubr.f32.mxu0 0.0
      %1681 = vmatmul.mubr.f32.gmra.mrb[0].mxu0 %v1534
      %v1682 = vpop.f32.mrb[0].mxu0
      %v1683 = vadd.f32 %v1446, %v1682
      %v1684 = vpop.f32.mrb[0].mxu0
      %v1685 = vadd.f32 %v1448, %v1684
      %1686 = vmatprep.mubr.f32.mxu0 0.0
      %1687 = vmatmul.mubr.f32.gmra.mrb[0].mxu0 %v1537
      %v1688 = vpop.f32.mrb[0].mxu0
      %v1689 = vadd.f32 %v1452, %v1688
      %v1690 = vpop.f32.mrb[0].mxu0
      %v1691 = vadd.f32 %v1454, %v1690
      %1692 = vdwg.mxu0
      %1693 = vmatprep.subr.mxu0 %v1264
      %1694 = vmatpush1.msra.mxu0 %v1263
      %1695 = vmatprep.subr.mxu0 %v1270
      %1696 = vmatpush1.msra.mxu0 %v1269
      %1697 = vmatprep.subr.mxu0 %v1276
      %1698 = vmatpush1.msra.mxu0 %v1275
      %1699 = vmatprep.subr.mxu0 %v1282
      %1700 = vmatpush1.msra.mxu0 %v1281
      %1701 = vmatprep.subr.mxu0 0.0
      %1702 = vmatpush1.msra.mxu0 0.0
      %1703 = vmatprep.subr.mxu0 0.0
      %1704 = vmatpush1.msra.mxu0 0.0
      %1705 = vmatprep.subr.mxu0 0.0
      %1706 = vmatpush1.msra.mxu0 0.0
      %1707 = vmatprep.subr.mxu0 0.0
      %1708 = vmatpush1.msra.mxu0 0.0
      %1709 = vmatprep.subr.mxu0 0.0
      %1710 = vmatpush1.msra.mxu0 0.0
      %1711 = vmatprep.subr.mxu0 0.0
      %1712 = vmatpush1.msra.mxu0 0.0
      %1713 = vmatprep.subr.mxu0 0.0
      %1714 = vmatpush1.msra.mxu0 0.0
      %1715 = vmatprep.subr.mxu0 0.0
      %1716 = vmatpush1.msra.mxu0 0.0
      %1717 = vmatprep.subr.mxu0 0.0
      %1718 = vmatpush1.msra.mxu0 0.0
      %1719 = vmatprep.subr.mxu0 0.0
      %1720 = vmatpush1.msra.mxu0 0.0
      %1721 = vmatprep.subr.mxu0 0.0
      %1722 = vmatpush1.msra.mxu0 0.0
      %1723 = vmatprep.subr.mxu0 0.0
      %1724 = vmatpush1.msra.mxu0 0.0
      %1725 = vmatprep.subr.mxu0 0.0
      %1726 = vmatpush1.msra.mxu0 0.0
      %1727 = vmatprep.subr.mxu0 0.0
      %1728 = vmatpush1.msra.mxu0 0.0
      %1729 = vmatprep.subr.mxu0 0.0
      %1730 = vmatpush1.msra.mxu0 0.0
      %1731 = vmatprep.subr.mxu0 0.0
      %1732 = vmatpush1.msra.mxu0 0.0
      %1733 = vmatprep.subr.mxu0 0.0
      %1734 = vmatpush1.msra.mxu0 0.0
      %1735 = vmatprep.subr.mxu0 0.0
      %1736 = vmatpush1.msra.mxu0 0.0
      %1737 = vmatprep.subr.mxu0 0.0
      %1738 = vmatpush1.msra.mxu0 0.0
      %1739 = vmatprep.subr.mxu0 0.0
      %1740 = vmatpush1.msra.mxu0 0.0
      %1741 = vmatprep.subr.mxu0 0.0
      %1742 = vmatpush1.msra.mxu0 0.0
      %1743 = vmatprep.subr.mxu0 0.0
      %1744 = vmatpush1.msra.mxu0 0.0
      %1745 = vmatprep.subr.mxu0 0.0
      %1746 = vmatpush1.msra.mxu0 0.0
      %1747 = vmatprep.subr.mxu0 0.0
      %1748 = vmatpush1.msra.mxu0 0.0
      %1749 = vmatprep.subr.mxu0 0.0
      %1750 = vmatpush1.msra.mxu0 0.0
      %1751 = vmatprep.subr.mxu0 0.0
      %1752 = vmatpush1.msra.mxu0 0.0
      %1753 = vmatprep.subr.mxu0 0.0
      %1754 = vmatpush1.msra.mxu0 0.0
      %1755 = vmatprep.subr.mxu0 0.0
      %1756 = vmatpush1.msra.mxu0 0.0
      %1757 = vmatprep.mubr.f32.mxu0 0.0
      %1758 = vmatmul.mubr.f32.gmra.mrb[0].mxu0 %v1534
      %v1759 = vpop.f32.mrb[0].mxu0
      %v1760 = vadd.f32 %v1523, %v1759
      %v1761 = vpop.f32.mrb[0].mxu0
      %v1762 = vadd.f32 %v1525, %v1761
      %1763 = vmatprep.mubr.f32.mxu0 0.0
      %1764 = vmatmul.mubr.f32.gmra.mrb[0].mxu0 %v1537
      %v1765 = vpop.f32.mrb[0].mxu0
      %v1766 = vadd.f32 %v1529, %v1765
      %v1767 = vpop.f32.mrb[0].mxu0
      %v1768 = vadd.f32 %v1531, %v1767
      %1769 = vdwg.mxu0
      %v1770 = vld [vmem:[%s11] sm:$0xff]
      %v1771 = vld [vmem:[%s11 + $0x8] sm:$0xff]
      %v1772 = vld [vmem:[%s11 + $0x10] sm:$0xff]
      %v1773 = vld [vmem:[%s11 + $0x18] sm:$0xff]
      %v1774 = vld [vmem:[%s11 + $0x20] sm:$0xff]
      %v1775 = vld [vmem:[%s11 + $0x28] sm:$0xff]
      %v1776 = vld [vmem:[%s11 + $0x30] sm:$0xff]
      %v1777 = vld [vmem:[%s11 + $0x38] sm:$0xff]
      %v1778 = vld [vmem:[%s11 + $0x40] sm:$0xff]
      %v1779 = vld [vmem:[%s11 + $0x48] sm:$0xff]
      %v1780 = vld [vmem:[%s11 + $0x50] sm:$0xff]
      %v1781 = vld [vmem:[%s11 + $0x58] sm:$0xff]
      %v1782 = vld [vmem:[%s11 + $0x60] sm:$0xff]
      %v1783 = vld [vmem:[%s11 + $0x68] sm:$0xff]
      %v1784 = vld [vmem:[%s11 + $0x70] sm:$0xff]
      %v1785 = vld [vmem:[%s11 + $0x78] sm:$0xff]
      %v1786 = vld [vmem:[%s11 + $0x80] sm:$0xff]
      %v1787 = vld [vmem:[%s11 + $0x88] sm:$0xff]
      %v1788 = vld [vmem:[%s11 + $0x90] sm:$0xff]
      %v1789 = vld [vmem:[%s11 + $0x98] sm:$0xff]
      %v1790 = vld [vmem:[%s11 + $0xa0] sm:$0xff]
      %v1791 = vld [vmem:[%s11 + $0xa8] sm:$0xff]
      %v1792 = vld [vmem:[%s11 + $0xb0] sm:$0xff]
      %v1793 = vld [vmem:[%s11 + $0xb8] sm:$0xff]
      %v1795 = vsel %vm1243, %v1095, 0
      %v1798 = vsel %vm1243, %v1096, 0
      %1800 = vmatprep.subr.mxu0 %v1771
      %1801 = vmatpush1.msra.mxu0 %v1770
      %1802 = vmatprep.subr.mxu0 %v1777
      %1803 = vmatpush1.msra.mxu0 %v1776
      %1804 = vmatprep.subr.mxu0 %v1783
      %1805 = vmatpush1.msra.mxu0 %v1782
      %1806 = vmatprep.subr.mxu0 %v1789
      %1807 = vmatpush1.msra.mxu0 %v1788
      %1808 = vmatprep.subr.mxu0 0.0
      %1809 = vmatpush1.msra.mxu0 0.0
      %1810 = vmatprep.subr.mxu0 0.0
      %1811 = vmatpush1.msra.mxu0 0.0
      %1812 = vmatprep.subr.mxu0 0.0
      %1813 = vmatpush1.msra.mxu0 0.0
      %1814 = vmatprep.subr.mxu0 0.0
      %1815 = vmatpush1.msra.mxu0 0.0
      %1816 = vmatprep.subr.mxu0 0.0
      %1817 = vmatpush1.msra.mxu0 0.0
      %1818 = vmatprep.subr.mxu0 0.0
      %1819 = vmatpush1.msra.mxu0 0.0
      %1820 = vmatprep.subr.mxu0 0.0
      %1821 = vmatpush1.msra.mxu0 0.0
      %1822 = vmatprep.subr.mxu0 0.0
      %1823 = vmatpush1.msra.mxu0 0.0
      %1824 = vmatprep.subr.mxu0 0.0
      %1825 = vmatpush1.msra.mxu0 0.0
      %1826 = vmatprep.subr.mxu0 0.0
      %1827 = vmatpush1.msra.mxu0 0.0
      %1828 = vmatprep.subr.mxu0 0.0
      %1829 = vmatpush1.msra.mxu0 0.0
      %1830 = vmatprep.subr.mxu0 0.0
      %1831 = vmatpush1.msra.mxu0 0.0
      %1832 = vmatprep.subr.mxu0 0.0
      %1833 = vmatpush1.msra.mxu0 0.0
      %1834 = vmatprep.subr.mxu0 0.0
      %1835 = vmatpush1.msra.mxu0 0.0
      %1836 = vmatprep.subr.mxu0 0.0
      %1837 = vmatpush1.msra.mxu0 0.0
      %1838 = vmatprep.subr.mxu0 0.0
      %1839 = vmatpush1.msra.mxu0 0.0
      %1840 = vmatprep.subr.mxu0 0.0
      %1841 = vmatpush1.msra.mxu0 0.0
      %1842 = vmatprep.subr.mxu0 0.0
      %1843 = vmatpush1.msra.mxu0 0.0
      %1844 = vmatprep.subr.mxu0 0.0
      %1845 = vmatpush1.msra.mxu0 0.0
      %1846 = vmatprep.subr.mxu0 0.0
      %1847 = vmatpush1.msra.mxu0 0.0
      %1848 = vmatprep.subr.mxu0 0.0
      %1849 = vmatpush1.msra.mxu0 0.0
      %1850 = vmatprep.subr.mxu0 0.0
      %1851 = vmatpush1.msra.mxu0 0.0
      %1852 = vmatprep.subr.mxu0 0.0
      %1853 = vmatpush1.msra.mxu0 0.0
      %1854 = vmatprep.subr.mxu0 0.0
      %1855 = vmatpush1.msra.mxu0 0.0
      %1856 = vmatprep.subr.mxu0 0.0
      %1857 = vmatpush1.msra.mxu0 0.0
      %1858 = vmatprep.subr.mxu0 0.0
      %1859 = vmatpush1.msra.mxu0 0.0
      %1860 = vmatprep.subr.mxu0 0.0
      %1861 = vmatpush1.msra.mxu0 0.0
      %1862 = vmatprep.subr.mxu0 0.0
      %1863 = vmatpush1.msra.mxu0 0.0
      %1864 = vmatprep.mubr.f32.mxu0 0.0
      %1865 = vmatmul.mubr.f32.gmra.mrb[0].mxu0 %v1795
      %v1866 = vpop.f32.mrb[0].mxu0
      %v1867 = vadd.f32 0.0, %v1866
      %v1868 = vpop.f32.mrb[0].mxu0
      %v1869 = vadd.f32 0.0, %v1868
      %1870 = vmatprep.mubr.f32.mxu0 0.0
      %1871 = vmatmul.mubr.f32.gmra.mrb[0].mxu0 %v1798
      %v1872 = vpop.f32.mrb[0].mxu0
      %v1873 = vadd.f32 0.0, %v1872
      %v1874 = vpop.f32.mrb[0].mxu0
      %v1875 = vadd.f32 0.0, %v1874
      %1876 = vdwg.mxu0
      %1877 = vmatprep.subr.mxu0 %v1773
      %1878 = vmatpush1.msra.mxu0 %v1772
      %1879 = vmatprep.subr.mxu0 %v1779
      %1880 = vmatpush1.msra.mxu0 %v1778
      %1881 = vmatprep.subr.mxu0 %v1785
      %1882 = vmatpush1.msra.mxu0 %v1784
      %1883 = vmatprep.subr.mxu0 %v1791
      %1884 = vmatpush1.msra.mxu0 %v1790
      %1885 = vmatprep.subr.mxu0 0.0
      %1886 = vmatpush1.msra.mxu0 0.0
      %1887 = vmatprep.subr.mxu0 0.0
      %1888 = vmatpush1.msra.mxu0 0.0
      %1889 = vmatprep.subr.mxu0 0.0
      %1890 = vmatpush1.msra.mxu0 0.0
      %1891 = vmatprep.subr.mxu0 0.0
      %1892 = vmatpush1.msra.mxu0 0.0
      %1893 = vmatprep.subr.mxu0 0.0
      %1894 = vmatpush1.msra.mxu0 0.0
      %1895 = vmatprep.subr.mxu0 0.0
      %1896 = vmatpush1.msra.mxu0 0.0
      %1897 = vmatprep.subr.mxu0 0.0
      %1898 = vmatpush1.msra.mxu0 0.0
      %1899 = vmatprep.subr.mxu0 0.0
      %1900 = vmatpush1.msra.mxu0 0.0
      %1901 = vmatprep.subr.mxu0 0.0
      %1902 = vmatpush1.msra.mxu0 0.0
      %1903 = vmatprep.subr.mxu0 0.0
      %1904 = vmatpush1.msra.mxu0 0.0
      %1905 = vmatprep.subr.mxu0 0.0
      %1906 = vmatpush1.msra.mxu0 0.0
      %1907 = vmatprep.subr.mxu0 0.0
      %1908 = vmatpush1.msra.mxu0 0.0
      %1909 = vmatprep.subr.mxu0 0.0
      %1910 = vmatpush1.msra.mxu0 0.0
      %1911 = vmatprep.subr.mxu0 0.0
      %1912 = vmatpush1.msra.mxu0 0.0
      %1913 = vmatprep.subr.mxu0 0.0
      %1914 = vmatpush1.msra.mxu0 0.0
      %1915 = vmatprep.subr.mxu0 0.0
      %1916 = vmatpush1.msra.mxu0 0.0
      %1917 = vmatprep.subr.mxu0 0.0
      %1918 = vmatpush1.msra.mxu0 0.0
      %1919 = vmatprep.subr.mxu0 0.0
      %1920 = vmatpush1.msra.mxu0 0.0
      %1921 = vmatprep.subr.mxu0 0.0
      %1922 = vmatpush1.msra.mxu0 0.0
      %1923 = vmatprep.subr.mxu0 0.0
      %1924 = vmatpush1.msra.mxu0 0.0
      %1925 = vmatprep.subr.mxu0 0.0
      %1926 = vmatpush1.msra.mxu0 0.0
      %1927 = vmatprep.subr.mxu0 0.0
      %1928 = vmatpush1.msra.mxu0 0.0
      %1929 = vmatprep.subr.mxu0 0.0
      %1930 = vmatpush1.msra.mxu0 0.0
      %1931 = vmatprep.subr.mxu0 0.0
      %1932 = vmatpush1.msra.mxu0 0.0
      %1933 = vmatprep.subr.mxu0 0.0
      %1934 = vmatpush1.msra.mxu0 0.0
      %1935 = vmatprep.subr.mxu0 0.0
      %1936 = vmatpush1.msra.mxu0 0.0
      %1937 = vmatprep.subr.mxu0 0.0
      %1938 = vmatpush1.msra.mxu0 0.0
      %1939 = vmatprep.subr.mxu0 0.0
      %1940 = vmatpush1.msra.mxu0 0.0
      %1941 = vmatprep.mubr.f32.mxu0 0.0
      %1942 = vmatmul.mubr.f32.gmra.mrb[0].mxu0 %v1795
      %v1943 = vpop.f32.mrb[0].mxu0
      %v1944 = vadd.f32 0.0, %v1943
      %v1945 = vpop.f32.mrb[0].mxu0
      %v1946 = vadd.f32 0.0, %v1945
      %1947 = vmatprep.mubr.f32.mxu0 0.0
      %1948 = vmatmul.mubr.f32.gmra.mrb[0].mxu0 %v1798
      %v1949 = vpop.f32.mrb[0].mxu0
      %v1950 = vadd.f32 0.0, %v1949
      %v1951 = vpop.f32.mrb[0].mxu0
      %v1952 = vadd.f32 0.0, %v1951
      %1953 = vdwg.mxu0
      %1954 = vmatprep.subr.mxu0 %v1775
      %1955 = vmatpush1.msra.mxu0 %v1774
      %1956 = vmatprep.subr.mxu0 %v1781
      %1957 = vmatpush1.msra.mxu0 %v1780
      %1958 = vmatprep.subr.mxu0 %v1787
      %1959 = vmatpush1.msra.mxu0 %v1786
      %1960 = vmatprep.subr.mxu0 %v1793
      %1961 = vmatpush1.msra.mxu0 %v1792
      %1962 = vmatprep.subr.mxu0 0.0
      %1963 = vmatpush1.msra.mxu0 0.0
      %1964 = vmatprep.subr.mxu0 0.0
      %1965 = vmatpush1.msra.mxu0 0.0
      %1966 = vmatprep.subr.mxu0 0.0
      %1967 = vmatpush1.msra.mxu0 0.0
      %1968 = vmatprep.subr.mxu0 0.0
      %1969 = vmatpush1.msra.mxu0 0.0
      %1970 = vmatprep.subr.mxu0 0.0
      %1971 = vmatpush1.msra.mxu0 0.0
      %1972 = vmatprep.subr.mxu0 0.0
      %1973 = vmatpush1.msra.mxu0 0.0
      %1974 = vmatprep.subr.mxu0 0.0
      %1975 = vmatpush1.msra.mxu0 0.0
      %1976 = vmatprep.subr.mxu0 0.0
      %1977 = vmatpush1.msra.mxu0 0.0
      %1978 = vmatprep.subr.mxu0 0.0
      %1979 = vmatpush1.msra.mxu0 0.0
      %1980 = vmatprep.subr.mxu0 0.0
      %1981 = vmatpush1.msra.mxu0 0.0
      %1982 = vmatprep.subr.mxu0 0.0
      %1983 = vmatpush1.msra.mxu0 0.0
      %1984 = vmatprep.subr.mxu0 0.0
      %1985 = vmatpush1.msra.mxu0 0.0
      %1986 = vmatprep.subr.mxu0 0.0
      %1987 = vmatpush1.msra.mxu0 0.0
      %1988 = vmatprep.subr.mxu0 0.0
      %1989 = vmatpush1.msra.mxu0 0.0
      %1990 = vmatprep.subr.mxu0 0.0
      %1991 = vmatpush1.msra.mxu0 0.0
      %1992 = vmatprep.subr.mxu0 0.0
      %1993 = vmatpush1.msra.mxu0 0.0
      %1994 = vmatprep.subr.mxu0 0.0
      %1995 = vmatpush1.msra.mxu0 0.0
      %1996 = vmatprep.subr.mxu0 0.0
      %1997 = vmatpush1.msra.mxu0 0.0
      %1998 = vmatprep.subr.mxu0 0.0
      %1999 = vmatpush1.msra.mxu0 0.0
      %2000 = vmatprep.subr.mxu0 0.0
      %2001 = vmatpush1.msra.mxu0 0.0
      %2002 = vmatprep.subr.mxu0 0.0
      %2003 = vmatpush1.msra.mxu0 0.0
      %2004 = vmatprep.subr.mxu0 0.0
      %2005 = vmatpush1.msra.mxu0 0.0
      %2006 = vmatprep.subr.mxu0 0.0
      %2007 = vmatpush1.msra.mxu0 0.0
      %2008 = vmatprep.subr.mxu0 0.0
      %2009 = vmatpush1.msra.mxu0 0.0
      %2010 = vmatprep.subr.mxu0 0.0
      %2011 = vmatpush1.msra.mxu0 0.0
      %2012 = vmatprep.subr.mxu0 0.0
      %2013 = vmatpush1.msra.mxu0 0.0
      %2014 = vmatprep.subr.mxu0 0.0
      %2015 = vmatpush1.msra.mxu0 0.0
      %2016 = vmatprep.subr.mxu0 0.0
      %2017 = vmatpush1.msra.mxu0 0.0
      %2018 = vmatprep.mubr.f32.mxu0 0.0
      %2019 = vmatmul.mubr.f32.gmra.mrb[0].mxu0 %v1795
      %v2020 = vpop.f32.mrb[0].mxu0
      %v2021 = vadd.f32 0.0, %v2020
      %v2022 = vpop.f32.mrb[0].mxu0
      %v2023 = vadd.f32 0.0, %v2022
      %2024 = vmatprep.mubr.f32.mxu0 0.0
      %2025 = vmatmul.mubr.f32.gmra.mrb[0].mxu0 %v1798
      %v2026 = vpop.f32.mrb[0].mxu0
      %v2027 = vadd.f32 0.0, %v2026
      %v2028 = vpop.f32.mrb[0].mxu0
      %v2029 = vadd.f32 0.0, %v2028
      %2030 = vdwg.mxu0
      %v2031 = vadd.f32 %v1606, %v1867
      %v2032 = vadd.f32 %v1608, %v1869
      %v2033 = vadd.f32 %v1683, %v1944
      %v2034 = vadd.f32 %v1685, %v1946
      %v2035 = vadd.f32 %v1760, %v2021
      %v2036 = vadd.f32 %v1762, %v2023
      %v2037 = vadd.f32 %v1612, %v1873
      %v2038 = vadd.f32 %v1614, %v1875
      %v2039 = vadd.f32 %v1689, %v1950
      %v2040 = vadd.f32 %v1691, %v1952
      %v2041 = vadd.f32 %v1766, %v2027
      %v2042 = vadd.f32 %v1768, %v2029
      %v2043 = vld [vmem:[%s12] sm:$0x3f]
      %v2045 = vlaneseq
      %v2046 = vshrl.u32 %v2045, 7
      %v2047 = vsub.s32 0, %v2046
      %v2048 = vrot.slane %v2043, %v2047
      %v2049 = vlaneseq
      %v2050 = vshrl.u32 %v2049, 7
      %v2051 = vsub.s32 1, %v2050
      %v2052 = vrot.slane %v2043, %v2051
      %v2053 = vlaneseq
      %v2054 = vshrl.u32 %v2053, 7
      %v2055 = vsub.s32 2, %v2054
      %v2056 = vrot.slane %v2043, %v2055
      %v2057 = vlaneseq
      %v2058 = vshrl.u32 %v2057, 7
      %v2059 = vsub.s32 3, %v2058
      %v2060 = vrot.slane %v2043, %v2059
      %v2061 = vlaneseq
      %v2062 = vshrl.u32 %v2061, 7
      %v2063 = vsub.s32 4, %v2062
      %v2064 = vrot.slane %v2043, %v2063
      %v2065 = vlaneseq
      %v2066 = vshrl.u32 %v2065, 7
      %v2067 = vsub.s32 5, %v2066
      %v2068 = vrot.slane %v2043, %v2067
      %v2075 = vadd.f32 %v2031, %v2048
      %v2076 = vadd.f32 %v2032, %v2052
      %v2077 = vadd.f32 %v2033, %v2056
      %v2078 = vadd.f32 %v2034, %v2060
      %v2079 = vadd.f32 %v2035, %v2064
      %v2080 = vadd.f32 %v2036, %v2068
      %v2081 = vadd.f32 %v2037, %v2048
      %v2082 = vadd.f32 %v2038, %v2052
      %v2083 = vadd.f32 %v2039, %v2056
      %v2084 = vadd.f32 %v2040, %v2060
      %v2085 = vadd.f32 %v2041, %v2064
      %v2086 = vadd.f32 %v2042, %v2068
      %v2087 = vpack.c.bf16 %v2081, %v2075
      %v2088 = vpack.c.bf16 %v2082, %v2076
      %v2089 = vpack.c.bf16 %v2083, %v2077
      %v2090 = vpack.c.bf16 %v2084, %v2078
      %v2091 = vpack.c.bf16 %v2085, %v2079
      %v2092 = vpack.c.bf16 %v2086, %v2080
      %v2099 = vunpack.c.l.b16 %v2087
      %v2100 = vunpack.c.l.b16 %v2088
      %v2101 = vunpack.c.l.b16 %v2089
      %v2102 = vunpack.c.l.b16 %v2090
      %v2103 = vunpack.c.l.b16 %v2091
      %v2104 = vunpack.c.l.b16 %v2092
      %v2105 = vunpack.c.h.b16 %v2087
      %v2106 = vunpack.c.h.b16 %v2088
      %v2107 = vunpack.c.h.b16 %v2089
      %v2108 = vunpack.c.h.b16 %v2090
      %v2109 = vunpack.c.h.b16 %v2091
      %v2110 = vunpack.c.h.b16 %v2092
      %v2111 = vpack.c.b16 %v2100, %v2099
      %v2112 = vpack.c.b16 %v2102, %v2101
      %v2113 = vpack.c.b16 %v2104, %v2103
      %v2114 = vpack.c.b16 %v2106, %v2105
      %v2115 = vpack.c.b16 %v2108, %v2107
      %v2116 = vpack.c.b16 %v2110, %v2109
      %2123 = vst [vmem:[%s643] sm:$0xff] %v2111
      %2124 = vst [vmem:[%s643 + $0x8] sm:$0xff] %v2112
      %2125 = vst [vmem:[%s643 + $0x10] sm:$0xff] %v2113
      %2126 = vst [vmem:[%s643 + $0x18] sm:$0xff] %v2114
      %2127 = vst [vmem:[%s643 + $0x20] sm:$0xff] %v2115
      %2128 = vst [vmem:[%s643 + $0x28] sm:$0xff] %v2116
      %s2129 = smul.u32 2, %s31
      %p2130 = scmp.lt.s32.totalorder %s30, 1
      %s2131 = scalar_select %p2130, %s30, 1
      %p2132 = scmp.lt.s32.totalorder %s2129, 1
      %s2133 = scalar_select %p2132, %s2129, 1
      %s2134 = smul.addr %s2133, 6
      %s2135 = smul.addr %s2131, 12
      %s2136 = sadd.s32 %s2134, %s2135
      %s2137 = smul.addr %s2136, 4
      %s2138 = scalar_lea.vmem %s13, %s2137
      %s2139 = smul.u32 2, %s31
      %p2140 = scmp.lt.s32.totalorder %s30, 1
      %s2141 = scalar_select %p2140, %s30, 1
      %p2142 = scmp.lt.s32.totalorder %s2139, 1
      %s2143 = scalar_select %p2142, %s2139, 1
      %s2144 = smul.addr %s2141, 2
      %s2145 = sadd.s32 %s2143, %s2144
      %s2146 = smul.addr %s2145, 8
      %s2147 = scalar_lea.vmem %s14, %s2146
      // Predicated region
      $region73: #{forward.5} parent=71 // pred_check
        %p2148 = pneg %p364
      $region74: #{forward.5} parent=71 // pred_check_branch
        %2150 = sbr.rel (%p2148) target = $region76
      $region75: #{forward.5} parent=71 // pred_region
        %s2151 = smul.u32 2, %s31
      $region76: #{forward.5} parent=71 // pred_fallthru
        _
      // Predicated region
      $region77: #{forward.5} parent=71 // pred_check
        %p2152 = pneg %p392
      $region78: #{forward.5} parent=71 // pred_check_branch
        %2154 = sbr.rel (%p2152) target = $region80
      $region79: #{forward.5} parent=71 // pred_region
        %s2155 = smul.u32 2, %s31
      $region80: #{forward.5} parent=71 // pred_fallthru
        _
    $region72: #{forward.5} parent=5 // pred_fallthru
      _
    %p2156 = scmp.le.s32.totalorder 2, %s21
    // Predicated region
    $region81: #{forward.5} parent=5 // pred_check
      %p2157 = pneg %p2156
    $region82: #{forward.5} parent=5 // pred_check_branch
      %2159 = sbr.rel (%p2157) target = $region84
    $region83: #{forward.5} parent=5 // pred_region
      %s2160 = ssub.s32 %s21, 2
      // Predicated region
      $region85: #{forward.5} parent=83 // pred_check
        %p2161 = pneg %p370
      $region86: #{forward.5} parent=83 // pred_check_branch
        %2163 = sbr.rel (%p2161) target = $region88
      $region87: #{forward.5} parent=83 // pred_region
        %s2164 = smul.u32 2, %s33
        %p2165 = scmp.lt.s32.totalorder %s32, 1
        %s2166 = scalar_select %p2165, %s32, 1
        %p2167 = scmp.lt.s32.totalorder %s2164, 1
        %s2168 = scalar_select %p2167, %s2164, 1
        %s2169 = smul.addr %s2168, 6
        %s2170 = smul.addr %s2166, 12
        %s2171 = sadd.s32 %s2169, %s2170
        %s2172 = smul.addr %s2171, 4
        %s2173 = scalar_lea.vmem %s13, %s2172
      $region88: #{forward.5} parent=83 // pred_fallthru
        _
      // Predicated region
      $region89: #{forward.5} parent=83 // pred_check
        %p2174 = pneg %p398
      $region90: #{forward.5} parent=83 // pred_check_branch
        %2176 = sbr.rel (%p2174) target = $region92
      $region91: #{forward.5} parent=83 // pred_region
        %s2177 = smul.u32 2, %s33
        %p2178 = scmp.lt.s32.totalorder %s32, 1
        %s2179 = scalar_select %p2178, %s32, 1
        %p2180 = scmp.lt.s32.totalorder %s2177, 1
        %s2181 = scalar_select %p2180, %s2177, 1
        %s2182 = smul.addr %s2179, 2
        %s2183 = sadd.s32 %s2181, %s2182
        %s2184 = smul.addr %s2183, 8
        %s2185 = scalar_lea.vmem %s14, %s2184
      $region92: #{forward.5} parent=83 // pred_fallthru
        _
    $region84: #{forward.5} parent=5 // pred_fallthru
      _
  $region6: #{forward.5} parent=0 // loop_footer
    %s25 = sadd.s32 1, %s21
  $region7: #{forward.5} parent=0 // loop_footer_branch
    %20 = sbr.rel target = $region3
  $region8: #{forward.5} parent=0 // loop_exit
    _

// kernel: forward.4
$region0: #{forward.4}
  #allocation0 [shape = 'u32[]', space=smem, size = 0x4, offset = 0x4, fixed_abs, tag = 'smem constant byte address 0x4 - core index']
  #allocation1 [shape = 'u32[144,128]{1,0:T(1,128)}', space=vmem, size = 0x12000, scoped, tag = 'internal scratch']
  %s0 = inlined_call_operand.vmem [shape: bf16[2,1280], index: 0, kind: input, shape index: {}]
  %s1 = inlined_call_operand.vmem [shape: bf16[1280,64], index: 1, kind: input, shape index: {}]
  %s2 = inlined_call_operand.vmem [shape: f32[1,64], index: 2, kind: input, shape index: {}]
  %s3 = inlined_call_operand.vmem [shape: f32[64,16], index: 3, kind: input, shape index: {}]
  %s4 = inlined_call_operand.vmem [shape: f32[1,16], index: 4, kind: input, shape index: {}]
  %s5 = inlined_call_operand.vmem [shape: bf16[2,64], index: 5, kind: output, shape index: {0}]
  %s6 = inlined_call_operand.vmem [shape: f32[2,16], index: 6, kind: output, shape index: {1}]
  %s7 = inlined_call_operand.vmem [shape: f32[2,1], index: 7, kind: output, shape index: {2}]
  %8 = xla_tuple %s5, %s6, %s7
  %s9 = sld [smem:[#allocation0]]
  $region46: #{forward.4} parent=0
    _
  %s11 = ssub.s32 1, %s9
  %s12 = scalar_select 0, %s11, %s9
  // Predicated region
  $region2: #{forward.4} parent=0 // pred_check
    _
  $region3: #{forward.4} parent=0 // pred_check_branch
    %14 = sbr.rel (0) target = $region5
  $region4: #{forward.4} parent=0 // pred_region
    _
  $region5: #{forward.4} parent=0 // pred_fallthru
    _
  // Predicated region
  $region6: #{forward.4} parent=0 // pred_check
    _
  $region7: #{forward.4} parent=0 // pred_check_branch
    %16 = sbr.rel (0) target = $region9
  $region8: #{forward.4} parent=0 // pred_region
    _
  $region9: #{forward.4} parent=0 // pred_fallthru
    _
  // Predicated region
  $region10: #{forward.4} parent=0 // pred_check
    _
  $region11: #{forward.4} parent=0 // pred_check_branch
    %18 = sbr.rel (0) target = $region13
  $region12: #{forward.4} parent=0 // pred_region
    _
  $region13: #{forward.4} parent=0 // pred_fallthru
    _
  // Predicated region
  $region14: #{forward.4} parent=0 // pred_check
    _
  $region15: #{forward.4} parent=0 // pred_check_branch
    %20 = sbr.rel (0) target = $region17
  $region16: #{forward.4} parent=0 // pred_region
    _
  $region17: #{forward.4} parent=0 // pred_fallthru
    _
  // Predicated region
  $region18: #{forward.4} parent=0 // pred_check
    _
  $region19: #{forward.4} parent=0 // pred_check_branch
    %22 = sbr.rel (0) target = $region21
  $region20: #{forward.4} parent=0 // pred_region
    _
  $region21: #{forward.4} parent=0 // pred_fallthru
    _
  %v24 = vld [vmem:[%s0] sm:$0xff]
  %v25 = vld [vmem:[%s0 + $0x8] sm:$0x3]
  %v26 = vld [vmem:[%s1] sm:$0xf]
  %v27 = vld [vmem:[%s1 + $0x4] sm:$0xf]
  %v28 = vld [vmem:[%s1 + $0x8] sm:$0xf]
  %v29 = vld [vmem:[%s1 + $0xc] sm:$0xf]
  %v30 = vld [vmem:[%s1 + $0x10] sm:$0xf]
  %v31 = vld [vmem:[%s1 + $0x14] sm:$0xf]
  %v32 = vld [vmem:[%s1 + $0x18] sm:$0xf]
  %v33 = vld [vmem:[%s1 + $0x1c] sm:$0xf]
  %v34 = vld [vmem:[%s1 + $0x20] sm:$0xf]
  %v35 = vld [vmem:[%s1 + $0x24] sm:$0xf]
  %v36 = vld [vmem:[%s1 + $0x28] sm:$0xf]
  %v37 = vld [vmem:[%s1 + $0x2c] sm:$0xf]
  %v38 = vld [vmem:[%s1 + $0x30] sm:$0xf]
  %v39 = vld [vmem:[%s1 + $0x34] sm:$0xf]
  %v40 = vld [vmem:[%s1 + $0x38] sm:$0xf]
  %v41 = vld [vmem:[%s1 + $0x3c] sm:$0xf]
  %v42 = vld [vmem:[%s1 + $0x40] sm:$0xf]
  %v43 = vld [vmem:[%s1 + $0x44] sm:$0xf]
  %v44 = vld [vmem:[%s1 + $0x48] sm:$0xf]
  %v45 = vld [vmem:[%s1 + $0x4c] sm:$0xf]
  %v46 = vld [vmem:[%s1 + $0x50] sm:$0xf]
  %v47 = vld [vmem:[%s1 + $0x54] sm:$0xf]
  %v48 = vld [vmem:[%s1 + $0x58] sm:$0xf]
  %v49 = vld [vmem:[%s1 + $0x5c] sm:$0xf]
  %v50 = vld [vmem:[%s1 + $0x60] sm:$0xf]
  %v51 = vld [vmem:[%s1 + $0x64] sm:$0xf]
  %v52 = vld [vmem:[%s1 + $0x68] sm:$0xf]
  %v53 = vld [vmem:[%s1 + $0x6c] sm:$0xf]
  %v54 = vld [vmem:[%s1 + $0x70] sm:$0xf]
  %v55 = vld [vmem:[%s1 + $0x74] sm:$0xf]
  %v56 = vld [vmem:[%s1 + $0x78] sm:$0xf]
  %v57 = vld [vmem:[%s1 + $0x7c] sm:$0xf]
  %v58 = vld [vmem:[%s1 + $0x80] sm:$0xf]
  %v59 = vld [vmem:[%s1 + $0x84] sm:$0xf]
  %v60 = vld [vmem:[%s1 + $0x88] sm:$0xf]
  %v61 = vld [vmem:[%s1 + $0x8c] sm:$0xf]
  %v62 = vld [vmem:[%s1 + $0x90] sm:$0xf]
  %v63 = vld [vmem:[%s1 + $0x94] sm:$0xf]
  %v64 = vld [vmem:[%s1 + $0x98] sm:$0xf]
  %v65 = vld [vmem:[%s1 + $0x9c] sm:$0xf]
  %v66 = vld [vmem:[%s1 + $0xa0] sm:$0xf]
  %v67 = vld [vmem:[%s1 + $0xa4] sm:$0xf]
  %v68 = vld [vmem:[%s1 + $0xa8] sm:$0xf]
  %v69 = vld [vmem:[%s1 + $0xac] sm:$0xf]
  %v70 = vld [vmem:[%s1 + $0xb0] sm:$0xf]
  %v71 = vld [vmem:[%s1 + $0xb4] sm:$0xf]
  %v72 = vld [vmem:[%s1 + $0xb8] sm:$0xf]
  %v73 = vld [vmem:[%s1 + $0xbc] sm:$0xf]
  %v74 = vld [vmem:[%s1 + $0xc0] sm:$0xf]
  %v75 = vld [vmem:[%s1 + $0xc4] sm:$0xf]
  %v76 = vld [vmem:[%s1 + $0xc8] sm:$0xf]
  %v77 = vld [vmem:[%s1 + $0xcc] sm:$0xf]
  %v78 = vld [vmem:[%s1 + $0xd0] sm:$0xf]
  %v79 = vld [vmem:[%s1 + $0xd4] sm:$0xf]
  %v80 = vld [vmem:[%s1 + $0xd8] sm:$0xf]
  %v81 = vld [vmem:[%s1 + $0xdc] sm:$0xf]
  %v82 = vld [vmem:[%s1 + $0xe0] sm:$0xf]
  %v83 = vld [vmem:[%s1 + $0xe4] sm:$0xf]
  %v84 = vld [vmem:[%s1 + $0xe8] sm:$0xf]
  %v85 = vld [vmem:[%s1 + $0xec] sm:$0xf]
  %v86 = vld [vmem:[%s1 + $0xf0] sm:$0xf]
  %v87 = vld [vmem:[%s1 + $0xf4] sm:$0xf]
  %v88 = vld [vmem:[%s1 + $0xf8] sm:$0xf]
  %v89 = vld [vmem:[%s1 + $0xfc] sm:$0xf]
  %v90 = vld [vmem:[%s1 + $0x100] sm:$0xf]
  %v91 = vld [vmem:[%s1 + $0x104] sm:$0xf]
  %v92 = vld [vmem:[%s1 + $0x108] sm:$0xf]
  %v93 = vld [vmem:[%s1 + $0x10c] sm:$0xf]
  %v94 = vld [vmem:[%s1 + $0x110] sm:$0xf]
  %v95 = vld [vmem:[%s1 + $0x114] sm:$0xf]
  %v96 = vld [vmem:[%s1 + $0x118] sm:$0xf]
  %v97 = vld [vmem:[%s1 + $0x11c] sm:$0xf]
  %v98 = vld [vmem:[%s1 + $0x120] sm:$0xf]
  %v99 = vld [vmem:[%s1 + $0x124] sm:$0xf]
  %v100 = vld [vmem:[%s1 + $0x128] sm:$0xf]
  %v101 = vld [vmem:[%s1 + $0x12c] sm:$0xf]
  %v102 = vld [vmem:[%s1 + $0x130] sm:$0xf]
  %v103 = vld [vmem:[%s1 + $0x134] sm:$0xf]
  %v104 = vld [vmem:[%s1 + $0x138] sm:$0xf]
  %v105 = vld [vmem:[%s1 + $0x13c] sm:$0xf]
  %v106 = vld [vmem:[%s1 + $0x140] sm:$0xf]
  %v107 = vld [vmem:[%s1 + $0x144] sm:$0xf]
  %v108 = vld [vmem:[%s1 + $0x148] sm:$0xf]
  %v109 = vld [vmem:[%s1 + $0x14c] sm:$0xf]
  %v110 = vld [vmem:[%s1 + $0x150] sm:$0xf]
  %v111 = vld [vmem:[%s1 + $0x154] sm:$0xf]
  %v112 = vld [vmem:[%s1 + $0x158] sm:$0xf]
  %v113 = vld [vmem:[%s1 + $0x15c] sm:$0xf]
  %v114 = vld [vmem:[%s1 + $0x160] sm:$0xf]
  %v115 = vld [vmem:[%s1 + $0x164] sm:$0xf]
  %v116 = vld [vmem:[%s1 + $0x168] sm:$0xf]
  %v117 = vld [vmem:[%s1 + $0x16c] sm:$0xf]
  %v118 = vld [vmem:[%s1 + $0x170] sm:$0xf]
  %v119 = vld [vmem:[%s1 + $0x174] sm:$0xf]
  %v120 = vld [vmem:[%s1 + $0x178] sm:$0xf]
  %v121 = vld [vmem:[%s1 + $0x17c] sm:$0xf]
  %v122 = vld [vmem:[%s1 + $0x180] sm:$0xf]
  %v123 = vld [vmem:[%s1 + $0x184] sm:$0xf]
  %v124 = vld [vmem:[%s1 + $0x188] sm:$0xf]
  %v125 = vld [vmem:[%s1 + $0x18c] sm:$0xf]
  %v126 = vld [vmem:[%s1 + $0x190] sm:$0xf]
  %v127 = vld [vmem:[%s1 + $0x194] sm:$0xf]
  %v128 = vld [vmem:[%s1 + $0x198] sm:$0xf]
  %v129 = vld [vmem:[%s1 + $0x19c] sm:$0xf]
  %v130 = vld [vmem:[%s1 + $0x1a0] sm:$0xf]
  %v131 = vld [vmem:[%s1 + $0x1a4] sm:$0xf]
  %v132 = vld [vmem:[%s1 + $0x1a8] sm:$0xf]
  %v133 = vld [vmem:[%s1 + $0x1ac] sm:$0xf]
  %v134 = vld [vmem:[%s1 + $0x1b0] sm:$0xf]
  %v135 = vld [vmem:[%s1 + $0x1b4] sm:$0xf]
  %v136 = vld [vmem:[%s1 + $0x1b8] sm:$0xf]
  %v137 = vld [vmem:[%s1 + $0x1bc] sm:$0xf]
  %v138 = vld [vmem:[%s1 + $0x1c0] sm:$0xf]
  %v139 = vld [vmem:[%s1 + $0x1c4] sm:$0xf]
  %v140 = vld [vmem:[%s1 + $0x1c8] sm:$0xf]
  %v141 = vld [vmem:[%s1 + $0x1cc] sm:$0xf]
  %v142 = vld [vmem:[%s1 + $0x1d0] sm:$0xf]
  %v143 = vld [vmem:[%s1 + $0x1d4] sm:$0xf]
  %v144 = vld [vmem:[%s1 + $0x1d8] sm:$0xf]
  %v145 = vld [vmem:[%s1 + $0x1dc] sm:$0xf]
  %v146 = vld [vmem:[%s1 + $0x1e0] sm:$0xf]
  %v147 = vld [vmem:[%s1 + $0x1e4] sm:$0xf]
  %v148 = vld [vmem:[%s1 + $0x1e8] sm:$0xf]
  %v149 = vld [vmem:[%s1 + $0x1ec] sm:$0xf]
  %v150 = vld [vmem:[%s1 + $0x1f0] sm:$0xf]
  %v151 = vld [vmem:[%s1 + $0x1f4] sm:$0xf]
  %v152 = vld [vmem:[%s1 + $0x1f8] sm:$0xf]
  %v153 = vld [vmem:[%s1 + $0x1fc] sm:$0xf]
  %v154 = vld [vmem:[%s1 + $0x200] sm:$0xf]
  %v155 = vld [vmem:[%s1 + $0x204] sm:$0xf]
  %v156 = vld [vmem:[%s1 + $0x208] sm:$0xf]
  %v157 = vld [vmem:[%s1 + $0x20c] sm:$0xf]
  %v158 = vld [vmem:[%s1 + $0x210] sm:$0xf]
  %v159 = vld [vmem:[%s1 + $0x214] sm:$0xf]
  %v160 = vld [vmem:[%s1 + $0x218] sm:$0xf]
  %v161 = vld [vmem:[%s1 + $0x21c] sm:$0xf]
  %v162 = vld [vmem:[%s1 + $0x220] sm:$0xf]
  %v163 = vld [vmem:[%s1 + $0x224] sm:$0xf]
  %v164 = vld [vmem:[%s1 + $0x228] sm:$0xf]
  %v165 = vld [vmem:[%s1 + $0x22c] sm:$0xf]
  %v166 = vld [vmem:[%s1 + $0x230] sm:$0xf]
  %v167 = vld [vmem:[%s1 + $0x234] sm:$0xf]
  %v168 = vld [vmem:[%s1 + $0x238] sm:$0xf]
  %v169 = vld [vmem:[%s1 + $0x23c] sm:$0xf]
  %v170 = vld [vmem:[%s1 + $0x240] sm:$0xf]
  %v171 = vld [vmem:[%s1 + $0x244] sm:$0xf]
  %v172 = vld [vmem:[%s1 + $0x248] sm:$0xf]
  %v173 = vld [vmem:[%s1 + $0x24c] sm:$0xf]
  %v174 = vld [vmem:[%s1 + $0x250] sm:$0xf]
  %v175 = vld [vmem:[%s1 + $0x254] sm:$0xf]
  %v176 = vld [vmem:[%s1 + $0x258] sm:$0xf]
  %v177 = vld [vmem:[%s1 + $0x25c] sm:$0xf]
  %v178 = vld [vmem:[%s1 + $0x260] sm:$0xf]
  %v179 = vld [vmem:[%s1 + $0x264] sm:$0xf]
  %v180 = vld [vmem:[%s1 + $0x268] sm:$0xf]
  %v181 = vld [vmem:[%s1 + $0x26c] sm:$0xf]
  %v182 = vld [vmem:[%s1 + $0x270] sm:$0xf]
  %v183 = vld [vmem:[%s1 + $0x274] sm:$0xf]
  %v184 = vld [vmem:[%s1 + $0x278] sm:$0xf]
  %v185 = vld [vmem:[%s1 + $0x27c] sm:$0xf]
  %v186 = vld [vmem:[%s2] sm:$0x1]
  %v188 = vlaneseq
  %v189 = vshrl.u32 %v188, 7
  %v190 = vsub.s32 0, %v189
  %v191 = vrot.slane %v186, %v190
  %v195 = vcombine.high %v24, %v24
  %v197 = vunpack.c.l.s4 1966171168
  %v198 = vunpack.c.0.s8 %v197
  %v199 = vlaneseq
  %v200 = vshrl.u32 %v199, 7
  %v201 = vsub.s32 %v198, %v200
  %v202 = vrot.slane %v24, %v201
  %v204 = vunpack.c.l.s4 1966171168
  %v205 = vunpack.c.0.s8 %v204
  %v206 = vlaneseq
  %v207 = vshrl.u32 %v206, 7
  %v208 = vsub.s32 %v205, %v207
  %v209 = vrot.slane %v195, %v208
  %v210 = vcombine.high %v202, %v202
  %v211 = vcombine.high %v209, %v209
  %v213 = vunpack.c.l.s4 1966171168
  %v214 = vunpack.c.0.s8 %v213
  %v215 = vlaneseq
  %v216 = vshrl.u32 %v215, 7
  %v217 = vsub.s32 %v214, %v216
  %v218 = vrot.slane %v202, %v217
  %v220 = vunpack.c.l.s4 1966171168
  %v221 = vunpack.c.0.s8 %v220
  %v222 = vlaneseq
  %v223 = vshrl.u32 %v222, 7
  %v224 = vsub.s32 %v221, %v223
  %v225 = vrot.slane %v209, %v224
  %v227 = vunpack.c.l.s4 1966171168
  %v228 = vunpack.c.0.s8 %v227
  %v229 = vlaneseq
  %v230 = vshrl.u32 %v229, 7
  %v231 = vsub.s32 %v228, %v230
  %v232 = vrot.slane %v210, %v231
  %v234 = vunpack.c.l.s4 1966171168
  %v235 = vunpack.c.0.s8 %v234
  %v236 = vlaneseq
  %v237 = vshrl.u32 %v236, 7
  %v238 = vsub.s32 %v235, %v237
  %v239 = vrot.slane %v211, %v238
  %v240 = vcombine.high %v218, %v218
  %v241 = vcombine.high %v225, %v225
  %v242 = vcombine.high %v232, %v232
  %v243 = vcombine.high %v239, %v239
  %v245 = vunpack.c.l.s4 1966171168
  %v246 = vunpack.c.0.s8 %v245
  %v247 = vlaneseq
  %v248 = vshrl.u32 %v247, 7
  %v249 = vsub.s32 %v246, %v248
  %v250 = vrot.slane %v25, %v249
  %v251 = vcombine.high %v250, %v250
  %v253 = vunpack.c.l.s4 1966171168
  %v254 = vunpack.c.0.s8 %v253
  %v255 = vlaneseq
  %v256 = vshrl.u32 %v255, 7
  %v257 = vsub.s32 %v254, %v256
  %v258 = vrot.slane %v250, %v257
  %v260 = vunpack.c.l.s4 1966171168
  %v261 = vunpack.c.0.s8 %v260
  %v262 = vlaneseq
  %v263 = vshrl.u32 %v262, 7
  %v264 = vsub.s32 %v261, %v263
  %v265 = vrot.slane %v251, %v264
  %v436 = vunpack.c.l.b16 %v26
  %v437 = vunpack.c.l.b16 %v27
  %v438 = vunpack.c.l.b16 %v28
  %v439 = vunpack.c.l.b16 %v29
  %v440 = vunpack.c.l.b16 %v30
  %v441 = vunpack.c.l.b16 %v31
  %v442 = vunpack.c.l.b16 %v32
  %v443 = vunpack.c.l.b16 %v33
  %v444 = vunpack.c.l.b16 %v34
  %v445 = vunpack.c.l.b16 %v35
  %v446 = vunpack.c.l.b16 %v36
  %v447 = vunpack.c.l.b16 %v37
  %v448 = vunpack.c.l.b16 %v38
  %v449 = vunpack.c.l.b16 %v39
  %v450 = vunpack.c.l.b16 %v40
  %v451 = vunpack.c.l.b16 %v41
  %v452 = vunpack.c.l.b16 %v42
  %v453 = vunpack.c.l.b16 %v43
  %v454 = vunpack.c.l.b16 %v44
  %v455 = vunpack.c.l.b16 %v45
  %v456 = vunpack.c.l.b16 %v46
  %v457 = vunpack.c.l.b16 %v47
  %v458 = vunpack.c.l.b16 %v48
  %v459 = vunpack.c.l.b16 %v49
  %v460 = vunpack.c.l.b16 %v50
  %v461 = vunpack.c.l.b16 %v51
  %v462 = vunpack.c.l.b16 %v52
  %v463 = vunpack.c.l.b16 %v53
  %v464 = vunpack.c.l.b16 %v54
  %v465 = vunpack.c.l.b16 %v55
  %v466 = vunpack.c.l.b16 %v56
  %v467 = vunpack.c.l.b16 %v57
  %v468 = vunpack.c.l.b16 %v58
  %v469 = vunpack.c.l.b16 %v59
  %v470 = vunpack.c.l.b16 %v60
  %v471 = vunpack.c.l.b16 %v61
  %v472 = vunpack.c.l.b16 %v62
  %v473 = vunpack.c.l.b16 %v63
  %v474 = vunpack.c.l.b16 %v64
  %v475 = vunpack.c.l.b16 %v65
  %v476 = vunpack.c.l.b16 %v66
  %v477 = vunpack.c.l.b16 %v67
  %v478 = vunpack.c.l.b16 %v68
  %v479 = vunpack.c.l.b16 %v69
  %v480 = vunpack.c.l.b16 %v70
  %v481 = vunpack.c.l.b16 %v71
  %v482 = vunpack.c.l.b16 %v72
  %v483 = vunpack.c.l.b16 %v73
  %v484 = vunpack.c.l.b16 %v74
  %v485 = vunpack.c.l.b16 %v75
  %v486 = vunpack.c.l.b16 %v76
  %v487 = vunpack.c.l.b16 %v77
  %v488 = vunpack.c.l.b16 %v78
  %v489 = vunpack.c.l.b16 %v79
  %v490 = vunpack.c.l.b16 %v80
  %v491 = vunpack.c.l.b16 %v81
  %v492 = vunpack.c.l.b16 %v82
  %v493 = vunpack.c.l.b16 %v83
  %v494 = vunpack.c.l.b16 %v84
  %v495 = vunpack.c.l.b16 %v85
  %v496 = vunpack.c.l.b16 %v86
  %v497 = vunpack.c.l.b16 %v87
  %v498 = vunpack.c.l.b16 %v88
  %v499 = vunpack.c.l.b16 %v89
  %v500 = vunpack.c.l.b16 %v90
  %v501 = vunpack.c.l.b16 %v91
  %v502 = vunpack.c.l.b16 %v92
  %v503 = vunpack.c.l.b16 %v93
  %v504 = vunpack.c.l.b16 %v94
  %v505 = vunpack.c.l.b16 %v95
  %v506 = vunpack.c.l.b16 %v96
  %v507 = vunpack.c.l.b16 %v97
  %v508 = vunpack.c.l.b16 %v98
  %v509 = vunpack.c.l.b16 %v99
  %v510 = vunpack.c.l.b16 %v100
  %v511 = vunpack.c.l.b16 %v101
  %v512 = vunpack.c.l.b16 %v102
  %v513 = vunpack.c.l.b16 %v103
  %v514 = vunpack.c.l.b16 %v104
  %v515 = vunpack.c.l.b16 %v105
  %v516 = vunpack.c.l.b16 %v106
  %v517 = vunpack.c.l.b16 %v107
  %v518 = vunpack.c.l.b16 %v108
  %v519 = vunpack.c.l.b16 %v109
  %v520 = vunpack.c.l.b16 %v110
  %v521 = vunpack.c.l.b16 %v111
  %v522 = vunpack.c.l.b16 %v112
  %v523 = vunpack.c.l.b16 %v113
  %v524 = vunpack.c.l.b16 %v114
  %v525 = vunpack.c.l.b16 %v115
  %v526 = vunpack.c.l.b16 %v116
  %v527 = vunpack.c.l.b16 %v117
  %v528 = vunpack.c.l.b16 %v118
  %v529 = vunpack.c.l.b16 %v119
  %v530 = vunpack.c.l.b16 %v120
  %v531 = vunpack.c.l.b16 %v121
  %v532 = vunpack.c.l.b16 %v122
  %v533 = vunpack.c.l.b16 %v123
  %v534 = vunpack.c.l.b16 %v124
  %v535 = vunpack.c.l.b16 %v125
  %v536 = vunpack.c.l.b16 %v126
  %v537 = vunpack.c.l.b16 %v127
  %v538 = vunpack.c.l.b16 %v128
  %v539 = vunpack.c.l.b16 %v129
  %v540 = vunpack.c.l.b16 %v130
  %v541 = vunpack.c.l.b16 %v131
  %v542 = vunpack.c.l.b16 %v132
  %v543 = vunpack.c.l.b16 %v133
  %v544 = vunpack.c.l.b16 %v134
  %v545 = vunpack.c.l.b16 %v135
  %v546 = vunpack.c.l.b16 %v136
  %v547 = vunpack.c.l.b16 %v137
  %v548 = vunpack.c.l.b16 %v138
  %v549 = vunpack.c.l.b16 %v139
  %v550 = vunpack.c.l.b16 %v140
  %v551 = vunpack.c.l.b16 %v141
  %v552 = vunpack.c.l.b16 %v142
  %v553 = vunpack.c.l.b16 %v143
  %v554 = vunpack.c.l.b16 %v144
  %v555 = vunpack.c.l.b16 %v145
  %v556 = vunpack.c.l.b16 %v146
  %v557 = vunpack.c.l.b16 %v147
  %v558 = vunpack.c.l.b16 %v148
  %v559 = vunpack.c.l.b16 %v149
  %v560 = vunpack.c.l.b16 %v150
  %v561 = vunpack.c.l.b16 %v151
  %v562 = vunpack.c.l.b16 %v152
  %v563 = vunpack.c.l.b16 %v153
  %v564 = vunpack.c.l.b16 %v154
  %v565 = vunpack.c.l.b16 %v155
  %v566 = vunpack.c.l.b16 %v156
  %v567 = vunpack.c.l.b16 %v157
  %v568 = vunpack.c.l.b16 %v158
  %v569 = vunpack.c.l.b16 %v159
  %v570 = vunpack.c.l.b16 %v160
  %v571 = vunpack.c.l.b16 %v161
  %v572 = vunpack.c.l.b16 %v162
  %v573 = vunpack.c.l.b16 %v163
  %v574 = vunpack.c.l.b16 %v164
  %v575 = vunpack.c.l.b16 %v165
  %v576 = vunpack.c.l.b16 %v166
  %v577 = vunpack.c.l.b16 %v167
  %v578 = vunpack.c.l.b16 %v168
  %v579 = vunpack.c.l.b16 %v169
  %v580 = vunpack.c.l.b16 %v170
  %v581 = vunpack.c.l.b16 %v171
  %v582 = vunpack.c.l.b16 %v172
  %v583 = vunpack.c.l.b16 %v173
  %v584 = vunpack.c.l.b16 %v174
  %v585 = vunpack.c.l.b16 %v175
  %v586 = vunpack.c.l.b16 %v176
  %v587 = vunpack.c.l.b16 %v177
  %v588 = vunpack.c.l.b16 %v178
  %v589 = vunpack.c.l.b16 %v179
  %v590 = vunpack.c.l.b16 %v180
  %v591 = vunpack.c.l.b16 %v181
  %v592 = vunpack.c.l.b16 %v182
  %v593 = vunpack.c.l.b16 %v183
  %v594 = vunpack.c.l.b16 %v184
  %v595 = vunpack.c.l.b16 %v185
  %v596 = vpack.c.b16 %v437, %v436
  %v597 = vpack.c.b16 %v439, %v438
  %v598 = vpack.c.b16 %v441, %v440
  %v599 = vpack.c.b16 %v443, %v442
  %v600 = vpack.c.b16 %v445, %v444
  %v601 = vpack.c.b16 %v447, %v446
  %v602 = vpack.c.b16 %v449, %v448
  %v603 = vpack.c.b16 %v451, %v450
  %v604 = vpack.c.b16 %v453, %v452
  %v605 = vpack.c.b16 %v455, %v454
  %v606 = vpack.c.b16 %v457, %v456
  %v607 = vpack.c.b16 %v459, %v458
  %v608 = vpack.c.b16 %v461, %v460
  %v609 = vpack.c.b16 %v463, %v462
  %v610 = vpack.c.b16 %v465, %v464
  %v611 = vpack.c.b16 %v467, %v466
  %v612 = vpack.c.b16 %v469, %v468
  %v613 = vpack.c.b16 %v471, %v470
  %v614 = vpack.c.b16 %v473, %v472
  %v615 = vpack.c.b16 %v475, %v474
  %v616 = vpack.c.b16 %v477, %v476
  %v617 = vpack.c.b16 %v479, %v478
  %v618 = vpack.c.b16 %v481, %v480
  %v619 = vpack.c.b16 %v483, %v482
  %v620 = vpack.c.b16 %v485, %v484
  %v621 = vpack.c.b16 %v487, %v486
  %v622 = vpack.c.b16 %v489, %v488
  %v623 = vpack.c.b16 %v491, %v490
  %v624 = vpack.c.b16 %v493, %v492
  %v625 = vpack.c.b16 %v495, %v494
  %v626 = vpack.c.b16 %v497, %v496
  %v627 = vpack.c.b16 %v499, %v498
  %v628 = vpack.c.b16 %v501, %v500
  %v629 = vpack.c.b16 %v503, %v502
  %v630 = vpack.c.b16 %v505, %v504
  %v631 = vpack.c.b16 %v507, %v506
  %v632 = vpack.c.b16 %v509, %v508
  %v633 = vpack.c.b16 %v511, %v510
  %v634 = vpack.c.b16 %v513, %v512
  %v635 = vpack.c.b16 %v515, %v514
  %v636 = vpack.c.b16 %v517, %v516
  %v637 = vpack.c.b16 %v519, %v518
  %v638 = vpack.c.b16 %v521, %v520
  %v639 = vpack.c.b16 %v523, %v522
  %v640 = vpack.c.b16 %v525, %v524
  %v641 = vpack.c.b16 %v527, %v526
  %v642 = vpack.c.b16 %v529, %v528
  %v643 = vpack.c.b16 %v531, %v530
  %v644 = vpack.c.b16 %v533, %v532
  %v645 = vpack.c.b16 %v535, %v534
  %v646 = vpack.c.b16 %v537, %v536
  %v647 = vpack.c.b16 %v539, %v538
  %v648 = vpack.c.b16 %v541, %v540
  %v649 = vpack.c.b16 %v543, %v542
  %v650 = vpack.c.b16 %v545, %v544
  %v651 = vpack.c.b16 %v547, %v546
  %v652 = vpack.c.b16 %v549, %v548
  %v653 = vpack.c.b16 %v551, %v550
  %v654 = vpack.c.b16 %v553, %v552
  %v655 = vpack.c.b16 %v555, %v554
  %v656 = vpack.c.b16 %v557, %v556
  %v657 = vpack.c.b16 %v559, %v558
  %v658 = vpack.c.b16 %v561, %v560
  %v659 = vpack.c.b16 %v563, %v562
  %v660 = vpack.c.b16 %v565, %v564
  %v661 = vpack.c.b16 %v567, %v566
  %v662 = vpack.c.b16 %v569, %v568
  %v663 = vpack.c.b16 %v571, %v570
  %v664 = vpack.c.b16 %v573, %v572
  %v665 = vpack.c.b16 %v575, %v574
  %v666 = vpack.c.b16 %v577, %v576
  %v667 = vpack.c.b16 %v579, %v578
  %v668 = vpack.c.b16 %v581, %v580
  %v669 = vpack.c.b16 %v583, %v582
  %v670 = vpack.c.b16 %v585, %v584
  %v671 = vpack.c.b16 %v587, %v586
  %v672 = vpack.c.b16 %v589, %v588
  %v673 = vpack.c.b16 %v591, %v590
  %v674 = vpack.c.b16 %v593, %v592
  %v675 = vpack.c.b16 %v595, %v594
  %756 = vmatprep.subr.bf16.mxu0 0
  %757 = vmatpush1.bf16.msra.mxu0 %v596
  %758 = vmatprep.subr.bf16.mxu0 0
  %759 = vmatpush1.bf16.msra.mxu0 %v597
  %760 = vmatprep.subr.bf16.mxu0 0
  %761 = vmatpush1.bf16.msra.mxu0 %v598
  %762 = vmatprep.subr.bf16.mxu0 0
  %763 = vmatpush1.bf16.msra.mxu0 %v599
  %764 = vmatprep.subr.bf16.mxu0 0
  %765 = vmatpush1.bf16.msra.mxu0 %v600
  %766 = vmatprep.subr.bf16.mxu0 0
  %767 = vmatpush1.bf16.msra.mxu0 %v601
  %768 = vmatprep.subr.bf16.mxu0 0
  %769 = vmatpush1.bf16.msra.mxu0 %v602
  %770 = vmatprep.subr.bf16.mxu0 0
  %771 = vmatpush1.bf16.msra.mxu0 %v603
  %772 = vmatprep.subr.bf16.mxu0 0
  %773 = vmatpush1.bf16.msra.mxu0 %v604
  %774 = vmatprep.subr.bf16.mxu0 0
  %775 = vmatpush1.bf16.msra.mxu0 %v605
  %776 = vmatprep.subr.bf16.mxu0 0
  %777 = vmatpush1.bf16.msra.mxu0 %v606
  %778 = vmatprep.subr.bf16.mxu0 0
  %779 = vmatpush1.bf16.msra.mxu0 %v607
  %780 = vmatprep.subr.bf16.mxu0 0
  %781 = vmatpush1.bf16.msra.mxu0 %v608
  %782 = vmatprep.subr.bf16.mxu0 0
  %783 = vmatpush1.bf16.msra.mxu0 %v609
  %784 = vmatprep.subr.bf16.mxu0 0
  %785 = vmatpush1.bf16.msra.mxu0 %v610
  %786 = vmatprep.subr.bf16.mxu0 0
  %787 = vmatpush1.bf16.msra.mxu0 %v611
  %788 = vmatprep.mubr.bf16.mxu0 %v232
  %789 = vmatmul.mubr.bf16.gmra.mrb[0].mxu0 %v218
  %v790 = vpop.f32.mrb[0].mxu0
  %v791 = vadd.f32 %v191, %v790
  %v792 = vpop.f32.mrb[0].mxu0
  %v793 = vpop.f32.mrb[0].mxu0
  %v794 = vpop.f32.mrb[0].mxu0
  %795 = vdwg.mxu0
  %796 = vmatprep.subr.bf16.mxu0 0
  %797 = vmatpush1.bf16.msra.mxu0 %v612
  %798 = vmatprep.subr.bf16.mxu0 0
  %799 = vmatpush1.bf16.msra.mxu0 %v613
  %800 = vmatprep.subr.bf16.mxu0 0
  %801 = vmatpush1.bf16.msra.mxu0 %v614
  %802 = vmatprep.subr.bf16.mxu0 0
  %803 = vmatpush1.bf16.msra.mxu0 %v615
  %804 = vmatprep.subr.bf16.mxu0 0
  %805 = vmatpush1.bf16.msra.mxu0 %v616
  %806 = vmatprep.subr.bf16.mxu0 0
  %807 = vmatpush1.bf16.msra.mxu0 %v617
  %808 = vmatprep.subr.bf16.mxu0 0
  %809 = vmatpush1.bf16.msra.mxu0 %v618
  %810 = vmatprep.subr.bf16.mxu0 0
  %811 = vmatpush1.bf16.msra.mxu0 %v619
  %812 = vmatprep.subr.bf16.mxu0 0
  %813 = vmatpush1.bf16.msra.mxu0 %v620
  %814 = vmatprep.subr.bf16.mxu0 0
  %815 = vmatpush1.bf16.msra.mxu0 %v621
  %816 = vmatprep.subr.bf16.mxu0 0
  %817 = vmatpush1.bf16.msra.mxu0 %v622
  %818 = vmatprep.subr.bf16.mxu0 0
  %819 = vmatpush1.bf16.msra.mxu0 %v623
  %820 = vmatprep.subr.bf16.mxu0 0
  %821 = vmatpush1.bf16.msra.mxu0 %v624
  %822 = vmatprep.subr.bf16.mxu0 0
  %823 = vmatpush1.bf16.msra.mxu0 %v625
  %824 = vmatprep.subr.bf16.mxu0 0
  %825 = vmatpush1.bf16.msra.mxu0 %v626
  %826 = vmatprep.subr.bf16.mxu0 0
  %827 = vmatpush1.bf16.msra.mxu0 %v627
  %828 = vmatprep.mubr.bf16.mxu0 %v242
  %829 = vmatmul.mubr.bf16.gmra.mrb[0].mxu0 %v240
  %v830 = vpop.f32.mrb[0].mxu0
  %v831 = vadd.f32 %v791, %v830
  %v832 = vpop.f32.mrb[0].mxu0
  %v833 = vpop.f32.mrb[0].mxu0
  %v834 = vpop.f32.mrb[0].mxu0
  %835 = vdwg.mxu0
  %836 = vmatprep.subr.bf16.mxu0 0
  %837 = vmatpush1.bf16.msra.mxu0 %v628
  %838 = vmatprep.subr.bf16.mxu0 0
  %839 = vmatpush1.bf16.msra.mxu0 %v629
  %840 = vmatprep.subr.bf16.mxu0 0
  %841 = vmatpush1.bf16.msra.mxu0 %v630
  %842 = vmatprep.subr.bf16.mxu0 0
  %843 = vmatpush1.bf16.msra.mxu0 %v631
  %844 = vmatprep.subr.bf16.mxu0 0
  %845 = vmatpush1.bf16.msra.mxu0 %v632
  %846 = vmatprep.subr.bf16.mxu0 0
  %847 = vmatpush1.bf16.msra.mxu0 %v633
  %848 = vmatprep.subr.bf16.mxu0 0
  %849 = vmatpush1.bf16.msra.mxu0 %v634
  %850 = vmatprep.subr.bf16.mxu0 0
  %851 = vmatpush1.bf16.msra.mxu0 %v635
  %852 = vmatprep.subr.bf16.mxu0 0
  %853 = vmatpush1.bf16.msra.mxu0 %v636
  %854 = vmatprep.subr.bf16.mxu0 0
  %855 = vmatpush1.bf16.msra.mxu0 %v637
  %856 = vmatprep.subr.bf16.mxu0 0
  %857 = vmatpush1.bf16.msra.mxu0 %v638
  %858 = vmatprep.subr.bf16.mxu0 0
  %859 = vmatpush1.bf16.msra.mxu0 %v639
  %860 = vmatprep.subr.bf16.mxu0 0
  %861 = vmatpush1.bf16.msra.mxu0 %v640
  %862 = vmatprep.subr.bf16.mxu0 0
  %863 = vmatpush1.bf16.msra.mxu0 %v641
  %864 = vmatprep.subr.bf16.mxu0 0
  %865 = vmatpush1.bf16.msra.mxu0 %v642
  %866 = vmatprep.subr.bf16.mxu0 0
  %867 = vmatpush1.bf16.msra.mxu0 %v643
  %868 = vmatprep.mubr.bf16.mxu0 %v239
  %869 = vmatmul.mubr.bf16.gmra.mrb[0].mxu0 %v225
  %v870 = vpop.f32.mrb[0].mxu0
  %v871 = vadd.f32 %v831, %v870
  %v872 = vpop.f32.mrb[0].mxu0
  %v873 = vpop.f32.mrb[0].mxu0
  %v874 = vpop.f32.mrb[0].mxu0
  %875 = vdwg.mxu0
  %876 = vmatprep.subr.bf16.mxu0 0
  %877 = vmatpush1.bf16.msra.mxu0 %v644
  %878 = vmatprep.subr.bf16.mxu0 0
  %879 = vmatpush1.bf16.msra.mxu0 %v645
  %880 = vmatprep.subr.bf16.mxu0 0
  %881 = vmatpush1.bf16.msra.mxu0 %v646
  %882 = vmatprep.subr.bf16.mxu0 0
  %883 = vmatpush1.bf16.msra.mxu0 %v647
  %884 = vmatprep.subr.bf16.mxu0 0
  %885 = vmatpush1.bf16.msra.mxu0 %v648
  %886 = vmatprep.subr.bf16.mxu0 0
  %887 = vmatpush1.bf16.msra.mxu0 %v649
  %888 = vmatprep.subr.bf16.mxu0 0
  %889 = vmatpush1.bf16.msra.mxu0 %v650
  %890 = vmatprep.subr.bf16.mxu0 0
  %891 = vmatpush1.bf16.msra.mxu0 %v651
  %892 = vmatprep.subr.bf16.mxu0 0
  %893 = vmatpush1.bf16.msra.mxu0 %v652
  %894 = vmatprep.subr.bf16.mxu0 0
  %895 = vmatpush1.bf16.msra.mxu0 %v653
  %896 = vmatprep.subr.bf16.mxu0 0
  %897 = vmatpush1.bf16.msra.mxu0 %v654
  %898 = vmatprep.subr.bf16.mxu0 0
  %899 = vmatpush1.bf16.msra.mxu0 %v655
  %900 = vmatprep.subr.bf16.mxu0 0
  %901 = vmatpush1.bf16.msra.mxu0 %v656
  %902 = vmatprep.subr.bf16.mxu0 0
  %903 = vmatpush1.bf16.msra.mxu0 %v657
  %904 = vmatprep.subr.bf16.mxu0 0
  %905 = vmatpush1.bf16.msra.mxu0 %v658
  %906 = vmatprep.subr.bf16.mxu0 0
  %907 = vmatpush1.bf16.msra.mxu0 %v659
  %908 = vmatprep.mubr.bf16.mxu0 %v243
  %909 = vmatmul.mubr.bf16.gmra.mrb[0].mxu0 %v241
  %v910 = vpop.f32.mrb[0].mxu0
  %v911 = vadd.f32 %v871, %v910
  %v912 = vpop.f32.mrb[0].mxu0
  %v913 = vpop.f32.mrb[0].mxu0
  %v914 = vpop.f32.mrb[0].mxu0
  %915 = vdwg.mxu0
  %916 = vmatprep.subr.bf16.mxu0 0
  %917 = vmatpush1.bf16.msra.mxu0 %v660
  %918 = vmatprep.subr.bf16.mxu0 0
  %919 = vmatpush1.bf16.msra.mxu0 %v661
  %920 = vmatprep.subr.bf16.mxu0 0
  %921 = vmatpush1.bf16.msra.mxu0 %v662
  %922 = vmatprep.subr.bf16.mxu0 0
  %923 = vmatpush1.bf16.msra.mxu0 %v663
  %924 = vmatprep.subr.bf16.mxu0 0
  %925 = vmatpush1.bf16.msra.mxu0 %v664
  %926 = vmatprep.subr.bf16.mxu0 0
  %927 = vmatpush1.bf16.msra.mxu0 %v665
  %928 = vmatprep.subr.bf16.mxu0 0
  %929 = vmatpush1.bf16.msra.mxu0 %v666
  %930 = vmatprep.subr.bf16.mxu0 0
  %931 = vmatpush1.bf16.msra.mxu0 %v667
  %932 = vmatprep.subr.bf16.mxu0 0
  %933 = vmatpush1.bf16.msra.mxu0 %v668
  %934 = vmatprep.subr.bf16.mxu0 0
  %935 = vmatpush1.bf16.msra.mxu0 %v669
  %936 = vmatprep.subr.bf16.mxu0 0
  %937 = vmatpush1.bf16.msra.mxu0 %v670
  %938 = vmatprep.subr.bf16.mxu0 0
  %939 = vmatpush1.bf16.msra.mxu0 %v671
  %940 = vmatprep.subr.bf16.mxu0 0
  %941 = vmatpush1.bf16.msra.mxu0 %v672
  %942 = vmatprep.subr.bf16.mxu0 0
  %943 = vmatpush1.bf16.msra.mxu0 %v673
  %944 = vmatprep.subr.bf16.mxu0 0
  %945 = vmatpush1.bf16.msra.mxu0 %v674
  %946 = vmatprep.subr.bf16.mxu0 0
  %947 = vmatpush1.bf16.msra.mxu0 %v675
  %948 = vmatprep.mubr.bf16.mxu0 %v265
  %949 = vmatmul.mubr.bf16.gmra.mrb[0].mxu0 %v258
  %v950 = vpop.f32.mrb[0].mxu0
  %v951 = vadd.f32 %v911, %v950
  %v952 = vpop.f32.mrb[0].mxu0
  %v953 = vpop.f32.mrb[0].mxu0
  %v954 = vpop.f32.mrb[0].mxu0
  %955 = vdwg.mxu0
  %v956 = vpack.c.bf16 %v951, %v951
  %vm957 = vcmask 516096
  %958 = vst.msk [vmem:[%s5] sm:$0x1] %vm957, %v956
  %v959 = vld [vmem:[%s3] sm:$0xff]
  %v960 = vld [vmem:[%s3 + $0x8] sm:$0xff]
  %v961 = vld [vmem:[%s3 + $0x10] sm:$0xff]
  %v962 = vld [vmem:[%s3 + $0x18] sm:$0xff]
  %v963 = vld [vmem:[%s3 + $0x20] sm:$0xff]
  %v964 = vld [vmem:[%s3 + $0x28] sm:$0xff]
  %v965 = vld [vmem:[%s3 + $0x30] sm:$0xff]
  %v966 = vld [vmem:[%s3 + $0x38] sm:$0xff]
  %v967 = vld [vmem:[%s4] sm:$0x1]
  %v969 = vlaneseq
  %v970 = vshrl.u32 %v969, 7
  %v971 = vsub.s32 0, %v970
  %v972 = vrot.slane %v967, %v971
  %vm974 = vcmask 523264
  %v976 = vsel %vm974, %v951, 0
  %978 = vmatprep.subr.mxu0 0.0
  %979 = vmatpush1.msra.mxu0 %v959
  %980 = vmatprep.subr.mxu0 0.0
  %981 = vmatpush1.msra.mxu0 %v960
  %982 = vmatprep.subr.mxu0 0.0
  %983 = vmatpush1.msra.mxu0 %v961
  %984 = vmatprep.subr.mxu0 0.0
  %985 = vmatpush1.msra.mxu0 %v962
  %986 = vmatprep.subr.mxu0 0.0
  %987 = vmatpush1.msra.mxu0 %v963
  %988 = vmatprep.subr.mxu0 0.0
  %989 = vmatpush1.msra.mxu0 %v964
  %990 = vmatprep.subr.mxu0 0.0
  %991 = vmatpush1.msra.mxu0 %v965
  %992 = vmatprep.subr.mxu0 0.0
  %993 = vmatpush1.msra.mxu0 %v966
  %994 = vmatprep.subr.mxu0 0.0
  %995 = vmatpush1.msra.mxu0 0.0
  %996 = vmatprep.subr.mxu0 0.0
  %997 = vmatpush1.msra.mxu0 0.0
  %998 = vmatprep.subr.mxu0 0.0
  %999 = vmatpush1.msra.mxu0 0.0
  %1000 = vmatprep.subr.mxu0 0.0
  %1001 = vmatpush1.msra.mxu0 0.0
  %1002 = vmatprep.subr.mxu0 0.0
  %1003 = vmatpush1.msra.mxu0 0.0
  %1004 = vmatprep.subr.mxu0 0.0
  %1005 = vmatpush1.msra.mxu0 0.0
  %1006 = vmatprep.subr.mxu0 0.0
  %1007 = vmatpush1.msra.mxu0 0.0
  %1008 = vmatprep.subr.mxu0 0.0
  %1009 = vmatpush1.msra.mxu0 0.0
  %1010 = vmatprep.subr.mxu0 0.0
  %1011 = vmatpush1.msra.mxu0 0.0
  %1012 = vmatprep.subr.mxu0 0.0
  %1013 = vmatpush1.msra.mxu0 0.0
  %1014 = vmatprep.subr.mxu0 0.0
  %1015 = vmatpush1.msra.mxu0 0.0
  %1016 = vmatprep.subr.mxu0 0.0
  %1017 = vmatpush1.msra.mxu0 0.0
  %1018 = vmatprep.subr.mxu0 0.0
  %1019 = vmatpush1.msra.mxu0 0.0
  %1020 = vmatprep.subr.mxu0 0.0
  %1021 = vmatpush1.msra.mxu0 0.0
  %1022 = vmatprep.subr.mxu0 0.0
  %1023 = vmatpush1.msra.mxu0 0.0
  %1024 = vmatprep.subr.mxu0 0.0
  %1025 = vmatpush1.msra.mxu0 0.0
  %1026 = vmatprep.subr.mxu0 0.0
  %1027 = vmatpush1.msra.mxu0 0.0
  %1028 = vmatprep.subr.mxu0 0.0
  %1029 = vmatpush1.msra.mxu0 0.0
  %1030 = vmatprep.subr.mxu0 0.0
  %1031 = vmatpush1.msra.mxu0 0.0
  %1032 = vmatprep.subr.mxu0 0.0
  %1033 = vmatpush1.msra.mxu0 0.0
  %1034 = vmatprep.subr.mxu0 0.0
  %1035 = vmatpush1.msra.mxu0 0.0
  %1036 = vmatprep.subr.mxu0 0.0
  %1037 = vmatpush1.msra.mxu0 0.0
  %1038 = vmatprep.subr.mxu0 0.0
  %1039 = vmatpush1.msra.mxu0 0.0
  %1040 = vmatprep.subr.mxu0 0.0
  %1041 = vmatpush1.msra.mxu0 0.0
  %1042 = vmatprep.mubr.f32.mxu0 0.0
  %1043 = vmatmul.mubr.f32.gmra.mrb[0].mxu0 %v976
  %v1044 = vpop.f32.mrb[0].mxu0
  %v1045 = vadd.f32 %v972, %v1044
  %v1046 = vpop.f32.mrb[0].mxu0
  %1047 = vdwg.mxu0
  %v1048 = vround.ne.pseudo %v1045
  %vm1049 = vcmask 123904
  %1050 = vst.msk [vmem:[%s6] sm:$0x3] %vm1049, %v1048
  %v1051 = vadd.f32 %v1048, 0.5
  %v1052 = vmul.f32 %v1051, 0.5
  %v1053 = vtanh.pop %v1052
  %v1054 = vadd.f32 %v1053, 1.0
  %v1055 = vmul.f32 %v1054, 0.5
  %v1056 = vsub.f32 %v1048, 0.5
  %v1057 = vmul.f32 %v1056, 0.5
  %v1058 = vtanh.pop %v1057
  %v1059 = vadd.f32 %v1058, 1.0
  %v1060 = vmul.f32 %v1059, 0.5
  %v1061 = vsub.f32 %v1055, %v1060
  %v1062 = vand.u32 2147483647, %v1061
  %v1063 = vadd.f32 %v1062, 1e-10
  %v1064 = vlog2.pop %v1063
  %v1065 = vmul.f32 %v1064, 0.6931472
  %v1066 = vsub.f32 0.0, %v1065
  %v1067 = vmul.f32 %v1066, 1.442695
  %v1068 = vsel %vm1049, %v1067, 0.0
  %1069 = vadd.xlane.f32.xlu0 %v1068
  %v1070 = vpop.xlane.xlu0 %1069
  %vm1071 = vcmask 1024
  %1072 = vst.msk [vmem:[%s7] sm:$0x3] %vm1071, %v1070
  // Predicated region
  $region22: #{forward.4} parent=0 // pred_check
    _
  $region23: #{forward.4} parent=0 // pred_check_branch
    %1074 = sbr.rel (0) target = $region25
  $region24: #{forward.4} parent=0 // pred_region
    _
  $region25: #{forward.4} parent=0 // pred_fallthru
    _
  // Predicated region
  $region26: #{forward.4} parent=0 // pred_check
    _
  $region27: #{forward.4} parent=0 // pred_check_branch
    %1076 = sbr.rel (0) target = $region29
  $region28: #{forward.4} parent=0 // pred_region
    _
  $region29: #{forward.4} parent=0 // pred_fallthru
    _
  // Predicated region
  $region30: #{forward.4} parent=0 // pred_check
    _
  $region31: #{forward.4} parent=0 // pred_check_branch
    %1078 = sbr.rel (0) target = $region33
  $region32: #{forward.4} parent=0 // pred_region
    _
  $region33: #{forward.4} parent=0 // pred_fallthru
    _
  // Predicated region
  $region34: #{forward.4} parent=0 // pred_check
    _
  $region35: #{forward.4} parent=0 // pred_check_branch
    %1080 = sbr.rel (0) target = $region37
  $region36: #{forward.4} parent=0 // pred_region
    _
  $region37: #{forward.4} parent=0 // pred_fallthru
    _
  // Predicated region
  $region38: #{forward.4} parent=0 // pred_check
    _
  $region39: #{forward.4} parent=0 // pred_check_branch
    %1082 = sbr.rel (0) target = $region41
  $region40: #{forward.4} parent=0 // pred_region
    _
  $region41: #{forward.4} parent=0 // pred_fallthru
    _
  // Predicated region
  $region42: #{forward.4} parent=0 // pred_check
    _
  $region43: #{forward.4} parent=0 // pred_check_branch
    %1084 = sbr.rel (0) target = $region45
  $region44: #{forward.4} parent=0 // pred_region
    _
  $region45: #{forward.4} parent=0 // pred_fallthru
    _

</llo_original>
